<compile_context>
chip_gen: v7x
topology: tpu7x:2x2x1
jax: 0.10.0
libtpu: 0.0.40
codegen_flags: <defaults>
</compile_context>

<pallas_src>
import functools

import numpy as np
import jax
import jax.numpy as jnp
from jax.experimental import pallas as pl
from jax.experimental.pallas import tpu as pltpu


def _ceil(a, b):
    return -(-a // b)


def _r8(n):
    return _ceil(n, 8) * 8


def _r128(n):
    return _ceil(n, 128) * 128


# ------------------------------- Pallas kernel ----------------------------- #

def _tens_conv1d_kernel(x_ref, w_ref, y_ref, *, L8, K, dilation, fuse_taps):
    """x_ref: (tile, L8 + dilation*(K-1), Ceff)  zero-padded activations
       w_ref: (K*Ceff, Cout)                     im2col weight (tap-major rows)
       y_ref: (tile, L8, Cout)"""
    f32 = jnp.float32
    tile = x_ref.shape[0]
    c_in = x_ref.shape[2]
    c_out = y_ref.shape[2]

    # Gather the K dilated taps once (item 2).  K is small and static: unroll.
    taps = [x_ref[:, k * dilation:k * dilation + L8, :] for k in range(K)]

    if fuse_taps:
        # im2col: all taps on the lane axis -> ONE (tile*L8, K*Ceff)@(K*Ceff, Cout)
        # MXU matmul per block (item 1).  L8 % 8 == 0 so the leading-dim merge
        # below is a free relayout.
        lhs = taps[0] if K == 1 else jnp.concatenate(taps, axis=-1)
        lhs = lhs.reshape(tile * L8, K * c_in)
        acc = jnp.dot(lhs, w_ref[...], preferred_element_type=f32)
    else:
        # Fallback (used only if this Mosaic build rejects the unaligned lane
        # concat): per-tap matmuls, accumulator initialised from tap 0 (item 11).
        acc = jnp.dot(taps[0].reshape(tile * L8, c_in), w_ref[0:c_in, :],
                      preferred_element_type=f32)
        for k in range(1, K):
            acc = acc + jnp.dot(taps[k].reshape(tile * L8, c_in),
                                w_ref[k * c_in:(k + 1) * c_in, :],
                                preferred_element_type=f32)

    y_ref[...] = acc.reshape(tile, L8, c_out).astype(y_ref.dtype)


# --------------------------- tile-size byte budget -------------------------- #

def _pick_tile_rows(n_rows, Lp, L8, c_in, c_out, kc_rows,
                    in_dtype, w_dtype, out_dtype,
                    budget_bytes=16 * 1024 * 1024, min_grid_steps=4):
    """Largest row tile whose (double-buffered, lane/sublane-padded) blocks plus
    the in-kernel im2col/accumulator working set fit the VMEM budget (item 5)."""
    in_isz = jnp.dtype(in_dtype).itemsize
    w_isz = jnp.dtype(w_dtype).itemsize
    out_isz = jnp.dtype(out_dtype).itemsize
    # grid-invariant weight block (double-buffered by the default pipeline)
    fixed = 2 * _r8(kc_rows) * _r128(c_out) * w_isz
    per_row = (2 * _r8(Lp) * _r128(c_in) * in_isz       # input block (x2 buffers)
               + 2 * _r8(L8) * _r128(c_out) * out_isz   # output block (x2 buffers)
               + L8 * _r128(kc_rows) * in_isz           # im2col LHS working set
               + L8 * _r128(c_out) * 4)                 # f32 MXU result
    avail = max(budget_bytes - fixed, per_row)
    tile = max(int(avail // per_row), 1)
    # Keep >= min_grid_steps grid steps (>= 2 per TensorCore on v7x, item 6)
    # whenever the row count allows it.
    tile = min(tile, max(1, _ceil(n_rows, min(n_rows, min_grid_steps))))
    return min(tile, n_rows)


# --------------------------------- wrapper --------------------------------- #

def tens_conv1d(x, weight, *, dilation=1, compute_dtype=None, tile_rows=None,
                vmem_limit_bytes=32 * 1024 * 1024,
                kron_weight_limit_bytes=4 * 1024 * 1024):
    """x: (B, L, C, *(3,)*inds);  weight: (C_out, C_in, K) (torch Conv1d layout),
    K odd, padding='same', no bias."""
    orig_shape = x.shape
    B, L, C = x.shape[0], x.shape[1], x.shape[2]
    T = 1
    for s in x.shape[3:]:
        T *= s
    Co, Ci, K = weight.shape
    assert Co == C and Ci == C, "conv must be chan -> chan"
    assert K % 2 == 1, "kernel size must be odd"

    pad = dilation * (K - 1) // 2           # 'same' padding (stride 1, odd K)
    L8 = _r8(L)                             # item 4: length padded to sublanes
    Lp = L8 + 2 * pad

    cdt = jnp.dtype(compute_dtype) if compute_dtype is not None else jnp.dtype(x.dtype)
    out_dtype = x.dtype

    wk = jnp.transpose(weight, (2, 1, 0))   # (K, C_in, C_out), tap-major

    # Strategy (items 3 & 12): if chan is not lane-aligned, fold the tensor
    # components onto the lane axis (Ceff = C*T) with a block-diagonal weight:
    # lane-dense loads/stores and zero HBM transpose passes in the wrapper.
    # If chan is already a multiple of 128 (or the Kronecker weight would be
    # too large), fold the components into rows instead (exact FLOPs).
    kron_bytes = K * (C * T) * (C * T) * cdt.itemsize
    tfold = (C % 128 != 0) and (kron_bytes <= kron_weight_limit_bytes)

    if tfold:
        Ceff = C * T
        xr = x.reshape(B, L, Ceff)                       # free view, no transpose
        eye = jnp.eye(T, dtype=wk.dtype)
        w_eff = jnp.einsum('kio,tu->kitou', wk, eye).reshape(K * Ceff, Ceff)
        rows = B
    else:
        Ceff = C
        # TODO(synk): for this path the (B,L,C,T)->(B*T,L,C) transpose is an
        # extra HBM pass; CompilerParams(allow_input_fusion=...) could fold it
        # into the input DMA on supporting builds.
        xr = jnp.transpose(x.reshape(B, L, C, T), (0, 3, 1, 2)).reshape(B * T, L, C)
        w_eff = wk.reshape(K * C, C)
        rows = B * T

    # 'same' padding on the left, 'same' + length-alignment padding on the right.
    xr = jnp.pad(xr, ((0, 0), (pad, pad + (L8 - L)), (0, 0)))

    if tile_rows is None:
        tile_rows = _pick_tile_rows(rows, Lp, L8, Ceff, Ceff, K * Ceff,
                                    cdt, cdt, out_dtype)
    n_blk = _ceil(rows, tile_rows)
    rows_pad = n_blk * tile_rows
    if rows_pad != rows:                                 # ragged row count
        xr = jnp.pad(xr, ((0, rows_pad - rows), (0, 0), (0, 0)))

    xr = xr.astype(cdt)                                  # items 7/8 (optional bf16)
    w_eff = w_eff.astype(cdt)

    def run(fuse):
        kernel = functools.partial(_tens_conv1d_kernel, L8=L8, K=K,
                                   dilation=dilation, fuse_taps=fuse)
        return pl.pallas_call(
            kernel,
            grid=(n_blk,),
            in_specs=[
                pl.BlockSpec((tile_rows, Lp, Ceff), lambda i: (i, 0, 0)),
                # Grid-invariant weights: the pipeline does not re-issue this
                # copy after step 0.
                # TODO(synk): single-buffer it (pl.Buffered(1)) once
                # pipeline_mode is universally honoured; at large chan the
                # second buffer wastes VMEM (item 9).
                pl.BlockSpec((K * Ceff, Ceff), lambda i: (0, 0)),
            ],
            out_specs=pl.BlockSpec((tile_rows, L8, Ceff), lambda i: (i, 0, 0)),
            out_shape=jax.ShapeDtypeStruct((rows_pad, L8, Ceff), out_dtype),
            compiler_params=pltpu.CompilerParams(
                dimension_semantics=("parallel",),
                vmem_limit_bytes=vmem_limit_bytes),
        )(xr, w_eff)

    try:
        y = run(True)
    except Exception:
        # Older Mosaic builds may reject the unaligned lane-axis concat used by
        # the fused im2col path; fall back to per-tap matmuls (still correct).
        y = run(False)

    y = y[:rows, :L, :]
    if tfold:
        return y.reshape(orig_shape)
    y = y.reshape(B, T, L, C)
    y = jnp.transpose(y, (0, 2, 3, 1)).reshape(orig_shape)
    return y


# ------------------------ pure-JAX reference (checks) ----------------------- #

def reference(x, weight, dilation):
    """Mirrors TensConv1d.forward exactly, via XLA's conv (independent path)."""
    B, L, C = x.shape[0], x.shape[1], x.shape[2]
    T = 1
    for s in x.shape[3:]:
        T *= s
    K = weight.shape[-1]
    pad = dilation * (K - 1) // 2
    xf = x.reshape(B, L, C, T)
    xr = jnp.transpose(xf, (0, 3, 2, 1)).reshape(B * T, C, L)   # torch (BT,C,L)
    y = jax.lax.conv_general_dilated(
        xr, weight, window_strides=(1,), padding=[(pad, pad)],
        rhs_dilation=(dilation,), dimension_numbers=('NCH', 'OIH', 'NCH'))
    y = y.reshape(B, T, C, L)
    y = jnp.transpose(y, (0, 3, 2, 1)).reshape(x.shape)
    return y


# ----------------------------------- main ----------------------------------- #

if __name__ == "__main__":
    key = jax.random.PRNGKey(0)

    def make_case(k, B, L, C, inds, K):
        kx, kw = jax.random.split(k)
        x = jax.random.normal(kx, (B, L, C) + (3,) * inds, jnp.float32)
        bound = (C * K) ** -0.5        # nn.Conv1d default init range
        w = jax.random.uniform(kw, (C, C, K), jnp.float32, -bound, bound)
        return x, w

    k1, k2 = jax.random.split(key)

    # Case 1: small chan, inds=2 tensor features -> lane-folded (Ceff=288) path.
    x1, w1 = make_case(k1, B=2, L=16, C=32, inds=2, K=5)
    y1 = tens_conv1d(x1, w1, dilation=2)
    jax.block_until_ready(y1)
    np.testing.assert_allclose(np.asarray(y1), np.asarray(reference(x1, w1, 2)),
                               rtol=1e-4, atol=1e-4)

    # Case 2: lane-aligned chan (C % 128 == 0), ragged length -> row-folded path.
    x2, w2 = make_case(k2, B=2, L=12, C=128, inds=1, K=3)
    y2 = tens_conv1d(x2, w2, dilation=1)
    jax.block_until_ready(y2)
    np.testing.assert_allclose(np.asarray(y2), np.asarray(reference(x2, w2, 1)),
                               rtol=1e-4, atol=1e-4)

    # Case 3: bf16 activations/weights with f32 MXU accumulation (v6e/v7x fast path).
    y3 = tens_conv1d(x1, w1, dilation=2, compute_dtype=jnp.bfloat16)
    jax.block_until_ready(y3)
    np.testing.assert_allclose(np.asarray(y3), np.asarray(reference(x1, w1, 2)),
                               rtol=2e-2, atol=2e-2)

    print("KERNEL_OK")
</pallas_src>

<mosaic_0001>
module attributes {stable_mosaic.version = 11 : i64} {
  func.func @_tens_conv1d_kernel(%arg0: i32, %arg1: memref<1x24x288xf32, #tpu.memory_space<vmem>>, %arg2: memref<1440x288xf32, #tpu.memory_space<vmem>>, %arg3: memref<1x16x288xf32, #tpu.memory_space<vmem>>) attributes {dimension_semantics = [#tpu.dimension_semantics<parallel>], iteration_bounds = array<i64: 2>, scalar_prefetch = 0 : i64, scratch_operands = 0 : i64, tpu.core_type = #tpu.core_type<tc>, window_params = [{transform_indices = @transform_0, window_bounds = array<i64: 1, 24, 288>}, {pipeline_mode = #tpu.pipeline_mode<synchronous>, transform_indices = @transform_1, window_bounds = array<i64: 1440, 288>}, {transform_indices = @transform_2, window_bounds = array<i64: 1, 16, 288>}]} {
    %c0 = arith.constant 0 : index
    %c0_0 = arith.constant 0 : index
    %c0_1 = arith.constant 0 : index
    %0 = vector.load %arg1[%c0, %c0_0, %c0_1] : memref<1x24x288xf32, #tpu.memory_space<vmem>>, vector<1x16x288xf32>
    %c0_2 = arith.constant 0 : index
    %c2 = arith.constant 2 : index
    %c0_3 = arith.constant 0 : index
    %1 = vector.load %arg1[%c0_2, %c2, %c0_3] : memref<1x24x288xf32, #tpu.memory_space<vmem>>, vector<1x16x288xf32>
    %c0_4 = arith.constant 0 : index
    %c4 = arith.constant 4 : index
    %c0_5 = arith.constant 0 : index
    %2 = vector.load %arg1[%c0_4, %c4, %c0_5] : memref<1x24x288xf32, #tpu.memory_space<vmem>>, vector<1x16x288xf32>
    %c0_6 = arith.constant 0 : index
    %c6 = arith.constant 6 : index
    %c0_7 = arith.constant 0 : index
    %3 = vector.load %arg1[%c0_6, %c6, %c0_7] : memref<1x24x288xf32, #tpu.memory_space<vmem>>, vector<1x16x288xf32>
    %c0_8 = arith.constant 0 : index
    %c8 = arith.constant 8 : index
    %c0_9 = arith.constant 0 : index
    %4 = vector.load %arg1[%c0_8, %c8, %c0_9] : memref<1x24x288xf32, #tpu.memory_space<vmem>>, vector<1x16x288xf32>
    %5 = tpu.concatenate %0, %1, %2, %3, %4 in 2 : vector<1x16x288xf32>, vector<1x16x288xf32>, vector<1x16x288xf32>, vector<1x16x288xf32>, vector<1x16x288xf32> -> vector<1x16x1440xf32>
    %6 = vector.shape_cast %5 : vector<1x16x1440xf32> to vector<16x1440xf32>
    %c0_10 = arith.constant 0 : index
    %c0_11 = arith.constant 0 : index
    %7 = vector.load %arg2[%c0_10, %c0_11] : memref<1440x288xf32, #tpu.memory_space<vmem>>, vector<1440x288xf32>
    %cst = arith.constant dense<0.000000e+00> : vector<16x288xf32>
    %8 = tpu.matmul %6, %7, %cst {dimension_numbers = #tpu.dot_dimension_numbers<[1], [0], [0], [1], [0, 0, 1, 1], [], []>} : vector<16x1440xf32>, vector<1440x288xf32>, vector<16x288xf32> -> vector<16x288xf32>
    %9 = vector.shape_cast %8 : vector<16x288xf32> to vector<1x16x288xf32>
    %c0_12 = arith.constant 0 : index
    %c0_13 = arith.constant 0 : index
    %c0_14 = arith.constant 0 : index
    %10 = vector.load %arg3[%c0_12, %c0_13, %c0_14] : memref<1x16x288xf32, #tpu.memory_space<vmem>>, vector<1x16x288xf32>
    tpu.vector_store %arg3[%c0_12, %c0_13, %c0_14], %9 {strides = array<i32>} : memref<1x16x288xf32, #tpu.memory_space<vmem>>, vector<1x16x288xf32>,
    return
  }
  func.func @transform_0(%arg0: i32) -> (i32, i32, i32) {
    %c0_i32 = arith.constant 0 : i32
    %c0_i32_0 = arith.constant 0 : i32
    %c0_i32_1 = arith.constant 0 : i32
    return %arg0, %c0_i32, %c0_i32_0 : i32, i32, i32
  }
  func.func @transform_1(%arg0: i32) -> (i32, i32) {
    %c0_i32 = arith.constant 0 : i32
    %c0_i32_0 = arith.constant 0 : i32
    %c0_i32_1 = arith.constant 0 : i32
    return %c0_i32, %c0_i32_0 : i32, i32
  }
  func.func @transform_2(%arg0: i32) -> (i32, i32, i32) {
    %c0_i32 = arith.constant 0 : i32
    %c0_i32_0 = arith.constant 0 : i32
    %c0_i32_1 = arith.constant 0 : i32
    return %arg0, %c0_i32, %c0_i32_0 : i32, i32, i32
  }
}

module attributes {stable_mosaic.version = 11 : i64} {
  func.func @_tens_conv1d_kernel(%arg0: i32, %arg1: memref<1x24x288xf32, #tpu.memory_space<vmem>>, %arg2: memref<1440x288xf32, #tpu.memory_space<vmem>>, %arg3: memref<1x16x288xf32, #tpu.memory_space<vmem>>) attributes {dimension_semantics = [#tpu.dimension_semantics<parallel>], iteration_bounds = array<i64: 2>, scalar_prefetch = 0 : i64, scratch_operands = 0 : i64, tpu.core_type = #tpu.core_type<tc>, window_params = [{transform_indices = @transform_0, window_bounds = array<i64: 1, 24, 288>}, {pipeline_mode = #tpu.pipeline_mode<synchronous>, transform_indices = @transform_1, window_bounds = array<i64: 1440, 288>}, {transform_indices = @transform_2, window_bounds = array<i64: 1, 16, 288>}]} {
    %c0 = arith.constant 0 : index
    %c0_0 = arith.constant 0 : index
    %c0_1 = arith.constant 0 : index
    %0 = vector.load %arg1[%c0, %c0_0, %c0_1] : memref<1x24x288xf32, #tpu.memory_space<vmem>>, vector<1x16x288xf32>
    %c0_2 = arith.constant 0 : index
    %c2 = arith.constant 2 : index
    %c0_3 = arith.constant 0 : index
    %1 = vector.load %arg1[%c0_2, %c2, %c0_3] : memref<1x24x288xf32, #tpu.memory_space<vmem>>, vector<1x16x288xf32>
    %c0_4 = arith.constant 0 : index
    %c4 = arith.constant 4 : index
    %c0_5 = arith.constant 0 : index
    %2 = vector.load %arg1[%c0_4, %c4, %c0_5] : memref<1x24x288xf32, #tpu.memory_space<vmem>>, vector<1x16x288xf32>
    %c0_6 = arith.constant 0 : index
    %c6 = arith.constant 6 : index
    %c0_7 = arith.constant 0 : index
    %3 = vector.load %arg1[%c0_6, %c6, %c0_7] : memref<1x24x288xf32, #tpu.memory_space<vmem>>, vector<1x16x288xf32>
    %c0_8 = arith.constant 0 : index
    %c8 = arith.constant 8 : index
    %c0_9 = arith.constant 0 : index
    %4 = vector.load %arg1[%c0_8, %c8, %c0_9] : memref<1x24x288xf32, #tpu.memory_space<vmem>>, vector<1x16x288xf32>
    %5 = vector.shape_cast %0 : vector<1x16x288xf32> to vector<16x288xf32>
    %c0_10 = arith.constant 0 : index
    %c0_11 = arith.constant 0 : index
    %6 = vector.load %arg2[%c0_10, %c0_11] : memref<1440x288xf32, #tpu.memory_space<vmem>>, vector<288x288xf32>
    %cst = arith.constant dense<0.000000e+00> : vector<16x288xf32>
    %7 = tpu.matmul %5, %6, %cst {dimension_numbers = #tpu.dot_dimension_numbers<[1], [0], [0], [1], [0, 0, 1, 1], [], []>} : vector<16x288xf32>, vector<288x288xf32>, vector<16x288xf32> -> vector<16x288xf32>
    %8 = vector.shape_cast %1 : vector<1x16x288xf32> to vector<16x288xf32>
    %c288 = arith.constant 288 : index
    %c0_12 = arith.constant 0 : index
    %9 = vector.load %arg2[%c288, %c0_12] : memref<1440x288xf32, #tpu.memory_space<vmem>>, vector<288x288xf32>
    %cst_13 = arith.constant dense<0.000000e+00> : vector<16x288xf32>
    %10 = tpu.matmul %8, %9, %cst_13 {dimension_numbers = #tpu.dot_dimension_numbers<[1], [0], [0], [1], [0, 0, 1, 1], [], []>} : vector<16x288xf32>, vector<288x288xf32>, vector<16x288xf32> -> vector<16x288xf32>
    %11 = arith.addf %7, %10 : vector<16x288xf32>
    %12 = vector.shape_cast %2 : vector<1x16x288xf32> to vector<16x288xf32>
    %c576 = arith.constant 576 : index
    %c0_14 = arith.constant 0 : index
    %13 = vector.load %arg2[%c576, %c0_14] : memref<1440x288xf32, #tpu.memory_space<vmem>>, vector<288x288xf32>
    %cst_15 = arith.constant dense<0.000000e+00> : vector<16x288xf32>
    %14 = tpu.matmul %12, %13, %cst_15 {dimension_numbers = #tpu.dot_dimension_numbers<[1], [0], [0], [1], [0, 0, 1, 1], [], []>} : vector<16x288xf32>, vector<288x288xf32>, vector<16x288xf32> -> vector<16x288xf32>
    %15 = arith.addf %11, %14 : vector<16x288xf32>
    %16 = vector.shape_cast %3 : vector<1x16x288xf32> to vector<16x288xf32>
    %c864 = arith.constant 864 : index
    %c0_16 = arith.constant 0 : index
    %17 = vector.load %arg2[%c864, %c0_16] : memref<1440x288xf32, #tpu.memory_space<vmem>>, vector<288x288xf32>
    %cst_17 = arith.constant dense<0.000000e+00> : vector<16x288xf32>
    %18 = tpu.matmul %16, %17, %cst_17 {dimension_numbers = #tpu.dot_dimension_numbers<[1], [0], [0], [1], [0, 0, 1, 1], [], []>} : vector<16x288xf32>, vector<288x288xf32>, vector<16x288xf32> -> vector<16x288xf32>
    %19 = arith.addf %15, %18 : vector<16x288xf32>
    %20 = vector.shape_cast %4 : vector<1x16x288xf32> to vector<16x288xf32>
    %c1152 = arith.constant 1152 : index
    %c0_18 = arith.constant 0 : index
    %21 = vector.load %arg2[%c1152, %c0_18] : memref<1440x288xf32, #tpu.memory_space<vmem>>, vector<288x288xf32>
    %cst_19 = arith.constant dense<0.000000e+00> : vector<16x288xf32>
    %22 = tpu.matmul %20, %21, %cst_19 {dimension_numbers = #tpu.dot_dimension_numbers<[1], [0], [0], [1], [0, 0, 1, 1], [], []>} : vector<16x288xf32>, vector<288x288xf32>, vector<16x288xf32> -> vector<16x288xf32>
    %23 = arith.addf %19, %22 : vector<16x288xf32>
    %24 = vector.shape_cast %23 : vector<16x288xf32> to vector<1x16x288xf32>
    %c0_20 = arith.constant 0 : index
    %c0_21 = arith.constant 0 : index
    %c0_22 = arith.constant 0 : index
    %25 = vector.load %arg3[%c0_20, %c0_21, %c0_22] : memref<1x16x288xf32, #tpu.memory_space<vmem>>, vector<1x16x288xf32>
    tpu.vector_store %arg3[%c0_20, %c0_21, %c0_22], %24 {strides = array<i32>} : memref<1x16x288xf32, #tpu.memory_space<vmem>>, vector<1x16x288xf32>,
    return
  }
  func.func @transform_0(%arg0: i32) -> (i32, i32, i32) {
    %c0_i32 = arith.constant 0 : i32
    %c0_i32_0 = arith.constant 0 : i32
    %c0_i32_1 = arith.constant 0 : i32
    return %arg0, %c0_i32, %c0_i32_0 : i32, i32, i32
  }
  func.func @transform_1(%arg0: i32) -> (i32, i32) {
    %c0_i32 = arith.constant 0 : i32
    %c0_i32_0 = arith.constant 0 : i32
    %c0_i32_1 = arith.constant 0 : i32
    return %c0_i32, %c0_i32_0 : i32, i32
  }
  func.func @transform_2(%arg0: i32) -> (i32, i32, i32) {
    %c0_i32 = arith.constant 0 : i32
    %c0_i32_0 = arith.constant 0 : i32
    %c0_i32_1 = arith.constant 0 : i32
    return %arg0, %c0_i32, %c0_i32_0 : i32, i32, i32
  }
}

</mosaic_0001>

<llo_original>
// kernel: tpu_custom_call.1
$region0: #{tpu_custom_call.1}
  #allocation0 [shape = 'u32[]', space=smem, size = 0x4, offset = 0x4, fixed_abs, tag = 'smem constant byte address 0x4 - core index']
  #allocation1 [shape = 'u32[144,128]{1,0:T(1,128)}', space=vmem, size = 0x12000, scoped, tag = 'internal scratch']
  %s0 = inlined_call_operand.vmem [shape: f32[2,24,288], index: 0, kind: input, shape index: {}]
  %s1 = inlined_call_operand.vmem [shape: f32[1440,288], index: 1, kind: input, shape index: {}]
  %s2 = inlined_call_operand.hbm [shape: f32[2,16,288], index: 2, kind: output, shape index: {}]
  %s3 = sld [smem:[#allocation0]]
  $region41: #{tpu_custom_call.1} parent=0
    _
  %s5 = ssub.s32 1, %s3
  %s6 = scalar_select 0, %s5, %s3
  $region1: #{tpu_custom_call.1} parent=0
    #allocation2 [shape = 'u8[49152]{0}', space=vmem, size = 0xc000, scoped, tag = 'output window, operand 0']
    #allocation3 [shape = 's32[2]{0}', space=sflag, size = 0x8, scoped, tag = 'scoped memory for tpu_custom_call.1']
    %7 = vsyncpa [#allocation3], 0
    %s8 = scalar_lea.sflag [#allocation3], 1
    %9 = vsyncpa %s8, 0
    loop: start=0, step=1, limit=4
    $region2: #{tpu_custom_call.1} parent=1 // loop_pre_header
      _
    $region3: #{tpu_custom_call.1} parent=1 // loop_header
      %s11 = sphi 0, %s15
      %p12 = scmp.ge.s32.totalorder %s11, 4
      %s21 = sphi 0, %s23
      %s24 = sphi 0, %s21
      %s25 = sphi 0, %s24
      %s41 = sphi 0, %s25
      %s45 = sphi 0, %s45
      %s47 = sphi 0, %s45
      %s48 = sphi 0, %s47
      %s62 = sphi 0, %s48
      %s68 = sphi 0, %s70
      %s71 = sphi 0, %s68
      %s72 = sphi 0, %s71
      %s88 = sphi 0, %s72
    $region4: #{tpu_custom_call.1} parent=1 // loop_header_branch
      %14 = sbr.rel (%p12) target = $region8
    $region5: #{tpu_custom_call.1} parent=1 // loop_body
      %s16 = ssub.s32 %s11, 1
      %s17 = ssub.s32 %s11, 2
      %s18 = sadd.s32 %s11, 1
      %s19 = ssub.s32 %s11, %s18
      %p20 = scmp.eq.s32.totalorder %s19, 0
      %s22 = sadd.s32 %s21, 1
      %s23 = scalar_select %p20, %s21, %s22
      %p26 = pneg %p20
      %p27 = scmp.eq.s32.totalorder %s11, 1
      %p28 = por %p26, %p27
      %p29 = scmp.ne.s32.totalorder %s21, %s24
      %p30 = scmp.eq.s32.totalorder %s11, 0
      %p31 = por %p29, %p30
      %p32 = scmp.ne.s32.totalorder %s21, %s24
      %p33 = scmp.eq.s32.totalorder %s16, 1
      %p34 = por %p32, %p33
      %p35 = scmp.ne.s32.totalorder %s24, %s25
      %p36 = scmp.eq.s32.totalorder %s16, 0
      %p37 = por %p35, %p36
      %p38 = scmp.ne.s32.totalorder %s24, %s25
      %p39 = scmp.eq.s32.totalorder %s17, 1
      %p40 = por %p38, %p39
      %p42 = scmp.ne.s32.totalorder %s25, %s41
      %p43 = scmp.eq.s32.totalorder %s17, 0
      %p44 = por %p42, %p43
      %s46 = sadd.s32 %s45, 1
      %p49 = scmp.eq.s32.totalorder %s11, 1
      %p50 = scmp.ne.s32.totalorder %s45, %s47
      %p51 = scmp.eq.s32.totalorder %s11, 0
      %p52 = por %p50, %p51
      %p53 = scmp.ne.s32.totalorder %s45, %s47
      %p54 = scmp.eq.s32.totalorder %s16, 1
      %p55 = por %p53, %p54
      %p56 = scmp.ne.s32.totalorder %s47, %s48
      %p57 = scmp.eq.s32.totalorder %s16, 0
      %p58 = por %p56, %p57
      %p59 = scmp.ne.s32.totalorder %s47, %s48
      %p60 = scmp.eq.s32.totalorder %s17, 1
      %p61 = por %p59, %p60
      %p63 = scmp.ne.s32.totalorder %s48, %s62
      %p64 = scmp.eq.s32.totalorder %s17, 0
      %p65 = por %p63, %p64
      %s66 = ssub.s32 %s11, %s18
      %p67 = scmp.eq.s32.totalorder %s66, 0
      %s69 = sadd.s32 %s68, 1
      %s70 = scalar_select %p67, %s68, %s69
      %p73 = pneg %p67
      %p74 = scmp.eq.s32.totalorder %s11, 1
      %p75 = por %p73, %p74
      %p76 = scmp.ne.s32.totalorder %s68, %s71
      %p77 = scmp.eq.s32.totalorder %s11, 0
      %p78 = por %p76, %p77
      %p79 = scmp.ne.s32.totalorder %s68, %s71
      %p80 = scmp.eq.s32.totalorder %s16, 1
      %p81 = por %p79, %p80
      %p82 = scmp.ne.s32.totalorder %s71, %s72
      %p83 = scmp.eq.s32.totalorder %s16, 0
      %p84 = por %p82, %p83
      %p85 = scmp.ne.s32.totalorder %s71, %s72
      %p86 = scmp.eq.s32.totalorder %s17, 1
      %p87 = por %p85, %p86
      %p89 = scmp.ne.s32.totalorder %s72, %s88
      %p90 = scmp.eq.s32.totalorder %s17, 0
      %p91 = por %p89, %p90
      %p92 = scmp.le.s32.totalorder 1, %s11
      %p93 = scmp.lt.s32.totalorder %s11, 3
      %p94 = pnand %p92, %p93
      %p95 = pneg %p94
      // Predicated region
      $region9: #{tpu_custom_call.1} parent=5 // pred_check
        _
      $region10: #{tpu_custom_call.1} parent=5 // pred_check_branch
        %97 = sbr.rel (%p94) target = $region12
      $region11: #{tpu_custom_call.1} parent=5 // pred_region
        %s98 = ssub.s32 %s11, 1
        // Predicated region
        $region13: #{tpu_custom_call.1} parent=11 // pred_check
          %p99 = pneg %p58
        $region14: #{tpu_custom_call.1} parent=11 // pred_check_branch
          %101 = sbr.rel (%p99) target = $region16
        $region15: #{tpu_custom_call.1} parent=11 // pred_region
          _
        $region16: #{tpu_custom_call.1} parent=11 // pred_fallthru
          _
      $region12: #{tpu_custom_call.1} parent=5 // pred_fallthru
        _
      %p102 = scmp.lt.s32.totalorder %s11, 2
      // Predicated region
      $region17: #{tpu_custom_call.1} parent=5 // pred_check
        %p103 = pneg %p102
      $region18: #{tpu_custom_call.1} parent=5 // pred_check_branch
        %105 = sbr.rel (%p103) target = $region20
      $region19: #{tpu_custom_call.1} parent=5 // pred_region
        // Predicated region
        $region21: #{tpu_custom_call.1} parent=19 // pred_check
          %p106 = pneg %p31
        $region22: #{tpu_custom_call.1} parent=19 // pred_check_branch
          %108 = sbr.rel (%p106) target = $region24
        $region23: #{tpu_custom_call.1} parent=19 // pred_region
          %p109 = scmp.lt.s32.totalorder %s11, 1
          %s110 = scalar_select %p109, %s11, 1
          %s111 = smul.addr %s110, 9
          %s112 = smul.addr %s111, 8
          %s113 = scalar_lea.vmem %s0, %s112
        $region24: #{tpu_custom_call.1} parent=19 // pred_fallthru
          _
      $region20: #{tpu_custom_call.1} parent=5 // pred_fallthru
        _
      %p114 = scmp.le.s32.totalorder 1, %s11
      %p115 = scmp.lt.s32.totalorder %s11, 3
      %p116 = pnand %p114, %p115
      %p117 = pneg %p116
      // Predicated region
      $region25: #{tpu_custom_call.1} parent=5 // pred_check
        _
      $region26: #{tpu_custom_call.1} parent=5 // pred_check_branch
        %119 = sbr.rel (%p116) target = $region28
      $region27: #{tpu_custom_call.1} parent=5 // pred_region
        %s120 = ssub.s32 %s11, 1
        %p121 = scmp.lt.s32.totalorder %s16, 1
        %s122 = scalar_select %p121, %s16, 1
        %s123 = smul.addr %s122, 9
        %s124 = smul.addr %s123, 8
        %s125 = scalar_lea.vmem %s0, %s124
        %p126 = pneg %p37
        %p127 = pneg %p34
        %p128 = pneg %p58
        %p129 = pneg %p55
        %p130 = pneg %p84
        %p131 = pneg %p81
        %s132 = sand.u32 %s71, 1
        %s133 = scalar_lea.sflag [#allocation3], %s132
        %s134 = sand.u32 %s71, 1
        %s135 = smul.addr %s134, 48
        %s136 = scalar_lea.vmem [#allocation2], %s135
        %p137 = scmp.lt.s32.totalorder %s16, 1
        %s138 = scalar_select %p137, %s16, 1
        %s139 = smul.addr %s138, 9
        %s140 = smul.addr %s139, 8
        %s141 = scalar_lea.vmem %s0, %s140
        %v142 = vld [vmem:[%s141] sm:$0xff]
        %v143 = vld [vmem:[%s141 + $0x8] sm:$0xff]
        %v144 = vld [vmem:[%s141 + $0x10] sm:$0xff]
        %v145 = vld [vmem:[%s141 + $0x18] sm:$0xff]
        %v146 = vld [vmem:[%s141 + $0x20] sm:$0xff]
        %v147 = vld [vmem:[%s141 + $0x28] sm:$0xff]
        %v148 = vld [vmem:[%s141] sm:$0xfc]
        %v149 = vld [vmem:[%s141 + $0x8] sm:$0xfc]
        %v150 = vld [vmem:[%s141 + $0x10] sm:$0xfc]
        %v151 = vld [vmem:[%s141 + $0x30] sm:$0x3]
        %v152 = vld [vmem:[%s141 + $0x38] sm:$0x3]
        %v153 = vld [vmem:[%s141 + $0x40] sm:$0x3]
        %v154 = vld [vmem:[%s141] sm:$0xf0]
        %v155 = vld [vmem:[%s141 + $0x8] sm:$0xf0]
        %v156 = vld [vmem:[%s141 + $0x10] sm:$0xf0]
        %v157 = vld [vmem:[%s141 + $0x30] sm:$0xf]
        %v158 = vld [vmem:[%s141 + $0x38] sm:$0xf]
        %v159 = vld [vmem:[%s141 + $0x40] sm:$0xf]
        %v160 = vld [vmem:[%s141] sm:$0xc0]
        %v161 = vld [vmem:[%s141 + $0x8] sm:$0xc0]
        %v162 = vld [vmem:[%s141 + $0x10] sm:$0xc0]
        %v163 = vld [vmem:[%s141 + $0x30] sm:$0x3f]
        %v164 = vld [vmem:[%s141 + $0x38] sm:$0x3f]
        %v165 = vld [vmem:[%s141 + $0x40] sm:$0x3f]
        %v166 = vld [vmem:[%s141 + $0x30] sm:$0xff]
        %v167 = vld [vmem:[%s141 + $0x38] sm:$0xff]
        %v168 = vld [vmem:[%s141 + $0x40] sm:$0xff]
        %vm178 = vcmask 1045504
        %v179 = vrot.slane %v148, 2
        %v180 = vrot.slane %v145, 2
        %v181 = vsel %vm178, %v179, %v180
        %v182 = vrot.slane %v149, 2
        %v183 = vrot.slane %v146, 2
        %v184 = vsel %vm178, %v182, %v183
        %v185 = vrot.slane %v150, 2
        %v186 = vrot.slane %v147, 2
        %v187 = vsel %vm178, %v185, %v186
        %v188 = vrot.slane %v151, 2
        %v189 = vsel %vm178, %v180, %v188
        %v190 = vrot.slane %v152, 2
        %v191 = vsel %vm178, %v183, %v190
        %v192 = vrot.slane %v153, 2
        %v193 = vsel %vm178, %v186, %v192
        %194 = vrot.lane.b32.xlu0 %v181, 32
        %v195 = vpop.permute.xlu0 %194
        %196 = vrot.lane.b32.xlu0 %v184, 32
        %v197 = vpop.permute.xlu0 %196
        %198 = vrot.lane.b32.xlu0 %v187, 32
        %v199 = vpop.permute.xlu0 %198
        %200 = vrot.lane.b32.xlu0 %v189, 32
        %v201 = vpop.permute.xlu0 %200
        %202 = vrot.lane.b32.xlu0 %v191, 32
        %v203 = vpop.permute.xlu0 %202
        %204 = vrot.lane.b32.xlu0 %v193, 32
        %v205 = vpop.permute.xlu0 %204
        %vm206 = vcmask 261120
        %v207 = vsel %vm206, %v195, %v197
        %v208 = vsel %vm206, %v197, %v199
        %v209 = vsel %vm206, %v201, %v203
        %v210 = vsel %vm206, %v203, %v205
        %vm223 = vcmask 1043456
        %v224 = vrot.slane %v154, 4
        %v225 = vrot.slane %v145, 4
        %v226 = vsel %vm223, %v224, %v225
        %v227 = vrot.slane %v155, 4
        %v228 = vrot.slane %v146, 4
        %v229 = vsel %vm223, %v227, %v228
        %v230 = vrot.slane %v156, 4
        %v231 = vrot.slane %v147, 4
        %v232 = vsel %vm223, %v230, %v231
        %v233 = vrot.slane %v157, 4
        %v234 = vsel %vm223, %v225, %v233
        %v235 = vrot.slane %v158, 4
        %v236 = vsel %vm223, %v228, %v235
        %v237 = vrot.slane %v159, 4
        %v238 = vsel %vm223, %v231, %v237
        %239 = vrot.lane.b32.xlu0 %v226, 64
        %v240 = vpop.permute.xlu0 %239
        %241 = vrot.lane.b32.xlu0 %v229, 64
        %v242 = vpop.permute.xlu0 %241
        %243 = vrot.lane.b32.xlu0 %v232, 64
        %v244 = vpop.permute.xlu0 %243
        %245 = vrot.lane.b32.xlu0 %v234, 64
        %v246 = vpop.permute.xlu0 %245
        %247 = vrot.lane.b32.xlu0 %v236, 64
        %v248 = vpop.permute.xlu0 %247
        %249 = vrot.lane.b32.xlu0 %v238, 64
        %v250 = vpop.permute.xlu0 %249
        %vm251 = vcmask 523264
        %v252 = vsel %vm251, %v240, %v242
        %v253 = vsel %vm251, %v242, %v244
        %v254 = vsel %vm251, %v246, %v248
        %v255 = vsel %vm251, %v248, %v250
        %vm268 = vcmask 1041408
        %v269 = vrot.slane %v160, 6
        %v270 = vrot.slane %v145, 6
        %v271 = vsel %vm268, %v269, %v270
        %v272 = vrot.slane %v161, 6
        %v273 = vrot.slane %v146, 6
        %v274 = vsel %vm268, %v272, %v273
        %v275 = vrot.slane %v162, 6
        %v276 = vrot.slane %v147, 6
        %v277 = vsel %vm268, %v275, %v276
        %v278 = vrot.slane %v163, 6
        %v279 = vsel %vm268, %v270, %v278
        %v280 = vrot.slane %v164, 6
        %v281 = vsel %vm268, %v273, %v280
        %v282 = vrot.slane %v165, 6
        %v283 = vsel %vm268, %v276, %v282
        %284 = vrot.lane.b32.xlu0 %v271, 96
        %v285 = vpop.permute.xlu0 %284
        %286 = vrot.lane.b32.xlu0 %v274, 96
        %v287 = vpop.permute.xlu0 %286
        %288 = vrot.lane.b32.xlu0 %v277, 96
        %v289 = vpop.permute.xlu0 %288
        %290 = vrot.lane.b32.xlu0 %v279, 96
        %v291 = vpop.permute.xlu0 %290
        %292 = vrot.lane.b32.xlu0 %v281, 96
        %v293 = vpop.permute.xlu0 %292
        %294 = vrot.lane.b32.xlu0 %v283, 96
        %v295 = vpop.permute.xlu0 %294
        %vm296 = vcmask 785408
        %v297 = vsel %vm296, %v285, %v287
        %v298 = vsel %vm296, %v287, %v289
        %v299 = vsel %vm296, %v291, %v293
        %v300 = vsel %vm296, %v293, %v295
        %v307 = vsel %vm206, %v144, %v195
        %v308 = vsel %vm206, %v147, %v201
        %v309 = vsel %vm251, %v208, %v240
        %v310 = vsel %vm251, %v210, %v246
        %v311 = vsel %vm296, %v253, %v285
        %v312 = vsel %vm296, %v255, %v291
        %v313 = vld [vmem:[%s1] sm:$0xff]
        %v314 = vld [vmem:[%s1 + $0x8] sm:$0xff]
        %v315 = vld [vmem:[%s1 + $0x10] sm:$0xff]
        %v316 = vld [vmem:[%s1 + $0x18] sm:$0xff]
        %v317 = vld [vmem:[%s1 + $0x20] sm:$0xff]
        %v318 = vld [vmem:[%s1 + $0x28] sm:$0xff]
        %v319 = vld [vmem:[%s1 + $0x30] sm:$0xff]
        %v320 = vld [vmem:[%s1 + $0x38] sm:$0xff]
        %v321 = vld [vmem:[%s1 + $0x40] sm:$0xff]
        %v322 = vld [vmem:[%s1 + $0x48] sm:$0xff]
        %v323 = vld [vmem:[%s1 + $0x50] sm:$0xff]
        %v324 = vld [vmem:[%s1 + $0x58] sm:$0xff]
        %v325 = vld [vmem:[%s1 + $0x60] sm:$0xff]
        %v326 = vld [vmem:[%s1 + $0x68] sm:$0xff]
        %v327 = vld [vmem:[%s1 + $0x70] sm:$0xff]
        %v328 = vld [vmem:[%s1 + $0x78] sm:$0xff]
        %v329 = vld [vmem:[%s1 + $0x80] sm:$0xff]
        %v330 = vld [vmem:[%s1 + $0x88] sm:$0xff]
        %v331 = vld [vmem:[%s1 + $0x90] sm:$0xff]
        %v332 = vld [vmem:[%s1 + $0x98] sm:$0xff]
        %v333 = vld [vmem:[%s1 + $0xa0] sm:$0xff]
        %v334 = vld [vmem:[%s1 + $0xa8] sm:$0xff]
        %v335 = vld [vmem:[%s1 + $0xb0] sm:$0xff]
        %v336 = vld [vmem:[%s1 + $0xb8] sm:$0xff]
        %v337 = vld [vmem:[%s1 + $0xc0] sm:$0xff]
        %v338 = vld [vmem:[%s1 + $0xc8] sm:$0xff]
        %v339 = vld [vmem:[%s1 + $0xd0] sm:$0xff]
        %v340 = vld [vmem:[%s1 + $0xd8] sm:$0xff]
        %v341 = vld [vmem:[%s1 + $0xe0] sm:$0xff]
        %v342 = vld [vmem:[%s1 + $0xe8] sm:$0xff]
        %v343 = vld [vmem:[%s1 + $0xf0] sm:$0xff]
        %v344 = vld [vmem:[%s1 + $0xf8] sm:$0xff]
        %v345 = vld [vmem:[%s1 + $0x100] sm:$0xff]
        %v346 = vld [vmem:[%s1 + $0x108] sm:$0xff]
        %v347 = vld [vmem:[%s1 + $0x110] sm:$0xff]
        %v348 = vld [vmem:[%s1 + $0x118] sm:$0xff]
        %v349 = vld [vmem:[%s1 + $0x120] sm:$0xff]
        %v350 = vld [vmem:[%s1 + $0x128] sm:$0xff]
        %v351 = vld [vmem:[%s1 + $0x130] sm:$0xff]
        %v352 = vld [vmem:[%s1 + $0x138] sm:$0xff]
        %v353 = vld [vmem:[%s1 + $0x140] sm:$0xff]
        %v354 = vld [vmem:[%s1 + $0x148] sm:$0xff]
        %v355 = vld [vmem:[%s1 + $0x150] sm:$0xff]
        %v356 = vld [vmem:[%s1 + $0x158] sm:$0xff]
        %v357 = vld [vmem:[%s1 + $0x160] sm:$0xff]
        %v358 = vld [vmem:[%s1 + $0x168] sm:$0xff]
        %v359 = vld [vmem:[%s1 + $0x170] sm:$0xff]
        %v360 = vld [vmem:[%s1 + $0x178] sm:$0xff]
        %v361 = vld [vmem:[%s1 + $0x180] sm:$0xff]
        %v362 = vld [vmem:[%s1 + $0x188] sm:$0xff]
        %v363 = vld [vmem:[%s1 + $0x190] sm:$0xff]
        %v364 = vld [vmem:[%s1 + $0x198] sm:$0xff]
        %v365 = vld [vmem:[%s1 + $0x1a0] sm:$0xff]
        %v366 = vld [vmem:[%s1 + $0x1a8] sm:$0xff]
        %v367 = vld [vmem:[%s1 + $0x1b0] sm:$0xff]
        %v368 = vld [vmem:[%s1 + $0x1b8] sm:$0xff]
        %v369 = vld [vmem:[%s1 + $0x1c0] sm:$0xff]
        %v370 = vld [vmem:[%s1 + $0x1c8] sm:$0xff]
        %v371 = vld [vmem:[%s1 + $0x1d0] sm:$0xff]
        %v372 = vld [vmem:[%s1 + $0x1d8] sm:$0xff]
        %v373 = vld [vmem:[%s1 + $0x1e0] sm:$0xff]
        %v374 = vld [vmem:[%s1 + $0x1e8] sm:$0xff]
        %v375 = vld [vmem:[%s1 + $0x1f0] sm:$0xff]
        %v376 = vld [vmem:[%s1 + $0x1f8] sm:$0xff]
        %v377 = vld [vmem:[%s1 + $0x200] sm:$0xff]
        %v378 = vld [vmem:[%s1 + $0x208] sm:$0xff]
        %v379 = vld [vmem:[%s1 + $0x210] sm:$0xff]
        %v380 = vld [vmem:[%s1 + $0x218] sm:$0xff]
        %v381 = vld [vmem:[%s1 + $0x220] sm:$0xff]
        %v382 = vld [vmem:[%s1 + $0x228] sm:$0xff]
        %v383 = vld [vmem:[%s1 + $0x230] sm:$0xff]
        %v384 = vld [vmem:[%s1 + $0x238] sm:$0xff]
        %v385 = vld [vmem:[%s1 + $0x240] sm:$0xff]
        %v386 = vld [vmem:[%s1 + $0x248] sm:$0xff]
        %v387 = vld [vmem:[%s1 + $0x250] sm:$0xff]
        %v388 = vld [vmem:[%s1 + $0x258] sm:$0xff]
        %v389 = vld [vmem:[%s1 + $0x260] sm:$0xff]
        %v390 = vld [vmem:[%s1 + $0x268] sm:$0xff]
        %v391 = vld [vmem:[%s1 + $0x270] sm:$0xff]
        %v392 = vld [vmem:[%s1 + $0x278] sm:$0xff]
        %v393 = vld [vmem:[%s1 + $0x280] sm:$0xff]
        %v394 = vld [vmem:[%s1 + $0x288] sm:$0xff]
        %v395 = vld [vmem:[%s1 + $0x290] sm:$0xff]
        %v396 = vld [vmem:[%s1 + $0x298] sm:$0xff]
        %v397 = vld [vmem:[%s1 + $0x2a0] sm:$0xff]
        %v398 = vld [vmem:[%s1 + $0x2a8] sm:$0xff]
        %v399 = vld [vmem:[%s1 + $0x2b0] sm:$0xff]
        %v400 = vld [vmem:[%s1 + $0x2b8] sm:$0xff]
        %v401 = vld [vmem:[%s1 + $0x2c0] sm:$0xff]
        %v402 = vld [vmem:[%s1 + $0x2c8] sm:$0xff]
        %v403 = vld [vmem:[%s1 + $0x2d0] sm:$0xff]
        %v404 = vld [vmem:[%s1 + $0x2d8] sm:$0xff]
        %v405 = vld [vmem:[%s1 + $0x2e0] sm:$0xff]
        %v406 = vld [vmem:[%s1 + $0x2e8] sm:$0xff]
        %v407 = vld [vmem:[%s1 + $0x2f0] sm:$0xff]
        %v408 = vld [vmem:[%s1 + $0x2f8] sm:$0xff]
        %v409 = vld [vmem:[%s1 + $0x300] sm:$0xff]
        %v410 = vld [vmem:[%s1 + $0x308] sm:$0xff]
        %v411 = vld [vmem:[%s1 + $0x310] sm:$0xff]
        %v412 = vld [vmem:[%s1 + $0x318] sm:$0xff]
        %v413 = vld [vmem:[%s1 + $0x320] sm:$0xff]
        %v414 = vld [vmem:[%s1 + $0x328] sm:$0xff]
        %v415 = vld [vmem:[%s1 + $0x330] sm:$0xff]
        %v416 = vld [vmem:[%s1 + $0x338] sm:$0xff]
        %v417 = vld [vmem:[%s1 + $0x340] sm:$0xff]
        %v418 = vld [vmem:[%s1 + $0x348] sm:$0xff]
        %v419 = vld [vmem:[%s1 + $0x350] sm:$0xff]
        %v420 = vld [vmem:[%s1 + $0x358] sm:$0xff]
        %v421 = vld [vmem:[%s1 + $0x360] sm:$0xff]
        %v422 = vld [vmem:[%s1 + $0x368] sm:$0xff]
        %v423 = vld [vmem:[%s1 + $0x370] sm:$0xff]
        %v424 = vld [vmem:[%s1 + $0x378] sm:$0xff]
        %v425 = vld [vmem:[%s1 + $0x380] sm:$0xff]
        %v426 = vld [vmem:[%s1 + $0x388] sm:$0xff]
        %v427 = vld [vmem:[%s1 + $0x390] sm:$0xff]
        %v428 = vld [vmem:[%s1 + $0x398] sm:$0xff]
        %v429 = vld [vmem:[%s1 + $0x3a0] sm:$0xff]
        %v430 = vld [vmem:[%s1 + $0x3a8] sm:$0xff]
        %v431 = vld [vmem:[%s1 + $0x3b0] sm:$0xff]
        %v432 = vld [vmem:[%s1 + $0x3b8] sm:$0xff]
        %v433 = vld [vmem:[%s1 + $0x3c0] sm:$0xff]
        %v434 = vld [vmem:[%s1 + $0x3c8] sm:$0xff]
        %v435 = vld [vmem:[%s1 + $0x3d0] sm:$0xff]
        %v436 = vld [vmem:[%s1 + $0x3d8] sm:$0xff]
        %v437 = vld [vmem:[%s1 + $0x3e0] sm:$0xff]
        %v438 = vld [vmem:[%s1 + $0x3e8] sm:$0xff]
        %v439 = vld [vmem:[%s1 + $0x3f0] sm:$0xff]
        %v440 = vld [vmem:[%s1 + $0x3f8] sm:$0xff]
        %v441 = vld [vmem:[%s1 + $0x400] sm:$0xff]
        %v442 = vld [vmem:[%s1 + $0x408] sm:$0xff]
        %v443 = vld [vmem:[%s1 + $0x410] sm:$0xff]
        %v444 = vld [vmem:[%s1 + $0x418] sm:$0xff]
        %v445 = vld [vmem:[%s1 + $0x420] sm:$0xff]
        %v446 = vld [vmem:[%s1 + $0x428] sm:$0xff]
        %v447 = vld [vmem:[%s1 + $0x430] sm:$0xff]
        %v448 = vld [vmem:[%s1 + $0x438] sm:$0xff]
        %v449 = vld [vmem:[%s1 + $0x440] sm:$0xff]
        %v450 = vld [vmem:[%s1 + $0x448] sm:$0xff]
        %v451 = vld [vmem:[%s1 + $0x450] sm:$0xff]
        %v452 = vld [vmem:[%s1 + $0x458] sm:$0xff]
        %v453 = vld [vmem:[%s1 + $0x460] sm:$0xff]
        %v454 = vld [vmem:[%s1 + $0x468] sm:$0xff]
        %v455 = vld [vmem:[%s1 + $0x470] sm:$0xff]
        %v456 = vld [vmem:[%s1 + $0x478] sm:$0xff]
        %v457 = vld [vmem:[%s1 + $0x480] sm:$0xff]
        %v458 = vld [vmem:[%s1 + $0x488] sm:$0xff]
        %v459 = vld [vmem:[%s1 + $0x490] sm:$0xff]
        %v460 = vld [vmem:[%s1 + $0x498] sm:$0xff]
        %v461 = vld [vmem:[%s1 + $0x4a0] sm:$0xff]
        %v462 = vld [vmem:[%s1 + $0x4a8] sm:$0xff]
        %v463 = vld [vmem:[%s1 + $0x4b0] sm:$0xff]
        %v464 = vld [vmem:[%s1 + $0x4b8] sm:$0xff]
        %v465 = vld [vmem:[%s1 + $0x4c0] sm:$0xff]
        %v466 = vld [vmem:[%s1 + $0x4c8] sm:$0xff]
        %v467 = vld [vmem:[%s1 + $0x4d0] sm:$0xff]
        %v468 = vld [vmem:[%s1 + $0x4d8] sm:$0xff]
        %v469 = vld [vmem:[%s1 + $0x4e0] sm:$0xff]
        %v470 = vld [vmem:[%s1 + $0x4e8] sm:$0xff]
        %v471 = vld [vmem:[%s1 + $0x4f0] sm:$0xff]
        %v472 = vld [vmem:[%s1 + $0x4f8] sm:$0xff]
        %v473 = vld [vmem:[%s1 + $0x500] sm:$0xff]
        %v474 = vld [vmem:[%s1 + $0x508] sm:$0xff]
        %v475 = vld [vmem:[%s1 + $0x510] sm:$0xff]
        %v476 = vld [vmem:[%s1 + $0x518] sm:$0xff]
        %v477 = vld [vmem:[%s1 + $0x520] sm:$0xff]
        %v478 = vld [vmem:[%s1 + $0x528] sm:$0xff]
        %v479 = vld [vmem:[%s1 + $0x530] sm:$0xff]
        %v480 = vld [vmem:[%s1 + $0x538] sm:$0xff]
        %v481 = vld [vmem:[%s1 + $0x540] sm:$0xff]
        %v482 = vld [vmem:[%s1 + $0x548] sm:$0xff]
        %v483 = vld [vmem:[%s1 + $0x550] sm:$0xff]
        %v484 = vld [vmem:[%s1 + $0x558] sm:$0xff]
        %v485 = vld [vmem:[%s1 + $0x560] sm:$0xff]
        %v486 = vld [vmem:[%s1 + $0x568] sm:$0xff]
        %v487 = vld [vmem:[%s1 + $0x570] sm:$0xff]
        %v488 = vld [vmem:[%s1 + $0x578] sm:$0xff]
        %v489 = vld [vmem:[%s1 + $0x580] sm:$0xff]
        %v490 = vld [vmem:[%s1 + $0x588] sm:$0xff]
        %v491 = vld [vmem:[%s1 + $0x590] sm:$0xff]
        %v492 = vld [vmem:[%s1 + $0x598] sm:$0xff]
        %v493 = vld [vmem:[%s1 + $0x5a0] sm:$0xff]
        %v494 = vld [vmem:[%s1 + $0x5a8] sm:$0xff]
        %v495 = vld [vmem:[%s1 + $0x5b0] sm:$0xff]
        %v496 = vld [vmem:[%s1 + $0x5b8] sm:$0xff]
        %v497 = vld [vmem:[%s1 + $0x5c0] sm:$0xff]
        %v498 = vld [vmem:[%s1 + $0x5c8] sm:$0xff]
        %v499 = vld [vmem:[%s1 + $0x5d0] sm:$0xff]
        %v500 = vld [vmem:[%s1 + $0x5d8] sm:$0xff]
        %v501 = vld [vmem:[%s1 + $0x5e0] sm:$0xff]
        %v502 = vld [vmem:[%s1 + $0x5e8] sm:$0xff]
        %v503 = vld [vmem:[%s1 + $0x5f0] sm:$0xff]
        %v504 = vld [vmem:[%s1 + $0x5f8] sm:$0xff]
        %v505 = vld [vmem:[%s1 + $0x600] sm:$0xff]
        %v506 = vld [vmem:[%s1 + $0x608] sm:$0xff]
        %v507 = vld [vmem:[%s1 + $0x610] sm:$0xff]
        %v508 = vld [vmem:[%s1 + $0x618] sm:$0xff]
        %v509 = vld [vmem:[%s1 + $0x620] sm:$0xff]
        %v510 = vld [vmem:[%s1 + $0x628] sm:$0xff]
        %v511 = vld [vmem:[%s1 + $0x630] sm:$0xff]
        %v512 = vld [vmem:[%s1 + $0x638] sm:$0xff]
        %v513 = vld [vmem:[%s1 + $0x640] sm:$0xff]
        %v514 = vld [vmem:[%s1 + $0x648] sm:$0xff]
        %v515 = vld [vmem:[%s1 + $0x650] sm:$0xff]
        %v516 = vld [vmem:[%s1 + $0x658] sm:$0xff]
        %v517 = vld [vmem:[%s1 + $0x660] sm:$0xff]
        %v518 = vld [vmem:[%s1 + $0x668] sm:$0xff]
        %v519 = vld [vmem:[%s1 + $0x670] sm:$0xff]
        %v520 = vld [vmem:[%s1 + $0x678] sm:$0xff]
        %v521 = vld [vmem:[%s1 + $0x680] sm:$0xff]
        %v522 = vld [vmem:[%s1 + $0x688] sm:$0xff]
        %v523 = vld [vmem:[%s1 + $0x690] sm:$0xff]
        %v524 = vld [vmem:[%s1 + $0x698] sm:$0xff]
        %v525 = vld [vmem:[%s1 + $0x6a0] sm:$0xff]
        %v526 = vld [vmem:[%s1 + $0x6a8] sm:$0xff]
        %v527 = vld [vmem:[%s1 + $0x6b0] sm:$0xff]
        %v528 = vld [vmem:[%s1 + $0x6b8] sm:$0xff]
        %v529 = vld [vmem:[%s1 + $0x6c0] sm:$0xff]
        %v530 = vld [vmem:[%s1 + $0x6c8] sm:$0xff]
        %v531 = vld [vmem:[%s1 + $0x6d0] sm:$0xff]
        %v532 = vld [vmem:[%s1 + $0x6d8] sm:$0xff]
        %v533 = vld [vmem:[%s1 + $0x6e0] sm:$0xff]
        %v534 = vld [vmem:[%s1 + $0x6e8] sm:$0xff]
        %v535 = vld [vmem:[%s1 + $0x6f0] sm:$0xff]
        %v536 = vld [vmem:[%s1 + $0x6f8] sm:$0xff]
        %v537 = vld [vmem:[%s1 + $0x700] sm:$0xff]
        %v538 = vld [vmem:[%s1 + $0x708] sm:$0xff]
        %v539 = vld [vmem:[%s1 + $0x710] sm:$0xff]
        %v540 = vld [vmem:[%s1 + $0x718] sm:$0xff]
        %v541 = vld [vmem:[%s1 + $0x720] sm:$0xff]
        %v542 = vld [vmem:[%s1 + $0x728] sm:$0xff]
        %v543 = vld [vmem:[%s1 + $0x730] sm:$0xff]
        %v544 = vld [vmem:[%s1 + $0x738] sm:$0xff]
        %v545 = vld [vmem:[%s1 + $0x740] sm:$0xff]
        %v546 = vld [vmem:[%s1 + $0x748] sm:$0xff]
        %v547 = vld [vmem:[%s1 + $0x750] sm:$0xff]
        %v548 = vld [vmem:[%s1 + $0x758] sm:$0xff]
        %v549 = vld [vmem:[%s1 + $0x760] sm:$0xff]
        %v550 = vld [vmem:[%s1 + $0x768] sm:$0xff]
        %v551 = vld [vmem:[%s1 + $0x770] sm:$0xff]
        %v552 = vld [vmem:[%s1 + $0x778] sm:$0xff]
        %v553 = vld [vmem:[%s1 + $0x780] sm:$0xff]
        %v554 = vld [vmem:[%s1 + $0x788] sm:$0xff]
        %v555 = vld [vmem:[%s1 + $0x790] sm:$0xff]
        %v556 = vld [vmem:[%s1 + $0x798] sm:$0xff]
        %v557 = vld [vmem:[%s1 + $0x7a0] sm:$0xff]
        %v558 = vld [vmem:[%s1 + $0x7a8] sm:$0xff]
        %v559 = vld [vmem:[%s1 + $0x7b0] sm:$0xff]
        %v560 = vld [vmem:[%s1 + $0x7b8] sm:$0xff]
        %v561 = vld [vmem:[%s1 + $0x7c0] sm:$0xff]
        %v562 = vld [vmem:[%s1 + $0x7c8] sm:$0xff]
        %v563 = vld [vmem:[%s1 + $0x7d0] sm:$0xff]
        %v564 = vld [vmem:[%s1 + $0x7d8] sm:$0xff]
        %v565 = vld [vmem:[%s1 + $0x7e0] sm:$0xff]
        %v566 = vld [vmem:[%s1 + $0x7e8] sm:$0xff]
        %v567 = vld [vmem:[%s1 + $0x7f0] sm:$0xff]
        %v568 = vld [vmem:[%s1 + $0x7f8] sm:$0xff]
        %v569 = vld [vmem:[%s1 + $0x800] sm:$0xff]
        %v570 = vld [vmem:[%s1 + $0x808] sm:$0xff]
        %v571 = vld [vmem:[%s1 + $0x810] sm:$0xff]
        %v572 = vld [vmem:[%s1 + $0x818] sm:$0xff]
        %v573 = vld [vmem:[%s1 + $0x820] sm:$0xff]
        %v574 = vld [vmem:[%s1 + $0x828] sm:$0xff]
        %v575 = vld [vmem:[%s1 + $0x830] sm:$0xff]
        %v576 = vld [vmem:[%s1 + $0x838] sm:$0xff]
        %v577 = vld [vmem:[%s1 + $0x840] sm:$0xff]
        %v578 = vld [vmem:[%s1 + $0x848] sm:$0xff]
        %v579 = vld [vmem:[%s1 + $0x850] sm:$0xff]
        %v580 = vld [vmem:[%s1 + $0x858] sm:$0xff]
        %v581 = vld [vmem:[%s1 + $0x860] sm:$0xff]
        %v582 = vld [vmem:[%s1 + $0x868] sm:$0xff]
        %v583 = vld [vmem:[%s1 + $0x870] sm:$0xff]
        %v584 = vld [vmem:[%s1 + $0x878] sm:$0xff]
        %v585 = vld [vmem:[%s1 + $0x880] sm:$0xff]
        %v586 = vld [vmem:[%s1 + $0x888] sm:$0xff]
        %v587 = vld [vmem:[%s1 + $0x890] sm:$0xff]
        %v588 = vld [vmem:[%s1 + $0x898] sm:$0xff]
        %v589 = vld [vmem:[%s1 + $0x8a0] sm:$0xff]
        %v590 = vld [vmem:[%s1 + $0x8a8] sm:$0xff]
        %v591 = vld [vmem:[%s1 + $0x8b0] sm:$0xff]
        %v592 = vld [vmem:[%s1 + $0x8b8] sm:$0xff]
        %v593 = vld [vmem:[%s1 + $0x8c0] sm:$0xff]
        %v594 = vld [vmem:[%s1 + $0x8c8] sm:$0xff]
        %v595 = vld [vmem:[%s1 + $0x8d0] sm:$0xff]
        %v596 = vld [vmem:[%s1 + $0x8d8] sm:$0xff]
        %v597 = vld [vmem:[%s1 + $0x8e0] sm:$0xff]
        %v598 = vld [vmem:[%s1 + $0x8e8] sm:$0xff]
        %v599 = vld [vmem:[%s1 + $0x8f0] sm:$0xff]
        %v600 = vld [vmem:[%s1 + $0x8f8] sm:$0xff]
        %v601 = vld [vmem:[%s1 + $0x900] sm:$0xff]
        %v602 = vld [vmem:[%s1 + $0x908] sm:$0xff]
        %v603 = vld [vmem:[%s1 + $0x910] sm:$0xff]
        %v604 = vld [vmem:[%s1 + $0x918] sm:$0xff]
        %v605 = vld [vmem:[%s1 + $0x920] sm:$0xff]
        %v606 = vld [vmem:[%s1 + $0x928] sm:$0xff]
        %v607 = vld [vmem:[%s1 + $0x930] sm:$0xff]
        %v608 = vld [vmem:[%s1 + $0x938] sm:$0xff]
        %v609 = vld [vmem:[%s1 + $0x940] sm:$0xff]
        %v610 = vld [vmem:[%s1 + $0x948] sm:$0xff]
        %v611 = vld [vmem:[%s1 + $0x950] sm:$0xff]
        %v612 = vld [vmem:[%s1 + $0x958] sm:$0xff]
        %v613 = vld [vmem:[%s1 + $0x960] sm:$0xff]
        %v614 = vld [vmem:[%s1 + $0x968] sm:$0xff]
        %v615 = vld [vmem:[%s1 + $0x970] sm:$0xff]
        %v616 = vld [vmem:[%s1 + $0x978] sm:$0xff]
        %v617 = vld [vmem:[%s1 + $0x980] sm:$0xff]
        %v618 = vld [vmem:[%s1 + $0x988] sm:$0xff]
        %v619 = vld [vmem:[%s1 + $0x990] sm:$0xff]
        %v620 = vld [vmem:[%s1 + $0x998] sm:$0xff]
        %v621 = vld [vmem:[%s1 + $0x9a0] sm:$0xff]
        %v622 = vld [vmem:[%s1 + $0x9a8] sm:$0xff]
        %v623 = vld [vmem:[%s1 + $0x9b0] sm:$0xff]
        %v624 = vld [vmem:[%s1 + $0x9b8] sm:$0xff]
        %v625 = vld [vmem:[%s1 + $0x9c0] sm:$0xff]
        %v626 = vld [vmem:[%s1 + $0x9c8] sm:$0xff]
        %v627 = vld [vmem:[%s1 + $0x9d0] sm:$0xff]
        %v628 = vld [vmem:[%s1 + $0x9d8] sm:$0xff]
        %v629 = vld [vmem:[%s1 + $0x9e0] sm:$0xff]
        %v630 = vld [vmem:[%s1 + $0x9e8] sm:$0xff]
        %v631 = vld [vmem:[%s1 + $0x9f0] sm:$0xff]
        %v632 = vld [vmem:[%s1 + $0x9f8] sm:$0xff]
        %v633 = vld [vmem:[%s1 + $0xa00] sm:$0xff]
        %v634 = vld [vmem:[%s1 + $0xa08] sm:$0xff]
        %v635 = vld [vmem:[%s1 + $0xa10] sm:$0xff]
        %v636 = vld [vmem:[%s1 + $0xa18] sm:$0xff]
        %v637 = vld [vmem:[%s1 + $0xa20] sm:$0xff]
        %v638 = vld [vmem:[%s1 + $0xa28] sm:$0xff]
        %v639 = vld [vmem:[%s1 + $0xa30] sm:$0xff]
        %v640 = vld [vmem:[%s1 + $0xa38] sm:$0xff]
        %v641 = vld [vmem:[%s1 + $0xa40] sm:$0xff]
        %v642 = vld [vmem:[%s1 + $0xa48] sm:$0xff]
        %v643 = vld [vmem:[%s1 + $0xa50] sm:$0xff]
        %v644 = vld [vmem:[%s1 + $0xa58] sm:$0xff]
        %v645 = vld [vmem:[%s1 + $0xa60] sm:$0xff]
        %v646 = vld [vmem:[%s1 + $0xa68] sm:$0xff]
        %v647 = vld [vmem:[%s1 + $0xa70] sm:$0xff]
        %v648 = vld [vmem:[%s1 + $0xa78] sm:$0xff]
        %v649 = vld [vmem:[%s1 + $0xa80] sm:$0xff]
        %v650 = vld [vmem:[%s1 + $0xa88] sm:$0xff]
        %v651 = vld [vmem:[%s1 + $0xa90] sm:$0xff]
        %v652 = vld [vmem:[%s1 + $0xa98] sm:$0xff]
        %v653 = vld [vmem:[%s1 + $0xaa0] sm:$0xff]
        %v654 = vld [vmem:[%s1 + $0xaa8] sm:$0xff]
        %v655 = vld [vmem:[%s1 + $0xab0] sm:$0xff]
        %v656 = vld [vmem:[%s1 + $0xab8] sm:$0xff]
        %v657 = vld [vmem:[%s1 + $0xac0] sm:$0xff]
        %v658 = vld [vmem:[%s1 + $0xac8] sm:$0xff]
        %v659 = vld [vmem:[%s1 + $0xad0] sm:$0xff]
        %v660 = vld [vmem:[%s1 + $0xad8] sm:$0xff]
        %v661 = vld [vmem:[%s1 + $0xae0] sm:$0xff]
        %v662 = vld [vmem:[%s1 + $0xae8] sm:$0xff]
        %v663 = vld [vmem:[%s1 + $0xaf0] sm:$0xff]
        %v664 = vld [vmem:[%s1 + $0xaf8] sm:$0xff]
        %v665 = vld [vmem:[%s1 + $0xb00] sm:$0xff]
        %v666 = vld [vmem:[%s1 + $0xb08] sm:$0xff]
        %v667 = vld [vmem:[%s1 + $0xb10] sm:$0xff]
        %v668 = vld [vmem:[%s1 + $0xb18] sm:$0xff]
        %v669 = vld [vmem:[%s1 + $0xb20] sm:$0xff]
        %v670 = vld [vmem:[%s1 + $0xb28] sm:$0xff]
        %v671 = vld [vmem:[%s1 + $0xb30] sm:$0xff]
        %v672 = vld [vmem:[%s1 + $0xb38] sm:$0xff]
        %v673 = vld [vmem:[%s1 + $0xb40] sm:$0xff]
        %v674 = vld [vmem:[%s1 + $0xb48] sm:$0xff]
        %v675 = vld [vmem:[%s1 + $0xb50] sm:$0xff]
        %v676 = vld [vmem:[%s1 + $0xb58] sm:$0xff]
        %v677 = vld [vmem:[%s1 + $0xb60] sm:$0xff]
        %v678 = vld [vmem:[%s1 + $0xb68] sm:$0xff]
        %v679 = vld [vmem:[%s1 + $0xb70] sm:$0xff]
        %v680 = vld [vmem:[%s1 + $0xb78] sm:$0xff]
        %v681 = vld [vmem:[%s1 + $0xb80] sm:$0xff]
        %v682 = vld [vmem:[%s1 + $0xb88] sm:$0xff]
        %v683 = vld [vmem:[%s1 + $0xb90] sm:$0xff]
        %v684 = vld [vmem:[%s1 + $0xb98] sm:$0xff]
        %v685 = vld [vmem:[%s1 + $0xba0] sm:$0xff]
        %v686 = vld [vmem:[%s1 + $0xba8] sm:$0xff]
        %v687 = vld [vmem:[%s1 + $0xbb0] sm:$0xff]
        %v688 = vld [vmem:[%s1 + $0xbb8] sm:$0xff]
        %v689 = vld [vmem:[%s1 + $0xbc0] sm:$0xff]
        %v690 = vld [vmem:[%s1 + $0xbc8] sm:$0xff]
        %v691 = vld [vmem:[%s1 + $0xbd0] sm:$0xff]
        %v692 = vld [vmem:[%s1 + $0xbd8] sm:$0xff]
        %v693 = vld [vmem:[%s1 + $0xbe0] sm:$0xff]
        %v694 = vld [vmem:[%s1 + $0xbe8] sm:$0xff]
        %v695 = vld [vmem:[%s1 + $0xbf0] sm:$0xff]
        %v696 = vld [vmem:[%s1 + $0xbf8] sm:$0xff]
        %v697 = vld [vmem:[%s1 + $0xc00] sm:$0xff]
        %v698 = vld [vmem:[%s1 + $0xc08] sm:$0xff]
        %v699 = vld [vmem:[%s1 + $0xc10] sm:$0xff]
        %v700 = vld [vmem:[%s1 + $0xc18] sm:$0xff]
        %v701 = vld [vmem:[%s1 + $0xc20] sm:$0xff]
        %v702 = vld [vmem:[%s1 + $0xc28] sm:$0xff]
        %v703 = vld [vmem:[%s1 + $0xc30] sm:$0xff]
        %v704 = vld [vmem:[%s1 + $0xc38] sm:$0xff]
        %v705 = vld [vmem:[%s1 + $0xc40] sm:$0xff]
        %v706 = vld [vmem:[%s1 + $0xc48] sm:$0xff]
        %v707 = vld [vmem:[%s1 + $0xc50] sm:$0xff]
        %v708 = vld [vmem:[%s1 + $0xc58] sm:$0xff]
        %v709 = vld [vmem:[%s1 + $0xc60] sm:$0xff]
        %v710 = vld [vmem:[%s1 + $0xc68] sm:$0xff]
        %v711 = vld [vmem:[%s1 + $0xc70] sm:$0xff]
        %v712 = vld [vmem:[%s1 + $0xc78] sm:$0xff]
        %v713 = vld [vmem:[%s1 + $0xc80] sm:$0xff]
        %v714 = vld [vmem:[%s1 + $0xc88] sm:$0xff]
        %v715 = vld [vmem:[%s1 + $0xc90] sm:$0xff]
        %v716 = vld [vmem:[%s1 + $0xc98] sm:$0xff]
        %v717 = vld [vmem:[%s1 + $0xca0] sm:$0xff]
        %v718 = vld [vmem:[%s1 + $0xca8] sm:$0xff]
        %v719 = vld [vmem:[%s1 + $0xcb0] sm:$0xff]
        %v720 = vld [vmem:[%s1 + $0xcb8] sm:$0xff]
        %v721 = vld [vmem:[%s1 + $0xcc0] sm:$0xff]
        %v722 = vld [vmem:[%s1 + $0xcc8] sm:$0xff]
        %v723 = vld [vmem:[%s1 + $0xcd0] sm:$0xff]
        %v724 = vld [vmem:[%s1 + $0xcd8] sm:$0xff]
        %v725 = vld [vmem:[%s1 + $0xce0] sm:$0xff]
        %v726 = vld [vmem:[%s1 + $0xce8] sm:$0xff]
        %v727 = vld [vmem:[%s1 + $0xcf0] sm:$0xff]
        %v728 = vld [vmem:[%s1 + $0xcf8] sm:$0xff]
        %v729 = vld [vmem:[%s1 + $0xd00] sm:$0xff]
        %v730 = vld [vmem:[%s1 + $0xd08] sm:$0xff]
        %v731 = vld [vmem:[%s1 + $0xd10] sm:$0xff]
        %v732 = vld [vmem:[%s1 + $0xd18] sm:$0xff]
        %v733 = vld [vmem:[%s1 + $0xd20] sm:$0xff]
        %v734 = vld [vmem:[%s1 + $0xd28] sm:$0xff]
        %v735 = vld [vmem:[%s1 + $0xd30] sm:$0xff]
        %v736 = vld [vmem:[%s1 + $0xd38] sm:$0xff]
        %v737 = vld [vmem:[%s1 + $0xd40] sm:$0xff]
        %v738 = vld [vmem:[%s1 + $0xd48] sm:$0xff]
        %v739 = vld [vmem:[%s1 + $0xd50] sm:$0xff]
        %v740 = vld [vmem:[%s1 + $0xd58] sm:$0xff]
        %v741 = vld [vmem:[%s1 + $0xd60] sm:$0xff]
        %v742 = vld [vmem:[%s1 + $0xd68] sm:$0xff]
        %v743 = vld [vmem:[%s1 + $0xd70] sm:$0xff]
        %v744 = vld [vmem:[%s1 + $0xd78] sm:$0xff]
        %v745 = vld [vmem:[%s1 + $0xd80] sm:$0xff]
        %v746 = vld [vmem:[%s1 + $0xd88] sm:$0xff]
        %v747 = vld [vmem:[%s1 + $0xd90] sm:$0xff]
        %v748 = vld [vmem:[%s1 + $0xd98] sm:$0xff]
        %v749 = vld [vmem:[%s1 + $0xda0] sm:$0xff]
        %v750 = vld [vmem:[%s1 + $0xda8] sm:$0xff]
        %v751 = vld [vmem:[%s1 + $0xdb0] sm:$0xff]
        %v752 = vld [vmem:[%s1 + $0xdb8] sm:$0xff]
        %v753 = vld [vmem:[%s1 + $0xdc0] sm:$0xff]
        %v754 = vld [vmem:[%s1 + $0xdc8] sm:$0xff]
        %v755 = vld [vmem:[%s1 + $0xdd0] sm:$0xff]
        %v756 = vld [vmem:[%s1 + $0xdd8] sm:$0xff]
        %v757 = vld [vmem:[%s1 + $0xde0] sm:$0xff]
        %v758 = vld [vmem:[%s1 + $0xde8] sm:$0xff]
        %v759 = vld [vmem:[%s1 + $0xdf0] sm:$0xff]
        %v760 = vld [vmem:[%s1 + $0xdf8] sm:$0xff]
        %v761 = vld [vmem:[%s1 + $0xe00] sm:$0xff]
        %v762 = vld [vmem:[%s1 + $0xe08] sm:$0xff]
        %v763 = vld [vmem:[%s1 + $0xe10] sm:$0xff]
        %v764 = vld [vmem:[%s1 + $0xe18] sm:$0xff]
        %v765 = vld [vmem:[%s1 + $0xe20] sm:$0xff]
        %v766 = vld [vmem:[%s1 + $0xe28] sm:$0xff]
        %v767 = vld [vmem:[%s1 + $0xe30] sm:$0xff]
        %v768 = vld [vmem:[%s1 + $0xe38] sm:$0xff]
        %v769 = vld [vmem:[%s1 + $0xe40] sm:$0xff]
        %v770 = vld [vmem:[%s1 + $0xe48] sm:$0xff]
        %v771 = vld [vmem:[%s1 + $0xe50] sm:$0xff]
        %v772 = vld [vmem:[%s1 + $0xe58] sm:$0xff]
        %v773 = vld [vmem:[%s1 + $0xe60] sm:$0xff]
        %v774 = vld [vmem:[%s1 + $0xe68] sm:$0xff]
        %v775 = vld [vmem:[%s1 + $0xe70] sm:$0xff]
        %v776 = vld [vmem:[%s1 + $0xe78] sm:$0xff]
        %v777 = vld [vmem:[%s1 + $0xe80] sm:$0xff]
        %v778 = vld [vmem:[%s1 + $0xe88] sm:$0xff]
        %v779 = vld [vmem:[%s1 + $0xe90] sm:$0xff]
        %v780 = vld [vmem:[%s1 + $0xe98] sm:$0xff]
        %v781 = vld [vmem:[%s1 + $0xea0] sm:$0xff]
        %v782 = vld [vmem:[%s1 + $0xea8] sm:$0xff]
        %v783 = vld [vmem:[%s1 + $0xeb0] sm:$0xff]
        %v784 = vld [vmem:[%s1 + $0xeb8] sm:$0xff]
        %v785 = vld [vmem:[%s1 + $0xec0] sm:$0xff]
        %v786 = vld [vmem:[%s1 + $0xec8] sm:$0xff]
        %v787 = vld [vmem:[%s1 + $0xed0] sm:$0xff]
        %v788 = vld [vmem:[%s1 + $0xed8] sm:$0xff]
        %v789 = vld [vmem:[%s1 + $0xee0] sm:$0xff]
        %v790 = vld [vmem:[%s1 + $0xee8] sm:$0xff]
        %v791 = vld [vmem:[%s1 + $0xef0] sm:$0xff]
        %v792 = vld [vmem:[%s1 + $0xef8] sm:$0xff]
        %v793 = vld [vmem:[%s1 + $0xf00] sm:$0xff]
        %v794 = vld [vmem:[%s1 + $0xf08] sm:$0xff]
        %v795 = vld [vmem:[%s1 + $0xf10] sm:$0xff]
        %v796 = vld [vmem:[%s1 + $0xf18] sm:$0xff]
        %v797 = vld [vmem:[%s1 + $0xf20] sm:$0xff]
        %v798 = vld [vmem:[%s1 + $0xf28] sm:$0xff]
        %v799 = vld [vmem:[%s1 + $0xf30] sm:$0xff]
        %v800 = vld [vmem:[%s1 + $0xf38] sm:$0xff]
        %v801 = vld [vmem:[%s1 + $0xf40] sm:$0xff]
        %v802 = vld [vmem:[%s1 + $0xf48] sm:$0xff]
        %v803 = vld [vmem:[%s1 + $0xf50] sm:$0xff]
        %v804 = vld [vmem:[%s1 + $0xf58] sm:$0xff]
        %v805 = vld [vmem:[%s1 + $0xf60] sm:$0xff]
        %v806 = vld [vmem:[%s1 + $0xf68] sm:$0xff]
        %v807 = vld [vmem:[%s1 + $0xf70] sm:$0xff]
        %v808 = vld [vmem:[%s1 + $0xf78] sm:$0xff]
        %v809 = vld [vmem:[%s1 + $0xf80] sm:$0xff]
        %v810 = vld [vmem:[%s1 + $0xf88] sm:$0xff]
        %v811 = vld [vmem:[%s1 + $0xf90] sm:$0xff]
        %v812 = vld [vmem:[%s1 + $0xf98] sm:$0xff]
        %v813 = vld [vmem:[%s1 + $0xfa0] sm:$0xff]
        %v814 = vld [vmem:[%s1 + $0xfa8] sm:$0xff]
        %v815 = vld [vmem:[%s1 + $0xfb0] sm:$0xff]
        %v816 = vld [vmem:[%s1 + $0xfb8] sm:$0xff]
        %v817 = vld [vmem:[%s1 + $0xfc0] sm:$0xff]
        %v818 = vld [vmem:[%s1 + $0xfc8] sm:$0xff]
        %v819 = vld [vmem:[%s1 + $0xfd0] sm:$0xff]
        %v820 = vld [vmem:[%s1 + $0xfd8] sm:$0xff]
        %v821 = vld [vmem:[%s1 + $0xfe0] sm:$0xff]
        %v822 = vld [vmem:[%s1 + $0xfe8] sm:$0xff]
        %v823 = vld [vmem:[%s1 + $0xff0] sm:$0xff]
        %v824 = vld [vmem:[%s1 + $0xff8] sm:$0xff]
        %v825 = vld [vmem:[%s1 + $0x1000] sm:$0xff]
        %v826 = vld [vmem:[%s1 + $0x1008] sm:$0xff]
        %v827 = vld [vmem:[%s1 + $0x1010] sm:$0xff]
        %v828 = vld [vmem:[%s1 + $0x1018] sm:$0xff]
        %v829 = vld [vmem:[%s1 + $0x1020] sm:$0xff]
        %v830 = vld [vmem:[%s1 + $0x1028] sm:$0xff]
        %v831 = vld [vmem:[%s1 + $0x1030] sm:$0xff]
        %v832 = vld [vmem:[%s1 + $0x1038] sm:$0xff]
        %v833 = vld [vmem:[%s1 + $0x1040] sm:$0xff]
        %v834 = vld [vmem:[%s1 + $0x1048] sm:$0xff]
        %v835 = vld [vmem:[%s1 + $0x1050] sm:$0xff]
        %v836 = vld [vmem:[%s1 + $0x1058] sm:$0xff]
        %v837 = vld [vmem:[%s1 + $0x1060] sm:$0xff]
        %v838 = vld [vmem:[%s1 + $0x1068] sm:$0xff]
        %v839 = vld [vmem:[%s1 + $0x1070] sm:$0xff]
        %v840 = vld [vmem:[%s1 + $0x1078] sm:$0xff]
        %v841 = vld [vmem:[%s1 + $0x1080] sm:$0xff]
        %v842 = vld [vmem:[%s1 + $0x1088] sm:$0xff]
        %v843 = vld [vmem:[%s1 + $0x1090] sm:$0xff]
        %v844 = vld [vmem:[%s1 + $0x1098] sm:$0xff]
        %v845 = vld [vmem:[%s1 + $0x10a0] sm:$0xff]
        %v846 = vld [vmem:[%s1 + $0x10a8] sm:$0xff]
        %v847 = vld [vmem:[%s1 + $0x10b0] sm:$0xff]
        %v848 = vld [vmem:[%s1 + $0x10b8] sm:$0xff]
        %v849 = vld [vmem:[%s1 + $0x10c0] sm:$0xff]
        %v850 = vld [vmem:[%s1 + $0x10c8] sm:$0xff]
        %v851 = vld [vmem:[%s1 + $0x10d0] sm:$0xff]
        %v852 = vld [vmem:[%s1 + $0x10d8] sm:$0xff]
        %v853 = vsel %vm206, %v147, 0
        %v856 = vsel %vm206, %v168, 0
        %858 = vmatprep.subr.mxu0 %v314
        %859 = vmatpush1.msra.mxu0 %v313
        %860 = vmatprep.subr.mxu0 %v317
        %861 = vmatpush1.msra.mxu0 %v316
        %862 = vmatprep.subr.mxu0 %v320
        %863 = vmatpush1.msra.mxu0 %v319
        %864 = vmatprep.subr.mxu0 %v323
        %865 = vmatpush1.msra.mxu0 %v322
        %866 = vmatprep.subr.mxu0 %v326
        %867 = vmatpush1.msra.mxu0 %v325
        %868 = vmatprep.subr.mxu0 %v329
        %869 = vmatpush1.msra.mxu0 %v328
        %870 = vmatprep.subr.mxu0 %v332
        %871 = vmatpush1.msra.mxu0 %v331
        %872 = vmatprep.subr.mxu0 %v335
        %873 = vmatpush1.msra.mxu0 %v334
        %874 = vmatprep.subr.mxu0 %v338
        %875 = vmatpush1.msra.mxu0 %v337
        %876 = vmatprep.subr.mxu0 %v341
        %877 = vmatpush1.msra.mxu0 %v340
        %878 = vmatprep.subr.mxu0 %v344
        %879 = vmatpush1.msra.mxu0 %v343
        %880 = vmatprep.subr.mxu0 %v347
        %881 = vmatpush1.msra.mxu0 %v346
        %882 = vmatprep.subr.mxu0 %v350
        %883 = vmatpush1.msra.mxu0 %v349
        %884 = vmatprep.subr.mxu0 %v353
        %885 = vmatpush1.msra.mxu0 %v352
        %886 = vmatprep.subr.mxu0 %v356
        %887 = vmatpush1.msra.mxu0 %v355
        %888 = vmatprep.subr.mxu0 %v359
        %889 = vmatpush1.msra.mxu0 %v358
        %890 = vmatprep.subr.mxu0 %v362
        %891 = vmatpush1.msra.mxu0 %v361
        %892 = vmatprep.subr.mxu0 %v365
        %893 = vmatpush1.msra.mxu0 %v364
        %894 = vmatprep.subr.mxu0 %v368
        %895 = vmatpush1.msra.mxu0 %v367
        %896 = vmatprep.subr.mxu0 %v371
        %897 = vmatpush1.msra.mxu0 %v370
        %898 = vmatprep.subr.mxu0 %v374
        %899 = vmatpush1.msra.mxu0 %v373
        %900 = vmatprep.subr.mxu0 %v377
        %901 = vmatpush1.msra.mxu0 %v376
        %902 = vmatprep.subr.mxu0 %v380
        %903 = vmatpush1.msra.mxu0 %v379
        %904 = vmatprep.subr.mxu0 %v383
        %905 = vmatpush1.msra.mxu0 %v382
        %906 = vmatprep.subr.mxu0 %v386
        %907 = vmatpush1.msra.mxu0 %v385
        %908 = vmatprep.subr.mxu0 %v389
        %909 = vmatpush1.msra.mxu0 %v388
        %910 = vmatprep.subr.mxu0 %v392
        %911 = vmatpush1.msra.mxu0 %v391
        %912 = vmatprep.subr.mxu0 %v395
        %913 = vmatpush1.msra.mxu0 %v394
        %914 = vmatprep.subr.mxu0 %v398
        %915 = vmatpush1.msra.mxu0 %v397
        %916 = vmatprep.subr.mxu0 %v401
        %917 = vmatpush1.msra.mxu0 %v400
        %918 = vmatprep.subr.mxu0 %v404
        %919 = vmatpush1.msra.mxu0 %v403
        %920 = vmatprep.subr.mxu0 %v407
        %921 = vmatpush1.msra.mxu0 %v406
        %922 = vmatprep.mubr.f32.mxu0 %v143
        %923 = vmatmul.mubr.f32.gmra.mrb[0].mxu0 %v142
        %v924 = vpop.f32.mrb[0].mxu0
        %v925 = vadd.f32 0.0, %v924
        %v926 = vpop.f32.mrb[0].mxu0
        %v927 = vadd.f32 0.0, %v926
        %928 = vmatprep.mubr.f32.mxu0 %v146
        %929 = vmatmul.mubr.f32.gmra.mrb[0].mxu0 %v145
        %v930 = vpop.f32.mrb[0].mxu0
        %v931 = vadd.f32 0.0, %v930
        %v932 = vpop.f32.mrb[0].mxu0
        %v933 = vadd.f32 0.0, %v932
        %934 = vdwg.mxu0
        %935 = vmatprep.subr.mxu0 %v410
        %936 = vmatpush1.msra.mxu0 %v409
        %937 = vmatprep.subr.mxu0 %v413
        %938 = vmatpush1.msra.mxu0 %v412
        %939 = vmatprep.subr.mxu0 %v416
        %940 = vmatpush1.msra.mxu0 %v415
        %941 = vmatprep.subr.mxu0 %v419
        %942 = vmatpush1.msra.mxu0 %v418
        %943 = vmatprep.subr.mxu0 %v422
        %944 = vmatpush1.msra.mxu0 %v421
        %945 = vmatprep.subr.mxu0 %v425
        %946 = vmatpush1.msra.mxu0 %v424
        %947 = vmatprep.subr.mxu0 %v428
        %948 = vmatpush1.msra.mxu0 %v427
        %949 = vmatprep.subr.mxu0 %v431
        %950 = vmatpush1.msra.mxu0 %v430
        %951 = vmatprep.subr.mxu0 %v434
        %952 = vmatpush1.msra.mxu0 %v433
        %953 = vmatprep.subr.mxu0 %v437
        %954 = vmatpush1.msra.mxu0 %v436
        %955 = vmatprep.subr.mxu0 %v440
        %956 = vmatpush1.msra.mxu0 %v439
        %957 = vmatprep.subr.mxu0 %v443
        %958 = vmatpush1.msra.mxu0 %v442
        %959 = vmatprep.subr.mxu0 %v446
        %960 = vmatpush1.msra.mxu0 %v445
        %961 = vmatprep.subr.mxu0 %v449
        %962 = vmatpush1.msra.mxu0 %v448
        %963 = vmatprep.subr.mxu0 %v452
        %964 = vmatpush1.msra.mxu0 %v451
        %965 = vmatprep.subr.mxu0 %v455
        %966 = vmatpush1.msra.mxu0 %v454
        %967 = vmatprep.subr.mxu0 %v458
        %968 = vmatpush1.msra.mxu0 %v457
        %969 = vmatprep.subr.mxu0 %v461
        %970 = vmatpush1.msra.mxu0 %v460
        %971 = vmatprep.subr.mxu0 %v464
        %972 = vmatpush1.msra.mxu0 %v463
        %973 = vmatprep.subr.mxu0 %v467
        %974 = vmatpush1.msra.mxu0 %v466
        %975 = vmatprep.subr.mxu0 %v470
        %976 = vmatpush1.msra.mxu0 %v469
        %977 = vmatprep.subr.mxu0 %v473
        %978 = vmatpush1.msra.mxu0 %v472
        %979 = vmatprep.subr.mxu0 %v476
        %980 = vmatpush1.msra.mxu0 %v475
        %981 = vmatprep.subr.mxu0 %v479
        %982 = vmatpush1.msra.mxu0 %v478
        %983 = vmatprep.subr.mxu0 %v482
        %984 = vmatpush1.msra.mxu0 %v481
        %985 = vmatprep.subr.mxu0 %v485
        %986 = vmatpush1.msra.mxu0 %v484
        %987 = vmatprep.subr.mxu0 %v488
        %988 = vmatpush1.msra.mxu0 %v487
        %989 = vmatprep.subr.mxu0 %v491
        %990 = vmatpush1.msra.mxu0 %v490
        %991 = vmatprep.subr.mxu0 %v494
        %992 = vmatpush1.msra.mxu0 %v493
        %993 = vmatprep.subr.mxu0 %v497
        %994 = vmatpush1.msra.mxu0 %v496
        %995 = vmatprep.subr.mxu0 %v500
        %996 = vmatpush1.msra.mxu0 %v499
        %997 = vmatprep.subr.mxu0 %v503
        %998 = vmatpush1.msra.mxu0 %v502
        %999 = vmatprep.mubr.f32.mxu0 %v207
        %1000 = vmatmul.mubr.f32.gmra.mrb[0].mxu0 %v307
        %v1001 = vpop.f32.mrb[0].mxu0
        %v1002 = vadd.f32 %v925, %v1001
        %v1003 = vpop.f32.mrb[0].mxu0
        %v1004 = vadd.f32 %v927, %v1003
        %1005 = vmatprep.mubr.f32.mxu0 %v209
        %1006 = vmatmul.mubr.f32.gmra.mrb[0].mxu0 %v308
        %v1007 = vpop.f32.mrb[0].mxu0
        %v1008 = vadd.f32 %v931, %v1007
        %v1009 = vpop.f32.mrb[0].mxu0
        %v1010 = vadd.f32 %v933, %v1009
        %1011 = vdwg.mxu0
        %1012 = vmatprep.subr.mxu0 %v506
        %1013 = vmatpush1.msra.mxu0 %v505
        %1014 = vmatprep.subr.mxu0 %v509
        %1015 = vmatpush1.msra.mxu0 %v508
        %1016 = vmatprep.subr.mxu0 %v512
        %1017 = vmatpush1.msra.mxu0 %v511
        %1018 = vmatprep.subr.mxu0 %v515
        %1019 = vmatpush1.msra.mxu0 %v514
        %1020 = vmatprep.subr.mxu0 %v518
        %1021 = vmatpush1.msra.mxu0 %v517
        %1022 = vmatprep.subr.mxu0 %v521
        %1023 = vmatpush1.msra.mxu0 %v520
        %1024 = vmatprep.subr.mxu0 %v524
        %1025 = vmatpush1.msra.mxu0 %v523
        %1026 = vmatprep.subr.mxu0 %v527
        %1027 = vmatpush1.msra.mxu0 %v526
        %1028 = vmatprep.subr.mxu0 %v530
        %1029 = vmatpush1.msra.mxu0 %v529
        %1030 = vmatprep.subr.mxu0 %v533
        %1031 = vmatpush1.msra.mxu0 %v532
        %1032 = vmatprep.subr.mxu0 %v536
        %1033 = vmatpush1.msra.mxu0 %v535
        %1034 = vmatprep.subr.mxu0 %v539
        %1035 = vmatpush1.msra.mxu0 %v538
        %1036 = vmatprep.subr.mxu0 %v542
        %1037 = vmatpush1.msra.mxu0 %v541
        %1038 = vmatprep.subr.mxu0 %v545
        %1039 = vmatpush1.msra.mxu0 %v544
        %1040 = vmatprep.subr.mxu0 %v548
        %1041 = vmatpush1.msra.mxu0 %v547
        %1042 = vmatprep.subr.mxu0 %v551
        %1043 = vmatpush1.msra.mxu0 %v550
        %1044 = vmatprep.subr.mxu0 %v554
        %1045 = vmatpush1.msra.mxu0 %v553
        %1046 = vmatprep.subr.mxu0 %v557
        %1047 = vmatpush1.msra.mxu0 %v556
        %1048 = vmatprep.subr.mxu0 %v560
        %1049 = vmatpush1.msra.mxu0 %v559
        %1050 = vmatprep.subr.mxu0 %v563
        %1051 = vmatpush1.msra.mxu0 %v562
        %1052 = vmatprep.subr.mxu0 %v566
        %1053 = vmatpush1.msra.mxu0 %v565
        %1054 = vmatprep.subr.mxu0 %v569
        %1055 = vmatpush1.msra.mxu0 %v568
        %1056 = vmatprep.subr.mxu0 %v572
        %1057 = vmatpush1.msra.mxu0 %v571
        %1058 = vmatprep.subr.mxu0 %v575
        %1059 = vmatpush1.msra.mxu0 %v574
        %1060 = vmatprep.subr.mxu0 %v578
        %1061 = vmatpush1.msra.mxu0 %v577
        %1062 = vmatprep.subr.mxu0 %v581
        %1063 = vmatpush1.msra.mxu0 %v580
        %1064 = vmatprep.subr.mxu0 %v584
        %1065 = vmatpush1.msra.mxu0 %v583
        %1066 = vmatprep.subr.mxu0 %v587
        %1067 = vmatpush1.msra.mxu0 %v586
        %1068 = vmatprep.subr.mxu0 %v590
        %1069 = vmatpush1.msra.mxu0 %v589
        %1070 = vmatprep.subr.mxu0 %v593
        %1071 = vmatpush1.msra.mxu0 %v592
        %1072 = vmatprep.subr.mxu0 %v596
        %1073 = vmatpush1.msra.mxu0 %v595
        %1074 = vmatprep.subr.mxu0 %v599
        %1075 = vmatpush1.msra.mxu0 %v598
        %1076 = vmatprep.mubr.f32.mxu0 %v252
        %1077 = vmatmul.mubr.f32.gmra.mrb[0].mxu0 %v309
        %v1078 = vpop.f32.mrb[0].mxu0
        %v1079 = vadd.f32 %v1002, %v1078
        %v1080 = vpop.f32.mrb[0].mxu0
        %v1081 = vadd.f32 %v1004, %v1080
        %1082 = vmatprep.mubr.f32.mxu0 %v254
        %1083 = vmatmul.mubr.f32.gmra.mrb[0].mxu0 %v310
        %v1084 = vpop.f32.mrb[0].mxu0
        %v1085 = vadd.f32 %v1008, %v1084
        %v1086 = vpop.f32.mrb[0].mxu0
        %v1087 = vadd.f32 %v1010, %v1086
        %1088 = vdwg.mxu0
        %1089 = vmatprep.subr.mxu0 %v602
        %1090 = vmatpush1.msra.mxu0 %v601
        %1091 = vmatprep.subr.mxu0 %v605
        %1092 = vmatpush1.msra.mxu0 %v604
        %1093 = vmatprep.subr.mxu0 %v608
        %1094 = vmatpush1.msra.mxu0 %v607
        %1095 = vmatprep.subr.mxu0 %v611
        %1096 = vmatpush1.msra.mxu0 %v610
        %1097 = vmatprep.subr.mxu0 %v614
        %1098 = vmatpush1.msra.mxu0 %v613
        %1099 = vmatprep.subr.mxu0 %v617
        %1100 = vmatpush1.msra.mxu0 %v616
        %1101 = vmatprep.subr.mxu0 %v620
        %1102 = vmatpush1.msra.mxu0 %v619
        %1103 = vmatprep.subr.mxu0 %v623
        %1104 = vmatpush1.msra.mxu0 %v622
        %1105 = vmatprep.subr.mxu0 %v626
        %1106 = vmatpush1.msra.mxu0 %v625
        %1107 = vmatprep.subr.mxu0 %v629
        %1108 = vmatpush1.msra.mxu0 %v628
        %1109 = vmatprep.subr.mxu0 %v632
        %1110 = vmatpush1.msra.mxu0 %v631
        %1111 = vmatprep.subr.mxu0 %v635
        %1112 = vmatpush1.msra.mxu0 %v634
        %1113 = vmatprep.subr.mxu0 %v638
        %1114 = vmatpush1.msra.mxu0 %v637
        %1115 = vmatprep.subr.mxu0 %v641
        %1116 = vmatpush1.msra.mxu0 %v640
        %1117 = vmatprep.subr.mxu0 %v644
        %1118 = vmatpush1.msra.mxu0 %v643
        %1119 = vmatprep.subr.mxu0 %v647
        %1120 = vmatpush1.msra.mxu0 %v646
        %1121 = vmatprep.subr.mxu0 %v650
        %1122 = vmatpush1.msra.mxu0 %v649
        %1123 = vmatprep.subr.mxu0 %v653
        %1124 = vmatpush1.msra.mxu0 %v652
        %1125 = vmatprep.subr.mxu0 %v656
        %1126 = vmatpush1.msra.mxu0 %v655
        %1127 = vmatprep.subr.mxu0 %v659
        %1128 = vmatpush1.msra.mxu0 %v658
        %1129 = vmatprep.subr.mxu0 %v662
        %1130 = vmatpush1.msra.mxu0 %v661
        %1131 = vmatprep.subr.mxu0 %v665
        %1132 = vmatpush1.msra.mxu0 %v664
        %1133 = vmatprep.subr.mxu0 %v668
        %1134 = vmatpush1.msra.mxu0 %v667
        %1135 = vmatprep.subr.mxu0 %v671
        %1136 = vmatpush1.msra.mxu0 %v670
        %1137 = vmatprep.subr.mxu0 %v674
        %1138 = vmatpush1.msra.mxu0 %v673
        %1139 = vmatprep.subr.mxu0 %v677
        %1140 = vmatpush1.msra.mxu0 %v676
        %1141 = vmatprep.subr.mxu0 %v680
        %1142 = vmatpush1.msra.mxu0 %v679
        %1143 = vmatprep.subr.mxu0 %v683
        %1144 = vmatpush1.msra.mxu0 %v682
        %1145 = vmatprep.subr.mxu0 %v686
        %1146 = vmatpush1.msra.mxu0 %v685
        %1147 = vmatprep.subr.mxu0 %v689
        %1148 = vmatpush1.msra.mxu0 %v688
        %1149 = vmatprep.subr.mxu0 %v692
        %1150 = vmatpush1.msra.mxu0 %v691
        %1151 = vmatprep.subr.mxu0 %v695
        %1152 = vmatpush1.msra.mxu0 %v694
        %1153 = vmatprep.mubr.f32.mxu0 %v297
        %1154 = vmatmul.mubr.f32.gmra.mrb[0].mxu0 %v311
        %v1155 = vpop.f32.mrb[0].mxu0
        %v1156 = vadd.f32 %v1079, %v1155
        %v1157 = vpop.f32.mrb[0].mxu0
        %v1158 = vadd.f32 %v1081, %v1157
        %1159 = vmatprep.mubr.f32.mxu0 %v299
        %1160 = vmatmul.mubr.f32.gmra.mrb[0].mxu0 %v312
        %v1161 = vpop.f32.mrb[0].mxu0
        %v1162 = vadd.f32 %v1085, %v1161
        %v1163 = vpop.f32.mrb[0].mxu0
        %v1164 = vadd.f32 %v1087, %v1163
        %1165 = vdwg.mxu0
        %1166 = vmatprep.subr.mxu0 %v698
        %1167 = vmatpush1.msra.mxu0 %v697
        %1168 = vmatprep.subr.mxu0 %v701
        %1169 = vmatpush1.msra.mxu0 %v700
        %1170 = vmatprep.subr.mxu0 %v704
        %1171 = vmatpush1.msra.mxu0 %v703
        %1172 = vmatprep.subr.mxu0 %v707
        %1173 = vmatpush1.msra.mxu0 %v706
        %1174 = vmatprep.subr.mxu0 %v710
        %1175 = vmatpush1.msra.mxu0 %v709
        %1176 = vmatprep.subr.mxu0 %v713
        %1177 = vmatpush1.msra.mxu0 %v712
        %1178 = vmatprep.subr.mxu0 %v716
        %1179 = vmatpush1.msra.mxu0 %v715
        %1180 = vmatprep.subr.mxu0 %v719
        %1181 = vmatpush1.msra.mxu0 %v718
        %1182 = vmatprep.subr.mxu0 %v722
        %1183 = vmatpush1.msra.mxu0 %v721
        %1184 = vmatprep.subr.mxu0 %v725
        %1185 = vmatpush1.msra.mxu0 %v724
        %1186 = vmatprep.subr.mxu0 %v728
        %1187 = vmatpush1.msra.mxu0 %v727
        %1188 = vmatprep.subr.mxu0 %v731
        %1189 = vmatpush1.msra.mxu0 %v730
        %1190 = vmatprep.subr.mxu0 %v734
        %1191 = vmatpush1.msra.mxu0 %v733
        %1192 = vmatprep.subr.mxu0 %v737
        %1193 = vmatpush1.msra.mxu0 %v736
        %1194 = vmatprep.subr.mxu0 %v740
        %1195 = vmatpush1.msra.mxu0 %v739
        %1196 = vmatprep.subr.mxu0 %v743
        %1197 = vmatpush1.msra.mxu0 %v742
        %1198 = vmatprep.subr.mxu0 %v746
        %1199 = vmatpush1.msra.mxu0 %v745
        %1200 = vmatprep.subr.mxu0 %v749
        %1201 = vmatpush1.msra.mxu0 %v748
        %1202 = vmatprep.subr.mxu0 %v752
        %1203 = vmatpush1.msra.mxu0 %v751
        %1204 = vmatprep.subr.mxu0 %v755
        %1205 = vmatpush1.msra.mxu0 %v754
        %1206 = vmatprep.subr.mxu0 %v758
        %1207 = vmatpush1.msra.mxu0 %v757
        %1208 = vmatprep.subr.mxu0 %v761
        %1209 = vmatpush1.msra.mxu0 %v760
        %1210 = vmatprep.subr.mxu0 %v764
        %1211 = vmatpush1.msra.mxu0 %v763
        %1212 = vmatprep.subr.mxu0 %v767
        %1213 = vmatpush1.msra.mxu0 %v766
        %1214 = vmatprep.subr.mxu0 %v770
        %1215 = vmatpush1.msra.mxu0 %v769
        %1216 = vmatprep.subr.mxu0 %v773
        %1217 = vmatpush1.msra.mxu0 %v772
        %1218 = vmatprep.subr.mxu0 %v776
        %1219 = vmatpush1.msra.mxu0 %v775
        %1220 = vmatprep.subr.mxu0 %v779
        %1221 = vmatpush1.msra.mxu0 %v778
        %1222 = vmatprep.subr.mxu0 %v782
        %1223 = vmatpush1.msra.mxu0 %v781
        %1224 = vmatprep.subr.mxu0 %v785
        %1225 = vmatpush1.msra.mxu0 %v784
        %1226 = vmatprep.subr.mxu0 %v788
        %1227 = vmatpush1.msra.mxu0 %v787
        %1228 = vmatprep.subr.mxu0 %v791
        %1229 = vmatpush1.msra.mxu0 %v790
        %1230 = vmatprep.mubr.f32.mxu0 %v145
        %1231 = vmatmul.mubr.f32.gmra.mrb[0].mxu0 %v298
        %v1232 = vpop.f32.mrb[0].mxu0
        %v1233 = vadd.f32 %v1156, %v1232
        %v1234 = vpop.f32.mrb[0].mxu0
        %v1235 = vadd.f32 %v1158, %v1234
        %1236 = vmatprep.mubr.f32.mxu0 %v166
        %1237 = vmatmul.mubr.f32.gmra.mrb[0].mxu0 %v300
        %v1238 = vpop.f32.mrb[0].mxu0
        %v1239 = vadd.f32 %v1162, %v1238
        %v1240 = vpop.f32.mrb[0].mxu0
        %v1241 = vadd.f32 %v1164, %v1240
        %1242 = vdwg.mxu0
        %1243 = vmatprep.subr.mxu0 %v794
        %1244 = vmatpush1.msra.mxu0 %v793
        %1245 = vmatprep.subr.mxu0 %v797
        %1246 = vmatpush1.msra.mxu0 %v796
        %1247 = vmatprep.subr.mxu0 %v800
        %1248 = vmatpush1.msra.mxu0 %v799
        %1249 = vmatprep.subr.mxu0 %v803
        %1250 = vmatpush1.msra.mxu0 %v802
        %1251 = vmatprep.subr.mxu0 %v806
        %1252 = vmatpush1.msra.mxu0 %v805
        %1253 = vmatprep.subr.mxu0 %v809
        %1254 = vmatpush1.msra.mxu0 %v808
        %1255 = vmatprep.subr.mxu0 %v812
        %1256 = vmatpush1.msra.mxu0 %v811
        %1257 = vmatprep.subr.mxu0 %v815
        %1258 = vmatpush1.msra.mxu0 %v814
        %1259 = vmatprep.subr.mxu0 %v818
        %1260 = vmatpush1.msra.mxu0 %v817
        %1261 = vmatprep.subr.mxu0 %v821
        %1262 = vmatpush1.msra.mxu0 %v820
        %1263 = vmatprep.subr.mxu0 %v824
        %1264 = vmatpush1.msra.mxu0 %v823
        %1265 = vmatprep.subr.mxu0 %v827
        %1266 = vmatpush1.msra.mxu0 %v826
        %1267 = vmatprep.subr.mxu0 %v830
        %1268 = vmatpush1.msra.mxu0 %v829
        %1269 = vmatprep.subr.mxu0 %v833
        %1270 = vmatpush1.msra.mxu0 %v832
        %1271 = vmatprep.subr.mxu0 %v836
        %1272 = vmatpush1.msra.mxu0 %v835
        %1273 = vmatprep.subr.mxu0 %v839
        %1274 = vmatpush1.msra.mxu0 %v838
        %1275 = vmatprep.subr.mxu0 %v842
        %1276 = vmatpush1.msra.mxu0 %v841
        %1277 = vmatprep.subr.mxu0 %v845
        %1278 = vmatpush1.msra.mxu0 %v844
        %1279 = vmatprep.subr.mxu0 %v848
        %1280 = vmatpush1.msra.mxu0 %v847
        %1281 = vmatprep.subr.mxu0 %v851
        %1282 = vmatpush1.msra.mxu0 %v850
        %1283 = vmatprep.subr.mxu0 0.0
        %1284 = vmatpush1.msra.mxu0 0.0
        %1285 = vmatprep.subr.mxu0 0.0
        %1286 = vmatpush1.msra.mxu0 0.0
        %1287 = vmatprep.subr.mxu0 0.0
        %1288 = vmatpush1.msra.mxu0 0.0
        %1289 = vmatprep.subr.mxu0 0.0
        %1290 = vmatpush1.msra.mxu0 0.0
        %1291 = vmatprep.subr.mxu0 0.0
        %1292 = vmatpush1.msra.mxu0 0.0
        %1293 = vmatprep.subr.mxu0 0.0
        %1294 = vmatpush1.msra.mxu0 0.0
        %1295 = vmatprep.subr.mxu0 0.0
        %1296 = vmatpush1.msra.mxu0 0.0
        %1297 = vmatprep.subr.mxu0 0.0
        %1298 = vmatpush1.msra.mxu0 0.0
        %1299 = vmatprep.subr.mxu0 0.0
        %1300 = vmatpush1.msra.mxu0 0.0
        %1301 = vmatprep.subr.mxu0 0.0
        %1302 = vmatpush1.msra.mxu0 0.0
        %1303 = vmatprep.subr.mxu0 0.0
        %1304 = vmatpush1.msra.mxu0 0.0
        %1305 = vmatprep.subr.mxu0 0.0
        %1306 = vmatpush1.msra.mxu0 0.0
        %1307 = vmatprep.mubr.f32.mxu0 %v853
        %1308 = vmatmul.mubr.f32.gmra.mrb[0].mxu0 %v146
        %v1309 = vpop.f32.mrb[0].mxu0
        %v1310 = vadd.f32 %v1233, %v1309
        %v1311 = vpop.f32.mrb[0].mxu0
        %v1312 = vadd.f32 %v1235, %v1311
        %1313 = vmatprep.mubr.f32.mxu0 %v856
        %1314 = vmatmul.mubr.f32.gmra.mrb[0].mxu0 %v167
        %v1315 = vpop.f32.mrb[0].mxu0
        %v1316 = vadd.f32 %v1239, %v1315
        %v1317 = vpop.f32.mrb[0].mxu0
        %v1318 = vadd.f32 %v1241, %v1317
        %1319 = vdwg.mxu0
        %1320 = vmatprep.subr.mxu0 0.0
        %1321 = vmatpush1.msra.mxu0 %v315
        %1322 = vmatprep.subr.mxu0 0.0
        %1323 = vmatpush1.msra.mxu0 %v318
        %1324 = vmatprep.subr.mxu0 0.0
        %1325 = vmatpush1.msra.mxu0 %v321
        %1326 = vmatprep.subr.mxu0 0.0
        %1327 = vmatpush1.msra.mxu0 %v324
        %1328 = vmatprep.subr.mxu0 0.0
        %1329 = vmatpush1.msra.mxu0 %v327
        %1330 = vmatprep.subr.mxu0 0.0
        %1331 = vmatpush1.msra.mxu0 %v330
        %1332 = vmatprep.subr.mxu0 0.0
        %1333 = vmatpush1.msra.mxu0 %v333
        %1334 = vmatprep.subr.mxu0 0.0
        %1335 = vmatpush1.msra.mxu0 %v336
        %1336 = vmatprep.subr.mxu0 0.0
        %1337 = vmatpush1.msra.mxu0 %v339
        %1338 = vmatprep.subr.mxu0 0.0
        %1339 = vmatpush1.msra.mxu0 %v342
        %1340 = vmatprep.subr.mxu0 0.0
        %1341 = vmatpush1.msra.mxu0 %v345
        %1342 = vmatprep.subr.mxu0 0.0
        %1343 = vmatpush1.msra.mxu0 %v348
        %1344 = vmatprep.subr.mxu0 0.0
        %1345 = vmatpush1.msra.mxu0 %v351
        %1346 = vmatprep.subr.mxu0 0.0
        %1347 = vmatpush1.msra.mxu0 %v354
        %1348 = vmatprep.subr.mxu0 0.0
        %1349 = vmatpush1.msra.mxu0 %v357
        %1350 = vmatprep.subr.mxu0 0.0
        %1351 = vmatpush1.msra.mxu0 %v360
        %1352 = vmatprep.subr.mxu0 0.0
        %1353 = vmatpush1.msra.mxu0 %v363
        %1354 = vmatprep.subr.mxu0 0.0
        %1355 = vmatpush1.msra.mxu0 %v366
        %1356 = vmatprep.subr.mxu0 0.0
        %1357 = vmatpush1.msra.mxu0 %v369
        %1358 = vmatprep.subr.mxu0 0.0
        %1359 = vmatpush1.msra.mxu0 %v372
        %1360 = vmatprep.subr.mxu0 0.0
        %1361 = vmatpush1.msra.mxu0 %v375
        %1362 = vmatprep.subr.mxu0 0.0
        %1363 = vmatpush1.msra.mxu0 %v378
        %1364 = vmatprep.subr.mxu0 0.0
        %1365 = vmatpush1.msra.mxu0 %v381
        %1366 = vmatprep.subr.mxu0 0.0
        %1367 = vmatpush1.msra.mxu0 %v384
        %1368 = vmatprep.subr.mxu0 0.0
        %1369 = vmatpush1.msra.mxu0 %v387
        %1370 = vmatprep.subr.mxu0 0.0
        %1371 = vmatpush1.msra.mxu0 %v390
        %1372 = vmatprep.subr.mxu0 0.0
        %1373 = vmatpush1.msra.mxu0 %v393
        %1374 = vmatprep.subr.mxu0 0.0
        %1375 = vmatpush1.msra.mxu0 %v396
        %1376 = vmatprep.subr.mxu0 0.0
        %1377 = vmatpush1.msra.mxu0 %v399
        %1378 = vmatprep.subr.mxu0 0.0
        %1379 = vmatpush1.msra.mxu0 %v402
        %1380 = vmatprep.subr.mxu0 0.0
        %1381 = vmatpush1.msra.mxu0 %v405
        %1382 = vmatprep.subr.mxu0 0.0
        %1383 = vmatpush1.msra.mxu0 %v408
        %1384 = vmatprep.mubr.f32.mxu0 %v143
        %1385 = vmatmul.mubr.f32.gmra.mrb[0].mxu0 %v142
        %v1386 = vpop.f32.mrb[0].mxu0
        %v1387 = vadd.f32 0.0, %v1386
        %v1388 = vpop.f32.mrb[0].mxu0
        %1389 = vmatprep.mubr.f32.mxu0 %v146
        %1390 = vmatmul.mubr.f32.gmra.mrb[0].mxu0 %v145
        %v1391 = vpop.f32.mrb[0].mxu0
        %v1392 = vadd.f32 0.0, %v1391
        %v1393 = vpop.f32.mrb[0].mxu0
        %1394 = vdwg.mxu0
        %1395 = vmatprep.subr.mxu0 0.0
        %1396 = vmatpush1.msra.mxu0 %v411
        %1397 = vmatprep.subr.mxu0 0.0
        %1398 = vmatpush1.msra.mxu0 %v414
        %1399 = vmatprep.subr.mxu0 0.0
        %1400 = vmatpush1.msra.mxu0 %v417
        %1401 = vmatprep.subr.mxu0 0.0
        %1402 = vmatpush1.msra.mxu0 %v420
        %1403 = vmatprep.subr.mxu0 0.0
        %1404 = vmatpush1.msra.mxu0 %v423
        %1405 = vmatprep.subr.mxu0 0.0
        %1406 = vmatpush1.msra.mxu0 %v426
        %1407 = vmatprep.subr.mxu0 0.0
        %1408 = vmatpush1.msra.mxu0 %v429
        %1409 = vmatprep.subr.mxu0 0.0
        %1410 = vmatpush1.msra.mxu0 %v432
        %1411 = vmatprep.subr.mxu0 0.0
        %1412 = vmatpush1.msra.mxu0 %v435
        %1413 = vmatprep.subr.mxu0 0.0
        %1414 = vmatpush1.msra.mxu0 %v438
        %1415 = vmatprep.subr.mxu0 0.0
        %1416 = vmatpush1.msra.mxu0 %v441
        %1417 = vmatprep.subr.mxu0 0.0
        %1418 = vmatpush1.msra.mxu0 %v444
        %1419 = vmatprep.subr.mxu0 0.0
        %1420 = vmatpush1.msra.mxu0 %v447
        %1421 = vmatprep.subr.mxu0 0.0
        %1422 = vmatpush1.msra.mxu0 %v450
        %1423 = vmatprep.subr.mxu0 0.0
        %1424 = vmatpush1.msra.mxu0 %v453
        %1425 = vmatprep.subr.mxu0 0.0
        %1426 = vmatpush1.msra.mxu0 %v456
        %1427 = vmatprep.subr.mxu0 0.0
        %1428 = vmatpush1.msra.mxu0 %v459
        %1429 = vmatprep.subr.mxu0 0.0
        %1430 = vmatpush1.msra.mxu0 %v462
        %1431 = vmatprep.subr.mxu0 0.0
        %1432 = vmatpush1.msra.mxu0 %v465
        %1433 = vmatprep.subr.mxu0 0.0
        %1434 = vmatpush1.msra.mxu0 %v468
        %1435 = vmatprep.subr.mxu0 0.0
        %1436 = vmatpush1.msra.mxu0 %v471
        %1437 = vmatprep.subr.mxu0 0.0
        %1438 = vmatpush1.msra.mxu0 %v474
        %1439 = vmatprep.subr.mxu0 0.0
        %1440 = vmatpush1.msra.mxu0 %v477
        %1441 = vmatprep.subr.mxu0 0.0
        %1442 = vmatpush1.msra.mxu0 %v480
        %1443 = vmatprep.subr.mxu0 0.0
        %1444 = vmatpush1.msra.mxu0 %v483
        %1445 = vmatprep.subr.mxu0 0.0
        %1446 = vmatpush1.msra.mxu0 %v486
        %1447 = vmatprep.subr.mxu0 0.0
        %1448 = vmatpush1.msra.mxu0 %v489
        %1449 = vmatprep.subr.mxu0 0.0
        %1450 = vmatpush1.msra.mxu0 %v492
        %1451 = vmatprep.subr.mxu0 0.0
        %1452 = vmatpush1.msra.mxu0 %v495
        %1453 = vmatprep.subr.mxu0 0.0
        %1454 = vmatpush1.msra.mxu0 %v498
        %1455 = vmatprep.subr.mxu0 0.0
        %1456 = vmatpush1.msra.mxu0 %v501
        %1457 = vmatprep.subr.mxu0 0.0
        %1458 = vmatpush1.msra.mxu0 %v504
        %1459 = vmatprep.mubr.f32.mxu0 %v207
        %1460 = vmatmul.mubr.f32.gmra.mrb[0].mxu0 %v307
        %v1461 = vpop.f32.mrb[0].mxu0
        %v1462 = vadd.f32 %v1387, %v1461
        %v1463 = vpop.f32.mrb[0].mxu0
        %1464 = vmatprep.mubr.f32.mxu0 %v209
        %1465 = vmatmul.mubr.f32.gmra.mrb[0].mxu0 %v308
        %v1466 = vpop.f32.mrb[0].mxu0
        %v1467 = vadd.f32 %v1392, %v1466
        %v1468 = vpop.f32.mrb[0].mxu0
        %1469 = vdwg.mxu0
        %1470 = vmatprep.subr.mxu0 0.0
        %1471 = vmatpush1.msra.mxu0 %v507
        %1472 = vmatprep.subr.mxu0 0.0
        %1473 = vmatpush1.msra.mxu0 %v510
        %1474 = vmatprep.subr.mxu0 0.0
        %1475 = vmatpush1.msra.mxu0 %v513
        %1476 = vmatprep.subr.mxu0 0.0
        %1477 = vmatpush1.msra.mxu0 %v516
        %1478 = vmatprep.subr.mxu0 0.0
        %1479 = vmatpush1.msra.mxu0 %v519
        %1480 = vmatprep.subr.mxu0 0.0
        %1481 = vmatpush1.msra.mxu0 %v522
        %1482 = vmatprep.subr.mxu0 0.0
        %1483 = vmatpush1.msra.mxu0 %v525
        %1484 = vmatprep.subr.mxu0 0.0
        %1485 = vmatpush1.msra.mxu0 %v528
        %1486 = vmatprep.subr.mxu0 0.0
        %1487 = vmatpush1.msra.mxu0 %v531
        %1488 = vmatprep.subr.mxu0 0.0
        %1489 = vmatpush1.msra.mxu0 %v534
        %1490 = vmatprep.subr.mxu0 0.0
        %1491 = vmatpush1.msra.mxu0 %v537
        %1492 = vmatprep.subr.mxu0 0.0
        %1493 = vmatpush1.msra.mxu0 %v540
        %1494 = vmatprep.subr.mxu0 0.0
        %1495 = vmatpush1.msra.mxu0 %v543
        %1496 = vmatprep.subr.mxu0 0.0
        %1497 = vmatpush1.msra.mxu0 %v546
        %1498 = vmatprep.subr.mxu0 0.0
        %1499 = vmatpush1.msra.mxu0 %v549
        %1500 = vmatprep.subr.mxu0 0.0
        %1501 = vmatpush1.msra.mxu0 %v552
        %1502 = vmatprep.subr.mxu0 0.0
        %1503 = vmatpush1.msra.mxu0 %v555
        %1504 = vmatprep.subr.mxu0 0.0
        %1505 = vmatpush1.msra.mxu0 %v558
        %1506 = vmatprep.subr.mxu0 0.0
        %1507 = vmatpush1.msra.mxu0 %v561
        %1508 = vmatprep.subr.mxu0 0.0
        %1509 = vmatpush1.msra.mxu0 %v564
        %1510 = vmatprep.subr.mxu0 0.0
        %1511 = vmatpush1.msra.mxu0 %v567
        %1512 = vmatprep.subr.mxu0 0.0
        %1513 = vmatpush1.msra.mxu0 %v570
        %1514 = vmatprep.subr.mxu0 0.0
        %1515 = vmatpush1.msra.mxu0 %v573
        %1516 = vmatprep.subr.mxu0 0.0
        %1517 = vmatpush1.msra.mxu0 %v576
        %1518 = vmatprep.subr.mxu0 0.0
        %1519 = vmatpush1.msra.mxu0 %v579
        %1520 = vmatprep.subr.mxu0 0.0
        %1521 = vmatpush1.msra.mxu0 %v582
        %1522 = vmatprep.subr.mxu0 0.0
        %1523 = vmatpush1.msra.mxu0 %v585
        %1524 = vmatprep.subr.mxu0 0.0
        %1525 = vmatpush1.msra.mxu0 %v588
        %1526 = vmatprep.subr.mxu0 0.0
        %1527 = vmatpush1.msra.mxu0 %v591
        %1528 = vmatprep.subr.mxu0 0.0
        %1529 = vmatpush1.msra.mxu0 %v594
        %1530 = vmatprep.subr.mxu0 0.0
        %1531 = vmatpush1.msra.mxu0 %v597
        %1532 = vmatprep.subr.mxu0 0.0
        %1533 = vmatpush1.msra.mxu0 %v600
        %1534 = vmatprep.mubr.f32.mxu0 %v252
        %1535 = vmatmul.mubr.f32.gmra.mrb[0].mxu0 %v309
        %v1536 = vpop.f32.mrb[0].mxu0
        %v1537 = vadd.f32 %v1462, %v1536
        %v1538 = vpop.f32.mrb[0].mxu0
        %1539 = vmatprep.mubr.f32.mxu0 %v254
        %1540 = vmatmul.mubr.f32.gmra.mrb[0].mxu0 %v310
        %v1541 = vpop.f32.mrb[0].mxu0
        %v1542 = vadd.f32 %v1467, %v1541
        %v1543 = vpop.f32.mrb[0].mxu0
        %1544 = vdwg.mxu0
        %1545 = vmatprep.subr.mxu0 0.0
        %1546 = vmatpush1.msra.mxu0 %v603
        %1547 = vmatprep.subr.mxu0 0.0
        %1548 = vmatpush1.msra.mxu0 %v606
        %1549 = vmatprep.subr.mxu0 0.0
        %1550 = vmatpush1.msra.mxu0 %v609
        %1551 = vmatprep.subr.mxu0 0.0
        %1552 = vmatpush1.msra.mxu0 %v612
        %1553 = vmatprep.subr.mxu0 0.0
        %1554 = vmatpush1.msra.mxu0 %v615
        %1555 = vmatprep.subr.mxu0 0.0
        %1556 = vmatpush1.msra.mxu0 %v618
        %1557 = vmatprep.subr.mxu0 0.0
        %1558 = vmatpush1.msra.mxu0 %v621
        %1559 = vmatprep.subr.mxu0 0.0
        %1560 = vmatpush1.msra.mxu0 %v624
        %1561 = vmatprep.subr.mxu0 0.0
        %1562 = vmatpush1.msra.mxu0 %v627
        %1563 = vmatprep.subr.mxu0 0.0
        %1564 = vmatpush1.msra.mxu0 %v630
        %1565 = vmatprep.subr.mxu0 0.0
        %1566 = vmatpush1.msra.mxu0 %v633
        %1567 = vmatprep.subr.mxu0 0.0
        %1568 = vmatpush1.msra.mxu0 %v636
        %1569 = vmatprep.subr.mxu0 0.0
        %1570 = vmatpush1.msra.mxu0 %v639
        %1571 = vmatprep.subr.mxu0 0.0
        %1572 = vmatpush1.msra.mxu0 %v642
        %1573 = vmatprep.subr.mxu0 0.0
        %1574 = vmatpush1.msra.mxu0 %v645
        %1575 = vmatprep.subr.mxu0 0.0
        %1576 = vmatpush1.msra.mxu0 %v648
        %1577 = vmatprep.subr.mxu0 0.0
        %1578 = vmatpush1.msra.mxu0 %v651
        %1579 = vmatprep.subr.mxu0 0.0
        %1580 = vmatpush1.msra.mxu0 %v654
        %1581 = vmatprep.subr.mxu0 0.0
        %1582 = vmatpush1.msra.mxu0 %v657
        %1583 = vmatprep.subr.mxu0 0.0
        %1584 = vmatpush1.msra.mxu0 %v660
        %1585 = vmatprep.subr.mxu0 0.0
        %1586 = vmatpush1.msra.mxu0 %v663
        %1587 = vmatprep.subr.mxu0 0.0
        %1588 = vmatpush1.msra.mxu0 %v666
        %1589 = vmatprep.subr.mxu0 0.0
        %1590 = vmatpush1.msra.mxu0 %v669
        %1591 = vmatprep.subr.mxu0 0.0
        %1592 = vmatpush1.msra.mxu0 %v672
        %1593 = vmatprep.subr.mxu0 0.0
        %1594 = vmatpush1.msra.mxu0 %v675
        %1595 = vmatprep.subr.mxu0 0.0
        %1596 = vmatpush1.msra.mxu0 %v678
        %1597 = vmatprep.subr.mxu0 0.0
        %1598 = vmatpush1.msra.mxu0 %v681
        %1599 = vmatprep.subr.mxu0 0.0
        %1600 = vmatpush1.msra.mxu0 %v684
        %1601 = vmatprep.subr.mxu0 0.0
        %1602 = vmatpush1.msra.mxu0 %v687
        %1603 = vmatprep.subr.mxu0 0.0
        %1604 = vmatpush1.msra.mxu0 %v690
        %1605 = vmatprep.subr.mxu0 0.0
        %1606 = vmatpush1.msra.mxu0 %v693
        %1607 = vmatprep.subr.mxu0 0.0
        %1608 = vmatpush1.msra.mxu0 %v696
        %1609 = vmatprep.mubr.f32.mxu0 %v297
        %1610 = vmatmul.mubr.f32.gmra.mrb[0].mxu0 %v311
        %v1611 = vpop.f32.mrb[0].mxu0
        %v1612 = vadd.f32 %v1537, %v1611
        %v1613 = vpop.f32.mrb[0].mxu0
        %1614 = vmatprep.mubr.f32.mxu0 %v299
        %1615 = vmatmul.mubr.f32.gmra.mrb[0].mxu0 %v312
        %v1616 = vpop.f32.mrb[0].mxu0
        %v1617 = vadd.f32 %v1542, %v1616
        %v1618 = vpop.f32.mrb[0].mxu0
        %1619 = vdwg.mxu0
        %1620 = vmatprep.subr.mxu0 0.0
        %1621 = vmatpush1.msra.mxu0 %v699
        %1622 = vmatprep.subr.mxu0 0.0
        %1623 = vmatpush1.msra.mxu0 %v702
        %1624 = vmatprep.subr.mxu0 0.0
        %1625 = vmatpush1.msra.mxu0 %v705
        %1626 = vmatprep.subr.mxu0 0.0
        %1627 = vmatpush1.msra.mxu0 %v708
        %1628 = vmatprep.subr.mxu0 0.0
        %1629 = vmatpush1.msra.mxu0 %v711
        %1630 = vmatprep.subr.mxu0 0.0
        %1631 = vmatpush1.msra.mxu0 %v714
        %1632 = vmatprep.subr.mxu0 0.0
        %1633 = vmatpush1.msra.mxu0 %v717
        %1634 = vmatprep.subr.mxu0 0.0
        %1635 = vmatpush1.msra.mxu0 %v720
        %1636 = vmatprep.subr.mxu0 0.0
        %1637 = vmatpush1.msra.mxu0 %v723
        %1638 = vmatprep.subr.mxu0 0.0
        %1639 = vmatpush1.msra.mxu0 %v726
        %1640 = vmatprep.subr.mxu0 0.0
        %1641 = vmatpush1.msra.mxu0 %v729
        %1642 = vmatprep.subr.mxu0 0.0
        %1643 = vmatpush1.msra.mxu0 %v732
        %1644 = vmatprep.subr.mxu0 0.0
        %1645 = vmatpush1.msra.mxu0 %v735
        %1646 = vmatprep.subr.mxu0 0.0
        %1647 = vmatpush1.msra.mxu0 %v738
        %1648 = vmatprep.subr.mxu0 0.0
        %1649 = vmatpush1.msra.mxu0 %v741
        %1650 = vmatprep.subr.mxu0 0.0
        %1651 = vmatpush1.msra.mxu0 %v744
        %1652 = vmatprep.subr.mxu0 0.0
        %1653 = vmatpush1.msra.mxu0 %v747
        %1654 = vmatprep.subr.mxu0 0.0
        %1655 = vmatpush1.msra.mxu0 %v750
        %1656 = vmatprep.subr.mxu0 0.0
        %1657 = vmatpush1.msra.mxu0 %v753
        %1658 = vmatprep.subr.mxu0 0.0
        %1659 = vmatpush1.msra.mxu0 %v756
        %1660 = vmatprep.subr.mxu0 0.0
        %1661 = vmatpush1.msra.mxu0 %v759
        %1662 = vmatprep.subr.mxu0 0.0
        %1663 = vmatpush1.msra.mxu0 %v762
        %1664 = vmatprep.subr.mxu0 0.0
        %1665 = vmatpush1.msra.mxu0 %v765
        %1666 = vmatprep.subr.mxu0 0.0
        %1667 = vmatpush1.msra.mxu0 %v768
        %1668 = vmatprep.subr.mxu0 0.0
        %1669 = vmatpush1.msra.mxu0 %v771
        %1670 = vmatprep.subr.mxu0 0.0
        %1671 = vmatpush1.msra.mxu0 %v774
        %1672 = vmatprep.subr.mxu0 0.0
        %1673 = vmatpush1.msra.mxu0 %v777
        %1674 = vmatprep.subr.mxu0 0.0
        %1675 = vmatpush1.msra.mxu0 %v780
        %1676 = vmatprep.subr.mxu0 0.0
        %1677 = vmatpush1.msra.mxu0 %v783
        %1678 = vmatprep.subr.mxu0 0.0
        %1679 = vmatpush1.msra.mxu0 %v786
        %1680 = vmatprep.subr.mxu0 0.0
        %1681 = vmatpush1.msra.mxu0 %v789
        %1682 = vmatprep.subr.mxu0 0.0
        %1683 = vmatpush1.msra.mxu0 %v792
        %1684 = vmatprep.mubr.f32.mxu0 %v145
        %1685 = vmatmul.mubr.f32.gmra.mrb[0].mxu0 %v298
        %v1686 = vpop.f32.mrb[0].mxu0
        %v1687 = vadd.f32 %v1612, %v1686
        %v1688 = vpop.f32.mrb[0].mxu0
        %1689 = vmatprep.mubr.f32.mxu0 %v166
        %1690 = vmatmul.mubr.f32.gmra.mrb[0].mxu0 %v300
        %v1691 = vpop.f32.mrb[0].mxu0
        %v1692 = vadd.f32 %v1617, %v1691
        %v1693 = vpop.f32.mrb[0].mxu0
        %1694 = vdwg.mxu0
        %1695 = vmatprep.subr.mxu0 0.0
        %1696 = vmatpush1.msra.mxu0 %v795
        %1697 = vmatprep.subr.mxu0 0.0
        %1698 = vmatpush1.msra.mxu0 %v798
        %1699 = vmatprep.subr.mxu0 0.0
        %1700 = vmatpush1.msra.mxu0 %v801
        %1701 = vmatprep.subr.mxu0 0.0
        %1702 = vmatpush1.msra.mxu0 %v804
        %1703 = vmatprep.subr.mxu0 0.0
        %1704 = vmatpush1.msra.mxu0 %v807
        %1705 = vmatprep.subr.mxu0 0.0
        %1706 = vmatpush1.msra.mxu0 %v810
        %1707 = vmatprep.subr.mxu0 0.0
        %1708 = vmatpush1.msra.mxu0 %v813
        %1709 = vmatprep.subr.mxu0 0.0
        %1710 = vmatpush1.msra.mxu0 %v816
        %1711 = vmatprep.subr.mxu0 0.0
        %1712 = vmatpush1.msra.mxu0 %v819
        %1713 = vmatprep.subr.mxu0 0.0
        %1714 = vmatpush1.msra.mxu0 %v822
        %1715 = vmatprep.subr.mxu0 0.0
        %1716 = vmatpush1.msra.mxu0 %v825
        %1717 = vmatprep.subr.mxu0 0.0
        %1718 = vmatpush1.msra.mxu0 %v828
        %1719 = vmatprep.subr.mxu0 0.0
        %1720 = vmatpush1.msra.mxu0 %v831
        %1721 = vmatprep.subr.mxu0 0.0
        %1722 = vmatpush1.msra.mxu0 %v834
        %1723 = vmatprep.subr.mxu0 0.0
        %1724 = vmatpush1.msra.mxu0 %v837
        %1725 = vmatprep.subr.mxu0 0.0
        %1726 = vmatpush1.msra.mxu0 %v840
        %1727 = vmatprep.subr.mxu0 0.0
        %1728 = vmatpush1.msra.mxu0 %v843
        %1729 = vmatprep.subr.mxu0 0.0
        %1730 = vmatpush1.msra.mxu0 %v846
        %1731 = vmatprep.subr.mxu0 0.0
        %1732 = vmatpush1.msra.mxu0 %v849
        %1733 = vmatprep.subr.mxu0 0.0
        %1734 = vmatpush1.msra.mxu0 %v852
        %1735 = vmatprep.subr.mxu0 0.0
        %1736 = vmatpush1.msra.mxu0 0.0
        %1737 = vmatprep.subr.mxu0 0.0
        %1738 = vmatpush1.msra.mxu0 0.0
        %1739 = vmatprep.subr.mxu0 0.0
        %1740 = vmatpush1.msra.mxu0 0.0
        %1741 = vmatprep.subr.mxu0 0.0
        %1742 = vmatpush1.msra.mxu0 0.0
        %1743 = vmatprep.subr.mxu0 0.0
        %1744 = vmatpush1.msra.mxu0 0.0
        %1745 = vmatprep.subr.mxu0 0.0
        %1746 = vmatpush1.msra.mxu0 0.0
        %1747 = vmatprep.subr.mxu0 0.0
        %1748 = vmatpush1.msra.mxu0 0.0
        %1749 = vmatprep.subr.mxu0 0.0
        %1750 = vmatpush1.msra.mxu0 0.0
        %1751 = vmatprep.subr.mxu0 0.0
        %1752 = vmatpush1.msra.mxu0 0.0
        %1753 = vmatprep.subr.mxu0 0.0
        %1754 = vmatpush1.msra.mxu0 0.0
        %1755 = vmatprep.subr.mxu0 0.0
        %1756 = vmatpush1.msra.mxu0 0.0
        %1757 = vmatprep.subr.mxu0 0.0
        %1758 = vmatpush1.msra.mxu0 0.0
        %1759 = vmatprep.mubr.f32.mxu0 %v853
        %1760 = vmatmul.mubr.f32.gmra.mrb[0].mxu0 %v146
        %v1761 = vpop.f32.mrb[0].mxu0
        %v1762 = vadd.f32 %v1687, %v1761
        %v1763 = vpop.f32.mrb[0].mxu0
        %1764 = vmatprep.mubr.f32.mxu0 %v856
        %1765 = vmatmul.mubr.f32.gmra.mrb[0].mxu0 %v167
        %v1766 = vpop.f32.mrb[0].mxu0
        %v1767 = vadd.f32 %v1692, %v1766
        %v1768 = vpop.f32.mrb[0].mxu0
        %1769 = vdwg.mxu0
        %1770 = vst [vmem:[%s136] sm:$0xff] %v1310
        %1771 = vst [vmem:[%s136 + $0x8] sm:$0xff] %v1312
        %1772 = vst.msk [vmem:[%s136 + $0x10] sm:$0xff] %vm206, %v1762
        %1773 = vst [vmem:[%s136 + $0x18] sm:$0xff] %v1316
        %1774 = vst [vmem:[%s136 + $0x20] sm:$0xff] %v1318
        %1775 = vst.msk [vmem:[%s136 + $0x28] sm:$0xff] %vm206, %v1767
        %s1776 = sand.u32 %s71, 1
        %s1777 = scalar_lea.sflag [#allocation3], %s1776
        %s1778 = sand.u32 %s71, 1
        %s1779 = smul.addr %s1778, 48
        %s1780 = scalar_lea.vmem [#allocation2], %s1779
        // Predicated region
        $region29: #{tpu_custom_call.1} parent=27 // pred_check
          %p1781 = pneg %p81
        $region30: #{tpu_custom_call.1} parent=27 // pred_check_branch
          %1783 = sbr.rel (%p1781) target = $region32
        $region31: #{tpu_custom_call.1} parent=27 // pred_region
          %s1785 = ssub.s32 768, 768
          %1786 = vsyncadd %s1777, %s1785
          %s1787 = smul.addr %s16, 6
          %s1788 = smul.addr %s1787, 128
          %s1789 = scalar_lea.hbm %s2, %s1788
          %s1790 = sshll.u32 %s1780, 4
          %s1791 = int_to_ptr.vmem [resolvable:$true] %s1790
          %1796 = dma.vmem_to_hbm [thread:$0]  %s1791, 768, %s1789, %s1777, 384, 384, 24
        $region32: #{tpu_custom_call.1} parent=27 // pred_fallthru
          _
      $region28: #{tpu_custom_call.1} parent=5 // pred_fallthru
        _
      %p1797 = scmp.le.s32.totalorder 2, %s11
      // Predicated region
      $region33: #{tpu_custom_call.1} parent=5 // pred_check
        %p1798 = pneg %p1797
      $region34: #{tpu_custom_call.1} parent=5 // pred_check_branch
        %1800 = sbr.rel (%p1798) target = $region36
      $region35: #{tpu_custom_call.1} parent=5 // pred_region
        %s1801 = ssub.s32 %s11, 2
        // Predicated region
        $region37: #{tpu_custom_call.1} parent=35 // pred_check
          %p1802 = pneg %p87
        $region38: #{tpu_custom_call.1} parent=35 // pred_check_branch
          %1804 = sbr.rel (%p1802) target = $region40
        $region39: #{tpu_custom_call.1} parent=35 // pred_region
          %s1805 = sand.u32 %s72, 1
          %s1806 = scalar_lea.sflag [#allocation3], %s1805
          %s1807 = sand.u32 %s72, 1
          %s1808 = smul.addr %s1807, 48
          %s1809 = scalar_lea.vmem [#allocation2], %s1808
          %1810 = dma.done %s1806, 768
        $region40: #{tpu_custom_call.1} parent=35 // pred_fallthru
          _
      $region36: #{tpu_custom_call.1} parent=5 // pred_fallthru
        _
    $region6: #{tpu_custom_call.1} parent=1 // loop_footer
      %s15 = sadd.s32 1, %s11
    $region7: #{tpu_custom_call.1} parent=1 // loop_footer_branch
      %10 = sbr.rel target = $region3
    $region8: #{tpu_custom_call.1} parent=1 // loop_exit
      _
    %1811 = vsyncpa [#allocation3], 1
    %s1812 = scalar_lea.sflag [#allocation3], 1
    %1813 = vsyncpa %s1812, 1

// kernel: tpu_custom_call.1
$region0: #{tpu_custom_call.1}
  #allocation0 [shape = 'u32[]', space=smem, size = 0x4, offset = 0x4, fixed_abs, tag = 'smem constant byte address 0x4 - core index']
  #allocation1 [shape = 'u32[144,128]{1,0:T(1,128)}', space=vmem, size = 0x12000, scoped, tag = 'internal scratch']
  %s0 = inlined_call_operand.vmem [shape: f32[2,24,288], index: 0, kind: input, shape index: {}]
  %s1 = inlined_call_operand.vmem [shape: f32[1440,288], index: 1, kind: input, shape index: {}]
  %s2 = inlined_call_operand.hbm [shape: f32[2,16,288], index: 2, kind: output, shape index: {}]
  %s3 = sld [smem:[#allocation0]]
  $region41: #{tpu_custom_call.1} parent=0
    _
  %s5 = ssub.s32 1, %s3
  %s6 = scalar_select 0, %s5, %s3
  $region1: #{tpu_custom_call.1} parent=0
    #allocation2 [shape = 'u8[49152]{0}', space=vmem, size = 0xc000, scoped, tag = 'output window, operand 0']
    #allocation3 [shape = 's32[2]{0}', space=sflag, size = 0x8, scoped, tag = 'scoped memory for tpu_custom_call.1']
    %7 = vsyncpa [#allocation3], 0
    %s8 = scalar_lea.sflag [#allocation3], 1
    %9 = vsyncpa %s8, 0
    loop: start=0, step=1, limit=4
    $region2: #{tpu_custom_call.1} parent=1 // loop_pre_header
      _
    $region3: #{tpu_custom_call.1} parent=1 // loop_header
      %s11 = sphi 0, %s15
      %p12 = scmp.ge.s32.totalorder %s11, 4
      %s21 = sphi 0, %s23
      %s24 = sphi 0, %s21
      %s25 = sphi 0, %s24
      %s41 = sphi 0, %s25
      %s45 = sphi 0, %s45
      %s47 = sphi 0, %s45
      %s48 = sphi 0, %s47
      %s62 = sphi 0, %s48
      %s68 = sphi 0, %s70
      %s71 = sphi 0, %s68
      %s72 = sphi 0, %s71
      %s88 = sphi 0, %s72
    $region4: #{tpu_custom_call.1} parent=1 // loop_header_branch
      %14 = sbr.rel (%p12) target = $region8
    $region5: #{tpu_custom_call.1} parent=1 // loop_body
      %s16 = ssub.s32 %s11, 1
      %s17 = ssub.s32 %s11, 2
      %s18 = sadd.s32 %s11, 1
      %s19 = ssub.s32 %s11, %s18
      %p20 = scmp.eq.s32.totalorder %s19, 0
      %s22 = sadd.s32 %s21, 1
      %s23 = scalar_select %p20, %s21, %s22
      %p26 = pneg %p20
      %p27 = scmp.eq.s32.totalorder %s11, 1
      %p28 = por %p26, %p27
      %p29 = scmp.ne.s32.totalorder %s21, %s24
      %p30 = scmp.eq.s32.totalorder %s11, 0
      %p31 = por %p29, %p30
      %p32 = scmp.ne.s32.totalorder %s21, %s24
      %p33 = scmp.eq.s32.totalorder %s16, 1
      %p34 = por %p32, %p33
      %p35 = scmp.ne.s32.totalorder %s24, %s25
      %p36 = scmp.eq.s32.totalorder %s16, 0
      %p37 = por %p35, %p36
      %p38 = scmp.ne.s32.totalorder %s24, %s25
      %p39 = scmp.eq.s32.totalorder %s17, 1
      %p40 = por %p38, %p39
      %p42 = scmp.ne.s32.totalorder %s25, %s41
      %p43 = scmp.eq.s32.totalorder %s17, 0
      %p44 = por %p42, %p43
      %s46 = sadd.s32 %s45, 1
      %p49 = scmp.eq.s32.totalorder %s11, 1
      %p50 = scmp.ne.s32.totalorder %s45, %s47
      %p51 = scmp.eq.s32.totalorder %s11, 0
      %p52 = por %p50, %p51
      %p53 = scmp.ne.s32.totalorder %s45, %s47
      %p54 = scmp.eq.s32.totalorder %s16, 1
      %p55 = por %p53, %p54
      %p56 = scmp.ne.s32.totalorder %s47, %s48
      %p57 = scmp.eq.s32.totalorder %s16, 0
      %p58 = por %p56, %p57
      %p59 = scmp.ne.s32.totalorder %s47, %s48
      %p60 = scmp.eq.s32.totalorder %s17, 1
      %p61 = por %p59, %p60
      %p63 = scmp.ne.s32.totalorder %s48, %s62
      %p64 = scmp.eq.s32.totalorder %s17, 0
      %p65 = por %p63, %p64
      %s66 = ssub.s32 %s11, %s18
      %p67 = scmp.eq.s32.totalorder %s66, 0
      %s69 = sadd.s32 %s68, 1
      %s70 = scalar_select %p67, %s68, %s69
      %p73 = pneg %p67
      %p74 = scmp.eq.s32.totalorder %s11, 1
      %p75 = por %p73, %p74
      %p76 = scmp.ne.s32.totalorder %s68, %s71
      %p77 = scmp.eq.s32.totalorder %s11, 0
      %p78 = por %p76, %p77
      %p79 = scmp.ne.s32.totalorder %s68, %s71
      %p80 = scmp.eq.s32.totalorder %s16, 1
      %p81 = por %p79, %p80
      %p82 = scmp.ne.s32.totalorder %s71, %s72
      %p83 = scmp.eq.s32.totalorder %s16, 0
      %p84 = por %p82, %p83
      %p85 = scmp.ne.s32.totalorder %s71, %s72
      %p86 = scmp.eq.s32.totalorder %s17, 1
      %p87 = por %p85, %p86
      %p89 = scmp.ne.s32.totalorder %s72, %s88
      %p90 = scmp.eq.s32.totalorder %s17, 0
      %p91 = por %p89, %p90
      %p92 = scmp.le.s32.totalorder 1, %s11
      %p93 = scmp.lt.s32.totalorder %s11, 3
      %p94 = pnand %p92, %p93
      %p95 = pneg %p94
      // Predicated region
      $region9: #{tpu_custom_call.1} parent=5 // pred_check
        _
      $region10: #{tpu_custom_call.1} parent=5 // pred_check_branch
        %97 = sbr.rel (%p94) target = $region12
      $region11: #{tpu_custom_call.1} parent=5 // pred_region
        %s98 = ssub.s32 %s11, 1
        // Predicated region
        $region13: #{tpu_custom_call.1} parent=11 // pred_check
          %p99 = pneg %p58
        $region14: #{tpu_custom_call.1} parent=11 // pred_check_branch
          %101 = sbr.rel (%p99) target = $region16
        $region15: #{tpu_custom_call.1} parent=11 // pred_region
          _
        $region16: #{tpu_custom_call.1} parent=11 // pred_fallthru
          _
      $region12: #{tpu_custom_call.1} parent=5 // pred_fallthru
        _
      %p102 = scmp.lt.s32.totalorder %s11, 2
      // Predicated region
      $region17: #{tpu_custom_call.1} parent=5 // pred_check
        %p103 = pneg %p102
      $region18: #{tpu_custom_call.1} parent=5 // pred_check_branch
        %105 = sbr.rel (%p103) target = $region20
      $region19: #{tpu_custom_call.1} parent=5 // pred_region
        // Predicated region
        $region21: #{tpu_custom_call.1} parent=19 // pred_check
          %p106 = pneg %p31
        $region22: #{tpu_custom_call.1} parent=19 // pred_check_branch
          %108 = sbr.rel (%p106) target = $region24
        $region23: #{tpu_custom_call.1} parent=19 // pred_region
          %p109 = scmp.lt.s32.totalorder %s11, 1
          %s110 = scalar_select %p109, %s11, 1
          %s111 = smul.addr %s110, 9
          %s112 = smul.addr %s111, 8
          %s113 = scalar_lea.vmem %s0, %s112
        $region24: #{tpu_custom_call.1} parent=19 // pred_fallthru
          _
      $region20: #{tpu_custom_call.1} parent=5 // pred_fallthru
        _
      %p114 = scmp.le.s32.totalorder 1, %s11
      %p115 = scmp.lt.s32.totalorder %s11, 3
      %p116 = pnand %p114, %p115
      %p117 = pneg %p116
      // Predicated region
      $region25: #{tpu_custom_call.1} parent=5 // pred_check
        _
      $region26: #{tpu_custom_call.1} parent=5 // pred_check_branch
        %119 = sbr.rel (%p116) target = $region28
      $region27: #{tpu_custom_call.1} parent=5 // pred_region
        %s120 = ssub.s32 %s11, 1
        %p121 = scmp.lt.s32.totalorder %s16, 1
        %s122 = scalar_select %p121, %s16, 1
        %s123 = smul.addr %s122, 9
        %s124 = smul.addr %s123, 8
        %s125 = scalar_lea.vmem %s0, %s124
        %p126 = pneg %p37
        %p127 = pneg %p34
        %p128 = pneg %p58
        %p129 = pneg %p55
        %p130 = pneg %p84
        %p131 = pneg %p81
        %s132 = sand.u32 %s71, 1
        %s133 = scalar_lea.sflag [#allocation3], %s132
        %s134 = sand.u32 %s71, 1
        %s135 = smul.addr %s134, 48
        %s136 = scalar_lea.vmem [#allocation2], %s135
        %p137 = scmp.lt.s32.totalorder %s16, 1
        %s138 = scalar_select %p137, %s16, 1
        %s139 = smul.addr %s138, 9
        %s140 = smul.addr %s139, 8
        %s141 = scalar_lea.vmem %s0, %s140
        %v142 = vld [vmem:[%s141] sm:$0xff]
        %v143 = vld [vmem:[%s141 + $0x8] sm:$0xff]
        %v144 = vld [vmem:[%s141 + $0x10] sm:$0xff]
        %v145 = vld [vmem:[%s141 + $0x18] sm:$0xff]
        %v146 = vld [vmem:[%s141 + $0x20] sm:$0xff]
        %v147 = vld [vmem:[%s141 + $0x28] sm:$0xff]
        %v148 = vld [vmem:[%s141] sm:$0xfc]
        %v149 = vld [vmem:[%s141 + $0x8] sm:$0xfc]
        %v150 = vld [vmem:[%s141 + $0x10] sm:$0xfc]
        %v151 = vld [vmem:[%s141 + $0x30] sm:$0x3]
        %v152 = vld [vmem:[%s141 + $0x38] sm:$0x3]
        %v153 = vld [vmem:[%s141 + $0x40] sm:$0x3]
        %v154 = vld [vmem:[%s141] sm:$0xf0]
        %v155 = vld [vmem:[%s141 + $0x8] sm:$0xf0]
        %v156 = vld [vmem:[%s141 + $0x10] sm:$0xf0]
        %v157 = vld [vmem:[%s141 + $0x30] sm:$0xf]
        %v158 = vld [vmem:[%s141 + $0x38] sm:$0xf]
        %v159 = vld [vmem:[%s141 + $0x40] sm:$0xf]
        %v160 = vld [vmem:[%s141] sm:$0xc0]
        %v161 = vld [vmem:[%s141 + $0x8] sm:$0xc0]
        %v162 = vld [vmem:[%s141 + $0x10] sm:$0xc0]
        %v163 = vld [vmem:[%s141 + $0x30] sm:$0x3f]
        %v164 = vld [vmem:[%s141 + $0x38] sm:$0x3f]
        %v165 = vld [vmem:[%s141 + $0x40] sm:$0x3f]
        %v166 = vld [vmem:[%s141 + $0x30] sm:$0xff]
        %v167 = vld [vmem:[%s141 + $0x38] sm:$0xff]
        %v168 = vld [vmem:[%s141 + $0x40] sm:$0xff]
        %v169 = vld [vmem:[%s1] sm:$0xff]
        %v170 = vld [vmem:[%s1 + $0x8] sm:$0xff]
        %v171 = vld [vmem:[%s1 + $0x10] sm:$0xff]
        %v172 = vld [vmem:[%s1 + $0x18] sm:$0xff]
        %v173 = vld [vmem:[%s1 + $0x20] sm:$0xff]
        %v174 = vld [vmem:[%s1 + $0x28] sm:$0xff]
        %v175 = vld [vmem:[%s1 + $0x30] sm:$0xff]
        %v176 = vld [vmem:[%s1 + $0x38] sm:$0xff]
        %v177 = vld [vmem:[%s1 + $0x40] sm:$0xff]
        %v178 = vld [vmem:[%s1 + $0x48] sm:$0xff]
        %v179 = vld [vmem:[%s1 + $0x50] sm:$0xff]
        %v180 = vld [vmem:[%s1 + $0x58] sm:$0xff]
        %v181 = vld [vmem:[%s1 + $0x60] sm:$0xff]
        %v182 = vld [vmem:[%s1 + $0x68] sm:$0xff]
        %v183 = vld [vmem:[%s1 + $0x70] sm:$0xff]
        %v184 = vld [vmem:[%s1 + $0x78] sm:$0xff]
        %v185 = vld [vmem:[%s1 + $0x80] sm:$0xff]
        %v186 = vld [vmem:[%s1 + $0x88] sm:$0xff]
        %v187 = vld [vmem:[%s1 + $0x90] sm:$0xff]
        %v188 = vld [vmem:[%s1 + $0x98] sm:$0xff]
        %v189 = vld [vmem:[%s1 + $0xa0] sm:$0xff]
        %v190 = vld [vmem:[%s1 + $0xa8] sm:$0xff]
        %v191 = vld [vmem:[%s1 + $0xb0] sm:$0xff]
        %v192 = vld [vmem:[%s1 + $0xb8] sm:$0xff]
        %v193 = vld [vmem:[%s1 + $0xc0] sm:$0xff]
        %v194 = vld [vmem:[%s1 + $0xc8] sm:$0xff]
        %v195 = vld [vmem:[%s1 + $0xd0] sm:$0xff]
        %v196 = vld [vmem:[%s1 + $0xd8] sm:$0xff]
        %v197 = vld [vmem:[%s1 + $0xe0] sm:$0xff]
        %v198 = vld [vmem:[%s1 + $0xe8] sm:$0xff]
        %v199 = vld [vmem:[%s1 + $0xf0] sm:$0xff]
        %v200 = vld [vmem:[%s1 + $0xf8] sm:$0xff]
        %v201 = vld [vmem:[%s1 + $0x100] sm:$0xff]
        %v202 = vld [vmem:[%s1 + $0x108] sm:$0xff]
        %v203 = vld [vmem:[%s1 + $0x110] sm:$0xff]
        %v204 = vld [vmem:[%s1 + $0x118] sm:$0xff]
        %v205 = vld [vmem:[%s1 + $0x120] sm:$0xff]
        %v206 = vld [vmem:[%s1 + $0x128] sm:$0xff]
        %v207 = vld [vmem:[%s1 + $0x130] sm:$0xff]
        %v208 = vld [vmem:[%s1 + $0x138] sm:$0xff]
        %v209 = vld [vmem:[%s1 + $0x140] sm:$0xff]
        %v210 = vld [vmem:[%s1 + $0x148] sm:$0xff]
        %v211 = vld [vmem:[%s1 + $0x150] sm:$0xff]
        %v212 = vld [vmem:[%s1 + $0x158] sm:$0xff]
        %v213 = vld [vmem:[%s1 + $0x160] sm:$0xff]
        %v214 = vld [vmem:[%s1 + $0x168] sm:$0xff]
        %v215 = vld [vmem:[%s1 + $0x170] sm:$0xff]
        %v216 = vld [vmem:[%s1 + $0x178] sm:$0xff]
        %v217 = vld [vmem:[%s1 + $0x180] sm:$0xff]
        %v218 = vld [vmem:[%s1 + $0x188] sm:$0xff]
        %v219 = vld [vmem:[%s1 + $0x190] sm:$0xff]
        %v220 = vld [vmem:[%s1 + $0x198] sm:$0xff]
        %v221 = vld [vmem:[%s1 + $0x1a0] sm:$0xff]
        %v222 = vld [vmem:[%s1 + $0x1a8] sm:$0xff]
        %v223 = vld [vmem:[%s1 + $0x1b0] sm:$0xff]
        %v224 = vld [vmem:[%s1 + $0x1b8] sm:$0xff]
        %v225 = vld [vmem:[%s1 + $0x1c0] sm:$0xff]
        %v226 = vld [vmem:[%s1 + $0x1c8] sm:$0xff]
        %v227 = vld [vmem:[%s1 + $0x1d0] sm:$0xff]
        %v228 = vld [vmem:[%s1 + $0x1d8] sm:$0xff]
        %v229 = vld [vmem:[%s1 + $0x1e0] sm:$0xff]
        %v230 = vld [vmem:[%s1 + $0x1e8] sm:$0xff]
        %v231 = vld [vmem:[%s1 + $0x1f0] sm:$0xff]
        %v232 = vld [vmem:[%s1 + $0x1f8] sm:$0xff]
        %v233 = vld [vmem:[%s1 + $0x200] sm:$0xff]
        %v234 = vld [vmem:[%s1 + $0x208] sm:$0xff]
        %v235 = vld [vmem:[%s1 + $0x210] sm:$0xff]
        %v236 = vld [vmem:[%s1 + $0x218] sm:$0xff]
        %v237 = vld [vmem:[%s1 + $0x220] sm:$0xff]
        %v238 = vld [vmem:[%s1 + $0x228] sm:$0xff]
        %v239 = vld [vmem:[%s1 + $0x230] sm:$0xff]
        %v240 = vld [vmem:[%s1 + $0x238] sm:$0xff]
        %v241 = vld [vmem:[%s1 + $0x240] sm:$0xff]
        %v242 = vld [vmem:[%s1 + $0x248] sm:$0xff]
        %v243 = vld [vmem:[%s1 + $0x250] sm:$0xff]
        %v244 = vld [vmem:[%s1 + $0x258] sm:$0xff]
        %v245 = vld [vmem:[%s1 + $0x260] sm:$0xff]
        %v246 = vld [vmem:[%s1 + $0x268] sm:$0xff]
        %v247 = vld [vmem:[%s1 + $0x270] sm:$0xff]
        %v248 = vld [vmem:[%s1 + $0x278] sm:$0xff]
        %v249 = vld [vmem:[%s1 + $0x280] sm:$0xff]
        %v250 = vld [vmem:[%s1 + $0x288] sm:$0xff]
        %v251 = vld [vmem:[%s1 + $0x290] sm:$0xff]
        %v252 = vld [vmem:[%s1 + $0x298] sm:$0xff]
        %v253 = vld [vmem:[%s1 + $0x2a0] sm:$0xff]
        %v254 = vld [vmem:[%s1 + $0x2a8] sm:$0xff]
        %v255 = vld [vmem:[%s1 + $0x2b0] sm:$0xff]
        %v256 = vld [vmem:[%s1 + $0x2b8] sm:$0xff]
        %v257 = vld [vmem:[%s1 + $0x2c0] sm:$0xff]
        %v258 = vld [vmem:[%s1 + $0x2c8] sm:$0xff]
        %v259 = vld [vmem:[%s1 + $0x2d0] sm:$0xff]
        %v260 = vld [vmem:[%s1 + $0x2d8] sm:$0xff]
        %v261 = vld [vmem:[%s1 + $0x2e0] sm:$0xff]
        %v262 = vld [vmem:[%s1 + $0x2e8] sm:$0xff]
        %v263 = vld [vmem:[%s1 + $0x2f0] sm:$0xff]
        %v264 = vld [vmem:[%s1 + $0x2f8] sm:$0xff]
        %v265 = vld [vmem:[%s1 + $0x300] sm:$0xff]
        %v266 = vld [vmem:[%s1 + $0x308] sm:$0xff]
        %v267 = vld [vmem:[%s1 + $0x310] sm:$0xff]
        %v268 = vld [vmem:[%s1 + $0x318] sm:$0xff]
        %v269 = vld [vmem:[%s1 + $0x320] sm:$0xff]
        %v270 = vld [vmem:[%s1 + $0x328] sm:$0xff]
        %v271 = vld [vmem:[%s1 + $0x330] sm:$0xff]
        %v272 = vld [vmem:[%s1 + $0x338] sm:$0xff]
        %v273 = vld [vmem:[%s1 + $0x340] sm:$0xff]
        %v274 = vld [vmem:[%s1 + $0x348] sm:$0xff]
        %v275 = vld [vmem:[%s1 + $0x350] sm:$0xff]
        %v276 = vld [vmem:[%s1 + $0x358] sm:$0xff]
        %v277 = vld [vmem:[%s1 + $0x360] sm:$0xff]
        %v278 = vld [vmem:[%s1 + $0x368] sm:$0xff]
        %v279 = vld [vmem:[%s1 + $0x370] sm:$0xff]
        %v280 = vld [vmem:[%s1 + $0x378] sm:$0xff]
        %v281 = vld [vmem:[%s1 + $0x380] sm:$0xff]
        %v282 = vld [vmem:[%s1 + $0x388] sm:$0xff]
        %v283 = vld [vmem:[%s1 + $0x390] sm:$0xff]
        %v284 = vld [vmem:[%s1 + $0x398] sm:$0xff]
        %v285 = vld [vmem:[%s1 + $0x3a0] sm:$0xff]
        %v286 = vld [vmem:[%s1 + $0x3a8] sm:$0xff]
        %v287 = vld [vmem:[%s1 + $0x3b0] sm:$0xff]
        %v288 = vld [vmem:[%s1 + $0x3b8] sm:$0xff]
        %v289 = vld [vmem:[%s1 + $0x3c0] sm:$0xff]
        %v290 = vld [vmem:[%s1 + $0x3c8] sm:$0xff]
        %v291 = vld [vmem:[%s1 + $0x3d0] sm:$0xff]
        %v292 = vld [vmem:[%s1 + $0x3d8] sm:$0xff]
        %v293 = vld [vmem:[%s1 + $0x3e0] sm:$0xff]
        %v294 = vld [vmem:[%s1 + $0x3e8] sm:$0xff]
        %v295 = vld [vmem:[%s1 + $0x3f0] sm:$0xff]
        %v296 = vld [vmem:[%s1 + $0x3f8] sm:$0xff]
        %v297 = vld [vmem:[%s1 + $0x400] sm:$0xff]
        %v298 = vld [vmem:[%s1 + $0x408] sm:$0xff]
        %v299 = vld [vmem:[%s1 + $0x410] sm:$0xff]
        %v300 = vld [vmem:[%s1 + $0x418] sm:$0xff]
        %v301 = vld [vmem:[%s1 + $0x420] sm:$0xff]
        %v302 = vld [vmem:[%s1 + $0x428] sm:$0xff]
        %v303 = vld [vmem:[%s1 + $0x430] sm:$0xff]
        %v304 = vld [vmem:[%s1 + $0x438] sm:$0xff]
        %v305 = vld [vmem:[%s1 + $0x440] sm:$0xff]
        %v306 = vld [vmem:[%s1 + $0x448] sm:$0xff]
        %v307 = vld [vmem:[%s1 + $0x450] sm:$0xff]
        %v308 = vld [vmem:[%s1 + $0x458] sm:$0xff]
        %v309 = vld [vmem:[%s1 + $0x460] sm:$0xff]
        %v310 = vld [vmem:[%s1 + $0x468] sm:$0xff]
        %v311 = vld [vmem:[%s1 + $0x470] sm:$0xff]
        %v312 = vld [vmem:[%s1 + $0x478] sm:$0xff]
        %v313 = vld [vmem:[%s1 + $0x480] sm:$0xff]
        %v314 = vld [vmem:[%s1 + $0x488] sm:$0xff]
        %v315 = vld [vmem:[%s1 + $0x490] sm:$0xff]
        %v316 = vld [vmem:[%s1 + $0x498] sm:$0xff]
        %v317 = vld [vmem:[%s1 + $0x4a0] sm:$0xff]
        %v318 = vld [vmem:[%s1 + $0x4a8] sm:$0xff]
        %v319 = vld [vmem:[%s1 + $0x4b0] sm:$0xff]
        %v320 = vld [vmem:[%s1 + $0x4b8] sm:$0xff]
        %v321 = vld [vmem:[%s1 + $0x4c0] sm:$0xff]
        %v322 = vld [vmem:[%s1 + $0x4c8] sm:$0xff]
        %v323 = vld [vmem:[%s1 + $0x4d0] sm:$0xff]
        %v324 = vld [vmem:[%s1 + $0x4d8] sm:$0xff]
        %v325 = vld [vmem:[%s1 + $0x4e0] sm:$0xff]
        %v326 = vld [vmem:[%s1 + $0x4e8] sm:$0xff]
        %v327 = vld [vmem:[%s1 + $0x4f0] sm:$0xff]
        %v328 = vld [vmem:[%s1 + $0x4f8] sm:$0xff]
        %v329 = vld [vmem:[%s1 + $0x500] sm:$0xff]
        %v330 = vld [vmem:[%s1 + $0x508] sm:$0xff]
        %v331 = vld [vmem:[%s1 + $0x510] sm:$0xff]
        %v332 = vld [vmem:[%s1 + $0x518] sm:$0xff]
        %v333 = vld [vmem:[%s1 + $0x520] sm:$0xff]
        %v334 = vld [vmem:[%s1 + $0x528] sm:$0xff]
        %v335 = vld [vmem:[%s1 + $0x530] sm:$0xff]
        %v336 = vld [vmem:[%s1 + $0x538] sm:$0xff]
        %v337 = vld [vmem:[%s1 + $0x540] sm:$0xff]
        %v338 = vld [vmem:[%s1 + $0x548] sm:$0xff]
        %v339 = vld [vmem:[%s1 + $0x550] sm:$0xff]
        %v340 = vld [vmem:[%s1 + $0x558] sm:$0xff]
        %v341 = vld [vmem:[%s1 + $0x560] sm:$0xff]
        %v342 = vld [vmem:[%s1 + $0x568] sm:$0xff]
        %v343 = vld [vmem:[%s1 + $0x570] sm:$0xff]
        %v344 = vld [vmem:[%s1 + $0x578] sm:$0xff]
        %v345 = vld [vmem:[%s1 + $0x580] sm:$0xff]
        %v346 = vld [vmem:[%s1 + $0x588] sm:$0xff]
        %v347 = vld [vmem:[%s1 + $0x590] sm:$0xff]
        %v348 = vld [vmem:[%s1 + $0x598] sm:$0xff]
        %v349 = vld [vmem:[%s1 + $0x5a0] sm:$0xff]
        %v350 = vld [vmem:[%s1 + $0x5a8] sm:$0xff]
        %v351 = vld [vmem:[%s1 + $0x5b0] sm:$0xff]
        %v352 = vld [vmem:[%s1 + $0x5b8] sm:$0xff]
        %v353 = vld [vmem:[%s1 + $0x5c0] sm:$0xff]
        %v354 = vld [vmem:[%s1 + $0x5c8] sm:$0xff]
        %v355 = vld [vmem:[%s1 + $0x5d0] sm:$0xff]
        %v356 = vld [vmem:[%s1 + $0x5d8] sm:$0xff]
        %v357 = vld [vmem:[%s1 + $0x5e0] sm:$0xff]
        %v358 = vld [vmem:[%s1 + $0x5e8] sm:$0xff]
        %v359 = vld [vmem:[%s1 + $0x5f0] sm:$0xff]
        %v360 = vld [vmem:[%s1 + $0x5f8] sm:$0xff]
        %v361 = vld [vmem:[%s1 + $0x600] sm:$0xff]
        %v362 = vld [vmem:[%s1 + $0x608] sm:$0xff]
        %v363 = vld [vmem:[%s1 + $0x610] sm:$0xff]
        %v364 = vld [vmem:[%s1 + $0x618] sm:$0xff]
        %v365 = vld [vmem:[%s1 + $0x620] sm:$0xff]
        %v366 = vld [vmem:[%s1 + $0x628] sm:$0xff]
        %v367 = vld [vmem:[%s1 + $0x630] sm:$0xff]
        %v368 = vld [vmem:[%s1 + $0x638] sm:$0xff]
        %v369 = vld [vmem:[%s1 + $0x640] sm:$0xff]
        %v370 = vld [vmem:[%s1 + $0x648] sm:$0xff]
        %v371 = vld [vmem:[%s1 + $0x650] sm:$0xff]
        %v372 = vld [vmem:[%s1 + $0x658] sm:$0xff]
        %v373 = vld [vmem:[%s1 + $0x660] sm:$0xff]
        %v374 = vld [vmem:[%s1 + $0x668] sm:$0xff]
        %v375 = vld [vmem:[%s1 + $0x670] sm:$0xff]
        %v376 = vld [vmem:[%s1 + $0x678] sm:$0xff]
        %v377 = vld [vmem:[%s1 + $0x680] sm:$0xff]
        %v378 = vld [vmem:[%s1 + $0x688] sm:$0xff]
        %v379 = vld [vmem:[%s1 + $0x690] sm:$0xff]
        %v380 = vld [vmem:[%s1 + $0x698] sm:$0xff]
        %v381 = vld [vmem:[%s1 + $0x6a0] sm:$0xff]
        %v382 = vld [vmem:[%s1 + $0x6a8] sm:$0xff]
        %v383 = vld [vmem:[%s1 + $0x6b0] sm:$0xff]
        %v384 = vld [vmem:[%s1 + $0x6b8] sm:$0xff]
        %vm394 = vcmask 1045504
        %v395 = vrot.slane %v148, 2
        %v396 = vrot.slane %v145, 2
        %v397 = vsel %vm394, %v395, %v396
        %v398 = vrot.slane %v149, 2
        %v399 = vrot.slane %v146, 2
        %v400 = vsel %vm394, %v398, %v399
        %v401 = vrot.slane %v150, 2
        %v402 = vrot.slane %v147, 2
        %v403 = vsel %vm394, %v401, %v402
        %v404 = vrot.slane %v151, 2
        %v405 = vsel %vm394, %v396, %v404
        %v406 = vrot.slane %v152, 2
        %v407 = vsel %vm394, %v399, %v406
        %v408 = vrot.slane %v153, 2
        %v409 = vsel %vm394, %v402, %v408
        %vm414 = vcmask 261120
        %v415 = vsel %vm414, %v403, 0
        %v417 = vsel %vm414, %v409, 0
        %419 = vmatprep.subr.mxu0 %v278
        %420 = vmatpush1.msra.mxu0 %v277
        %421 = vmatprep.subr.mxu0 %v281
        %422 = vmatpush1.msra.mxu0 %v280
        %423 = vmatprep.subr.mxu0 %v284
        %424 = vmatpush1.msra.mxu0 %v283
        %425 = vmatprep.subr.mxu0 %v287
        %426 = vmatpush1.msra.mxu0 %v286
        %427 = vmatprep.subr.mxu0 %v290
        %428 = vmatpush1.msra.mxu0 %v289
        %429 = vmatprep.subr.mxu0 %v293
        %430 = vmatpush1.msra.mxu0 %v292
        %431 = vmatprep.subr.mxu0 %v296
        %432 = vmatpush1.msra.mxu0 %v295
        %433 = vmatprep.subr.mxu0 %v299
        %434 = vmatpush1.msra.mxu0 %v298
        %435 = vmatprep.subr.mxu0 %v302
        %436 = vmatpush1.msra.mxu0 %v301
        %437 = vmatprep.subr.mxu0 %v305
        %438 = vmatpush1.msra.mxu0 %v304
        %439 = vmatprep.subr.mxu0 %v308
        %440 = vmatpush1.msra.mxu0 %v307
        %441 = vmatprep.subr.mxu0 %v311
        %442 = vmatpush1.msra.mxu0 %v310
        %443 = vmatprep.subr.mxu0 %v314
        %444 = vmatpush1.msra.mxu0 %v313
        %445 = vmatprep.subr.mxu0 %v317
        %446 = vmatpush1.msra.mxu0 %v316
        %447 = vmatprep.subr.mxu0 %v320
        %448 = vmatpush1.msra.mxu0 %v319
        %449 = vmatprep.subr.mxu0 %v323
        %450 = vmatpush1.msra.mxu0 %v322
        %451 = vmatprep.subr.mxu0 %v326
        %452 = vmatpush1.msra.mxu0 %v325
        %453 = vmatprep.subr.mxu0 %v329
        %454 = vmatpush1.msra.mxu0 %v328
        %455 = vmatprep.subr.mxu0 %v332
        %456 = vmatpush1.msra.mxu0 %v331
        %457 = vmatprep.subr.mxu0 %v335
        %458 = vmatpush1.msra.mxu0 %v334
        %459 = vmatprep.subr.mxu0 %v338
        %460 = vmatpush1.msra.mxu0 %v337
        %461 = vmatprep.subr.mxu0 %v341
        %462 = vmatpush1.msra.mxu0 %v340
        %463 = vmatprep.subr.mxu0 %v344
        %464 = vmatpush1.msra.mxu0 %v343
        %465 = vmatprep.subr.mxu0 %v347
        %466 = vmatpush1.msra.mxu0 %v346
        %467 = vmatprep.subr.mxu0 %v350
        %468 = vmatpush1.msra.mxu0 %v349
        %469 = vmatprep.subr.mxu0 %v353
        %470 = vmatpush1.msra.mxu0 %v352
        %471 = vmatprep.subr.mxu0 %v356
        %472 = vmatpush1.msra.mxu0 %v355
        %473 = vmatprep.subr.mxu0 %v359
        %474 = vmatpush1.msra.mxu0 %v358
        %475 = vmatprep.subr.mxu0 %v362
        %476 = vmatpush1.msra.mxu0 %v361
        %477 = vmatprep.subr.mxu0 %v365
        %478 = vmatpush1.msra.mxu0 %v364
        %479 = vmatprep.subr.mxu0 %v368
        %480 = vmatpush1.msra.mxu0 %v367
        %481 = vmatprep.subr.mxu0 %v371
        %482 = vmatpush1.msra.mxu0 %v370
        %483 = vmatprep.mubr.f32.mxu0 %v400
        %484 = vmatmul.mubr.f32.gmra.mrb[0].mxu0 %v397
        %v485 = vpop.f32.mrb[0].mxu0
        %v486 = vadd.f32 0.0, %v485
        %v487 = vpop.f32.mrb[0].mxu0
        %v488 = vadd.f32 0.0, %v487
        %489 = vmatprep.mubr.f32.mxu0 %v407
        %490 = vmatmul.mubr.f32.gmra.mrb[0].mxu0 %v405
        %v491 = vpop.f32.mrb[0].mxu0
        %v492 = vadd.f32 0.0, %v491
        %v493 = vpop.f32.mrb[0].mxu0
        %v494 = vadd.f32 0.0, %v493
        %495 = vdwg.mxu0
        %496 = vmatprep.subr.mxu0 %v374
        %497 = vmatpush1.msra.mxu0 %v373
        %498 = vmatprep.subr.mxu0 %v377
        %499 = vmatpush1.msra.mxu0 %v376
        %500 = vmatprep.subr.mxu0 %v380
        %501 = vmatpush1.msra.mxu0 %v379
        %502 = vmatprep.subr.mxu0 %v383
        %503 = vmatpush1.msra.mxu0 %v382
        %504 = vmatprep.subr.mxu0 0.0
        %505 = vmatpush1.msra.mxu0 0.0
        %506 = vmatprep.subr.mxu0 0.0
        %507 = vmatpush1.msra.mxu0 0.0
        %508 = vmatprep.subr.mxu0 0.0
        %509 = vmatpush1.msra.mxu0 0.0
        %510 = vmatprep.subr.mxu0 0.0
        %511 = vmatpush1.msra.mxu0 0.0
        %512 = vmatprep.subr.mxu0 0.0
        %513 = vmatpush1.msra.mxu0 0.0
        %514 = vmatprep.subr.mxu0 0.0
        %515 = vmatpush1.msra.mxu0 0.0
        %516 = vmatprep.subr.mxu0 0.0
        %517 = vmatpush1.msra.mxu0 0.0
        %518 = vmatprep.subr.mxu0 0.0
        %519 = vmatpush1.msra.mxu0 0.0
        %520 = vmatprep.subr.mxu0 0.0
        %521 = vmatpush1.msra.mxu0 0.0
        %522 = vmatprep.subr.mxu0 0.0
        %523 = vmatpush1.msra.mxu0 0.0
        %524 = vmatprep.subr.mxu0 0.0
        %525 = vmatpush1.msra.mxu0 0.0
        %526 = vmatprep.subr.mxu0 0.0
        %527 = vmatpush1.msra.mxu0 0.0
        %528 = vmatprep.subr.mxu0 0.0
        %529 = vmatpush1.msra.mxu0 0.0
        %530 = vmatprep.subr.mxu0 0.0
        %531 = vmatpush1.msra.mxu0 0.0
        %532 = vmatprep.subr.mxu0 0.0
        %533 = vmatpush1.msra.mxu0 0.0
        %534 = vmatprep.subr.mxu0 0.0
        %535 = vmatpush1.msra.mxu0 0.0
        %536 = vmatprep.subr.mxu0 0.0
        %537 = vmatpush1.msra.mxu0 0.0
        %538 = vmatprep.subr.mxu0 0.0
        %539 = vmatpush1.msra.mxu0 0.0
        %540 = vmatprep.subr.mxu0 0.0
        %541 = vmatpush1.msra.mxu0 0.0
        %542 = vmatprep.subr.mxu0 0.0
        %543 = vmatpush1.msra.mxu0 0.0
        %544 = vmatprep.subr.mxu0 0.0
        %545 = vmatpush1.msra.mxu0 0.0
        %546 = vmatprep.subr.mxu0 0.0
        %547 = vmatpush1.msra.mxu0 0.0
        %548 = vmatprep.subr.mxu0 0.0
        %549 = vmatpush1.msra.mxu0 0.0
        %550 = vmatprep.subr.mxu0 0.0
        %551 = vmatpush1.msra.mxu0 0.0
        %552 = vmatprep.subr.mxu0 0.0
        %553 = vmatpush1.msra.mxu0 0.0
        %554 = vmatprep.subr.mxu0 0.0
        %555 = vmatpush1.msra.mxu0 0.0
        %556 = vmatprep.subr.mxu0 0.0
        %557 = vmatpush1.msra.mxu0 0.0
        %558 = vmatprep.subr.mxu0 0.0
        %559 = vmatpush1.msra.mxu0 0.0
        %560 = vmatprep.mubr.f32.mxu0 0.0
        %561 = vmatmul.mubr.f32.gmra.mrb[0].mxu0 %v415
        %v562 = vpop.f32.mrb[0].mxu0
        %v563 = vadd.f32 %v486, %v562
        %v564 = vpop.f32.mrb[0].mxu0
        %v565 = vadd.f32 %v488, %v564
        %566 = vmatprep.mubr.f32.mxu0 0.0
        %567 = vmatmul.mubr.f32.gmra.mrb[0].mxu0 %v417
        %v568 = vpop.f32.mrb[0].mxu0
        %v569 = vadd.f32 %v492, %v568
        %v570 = vpop.f32.mrb[0].mxu0
        %v571 = vadd.f32 %v494, %v570
        %572 = vdwg.mxu0
        %573 = vmatprep.subr.mxu0 0.0
        %574 = vmatpush1.msra.mxu0 %v279
        %575 = vmatprep.subr.mxu0 0.0
        %576 = vmatpush1.msra.mxu0 %v282
        %577 = vmatprep.subr.mxu0 0.0
        %578 = vmatpush1.msra.mxu0 %v285
        %579 = vmatprep.subr.mxu0 0.0
        %580 = vmatpush1.msra.mxu0 %v288
        %581 = vmatprep.subr.mxu0 0.0
        %582 = vmatpush1.msra.mxu0 %v291
        %583 = vmatprep.subr.mxu0 0.0
        %584 = vmatpush1.msra.mxu0 %v294
        %585 = vmatprep.subr.mxu0 0.0
        %586 = vmatpush1.msra.mxu0 %v297
        %587 = vmatprep.subr.mxu0 0.0
        %588 = vmatpush1.msra.mxu0 %v300
        %589 = vmatprep.subr.mxu0 0.0
        %590 = vmatpush1.msra.mxu0 %v303
        %591 = vmatprep.subr.mxu0 0.0
        %592 = vmatpush1.msra.mxu0 %v306
        %593 = vmatprep.subr.mxu0 0.0
        %594 = vmatpush1.msra.mxu0 %v309
        %595 = vmatprep.subr.mxu0 0.0
        %596 = vmatpush1.msra.mxu0 %v312
        %597 = vmatprep.subr.mxu0 0.0
        %598 = vmatpush1.msra.mxu0 %v315
        %599 = vmatprep.subr.mxu0 0.0
        %600 = vmatpush1.msra.mxu0 %v318
        %601 = vmatprep.subr.mxu0 0.0
        %602 = vmatpush1.msra.mxu0 %v321
        %603 = vmatprep.subr.mxu0 0.0
        %604 = vmatpush1.msra.mxu0 %v324
        %605 = vmatprep.subr.mxu0 0.0
        %606 = vmatpush1.msra.mxu0 %v327
        %607 = vmatprep.subr.mxu0 0.0
        %608 = vmatpush1.msra.mxu0 %v330
        %609 = vmatprep.subr.mxu0 0.0
        %610 = vmatpush1.msra.mxu0 %v333
        %611 = vmatprep.subr.mxu0 0.0
        %612 = vmatpush1.msra.mxu0 %v336
        %613 = vmatprep.subr.mxu0 0.0
        %614 = vmatpush1.msra.mxu0 %v339
        %615 = vmatprep.subr.mxu0 0.0
        %616 = vmatpush1.msra.mxu0 %v342
        %617 = vmatprep.subr.mxu0 0.0
        %618 = vmatpush1.msra.mxu0 %v345
        %619 = vmatprep.subr.mxu0 0.0
        %620 = vmatpush1.msra.mxu0 %v348
        %621 = vmatprep.subr.mxu0 0.0
        %622 = vmatpush1.msra.mxu0 %v351
        %623 = vmatprep.subr.mxu0 0.0
        %624 = vmatpush1.msra.mxu0 %v354
        %625 = vmatprep.subr.mxu0 0.0
        %626 = vmatpush1.msra.mxu0 %v357
        %627 = vmatprep.subr.mxu0 0.0
        %628 = vmatpush1.msra.mxu0 %v360
        %629 = vmatprep.subr.mxu0 0.0
        %630 = vmatpush1.msra.mxu0 %v363
        %631 = vmatprep.subr.mxu0 0.0
        %632 = vmatpush1.msra.mxu0 %v366
        %633 = vmatprep.subr.mxu0 0.0
        %634 = vmatpush1.msra.mxu0 %v369
        %635 = vmatprep.subr.mxu0 0.0
        %636 = vmatpush1.msra.mxu0 %v372
        %637 = vmatprep.mubr.f32.mxu0 %v400
        %638 = vmatmul.mubr.f32.gmra.mrb[0].mxu0 %v397
        %v639 = vpop.f32.mrb[0].mxu0
        %v640 = vadd.f32 0.0, %v639
        %v641 = vpop.f32.mrb[0].mxu0
        %642 = vmatprep.mubr.f32.mxu0 %v407
        %643 = vmatmul.mubr.f32.gmra.mrb[0].mxu0 %v405
        %v644 = vpop.f32.mrb[0].mxu0
        %v645 = vadd.f32 0.0, %v644
        %v646 = vpop.f32.mrb[0].mxu0
        %647 = vdwg.mxu0
        %648 = vmatprep.subr.mxu0 0.0
        %649 = vmatpush1.msra.mxu0 %v375
        %650 = vmatprep.subr.mxu0 0.0
        %651 = vmatpush1.msra.mxu0 %v378
        %652 = vmatprep.subr.mxu0 0.0
        %653 = vmatpush1.msra.mxu0 %v381
        %654 = vmatprep.subr.mxu0 0.0
        %655 = vmatpush1.msra.mxu0 %v384
        %656 = vmatprep.subr.mxu0 0.0
        %657 = vmatpush1.msra.mxu0 0.0
        %658 = vmatprep.subr.mxu0 0.0
        %659 = vmatpush1.msra.mxu0 0.0
        %660 = vmatprep.subr.mxu0 0.0
        %661 = vmatpush1.msra.mxu0 0.0
        %662 = vmatprep.subr.mxu0 0.0
        %663 = vmatpush1.msra.mxu0 0.0
        %664 = vmatprep.subr.mxu0 0.0
        %665 = vmatpush1.msra.mxu0 0.0
        %666 = vmatprep.subr.mxu0 0.0
        %667 = vmatpush1.msra.mxu0 0.0
        %668 = vmatprep.subr.mxu0 0.0
        %669 = vmatpush1.msra.mxu0 0.0
        %670 = vmatprep.subr.mxu0 0.0
        %671 = vmatpush1.msra.mxu0 0.0
        %672 = vmatprep.subr.mxu0 0.0
        %673 = vmatpush1.msra.mxu0 0.0
        %674 = vmatprep.subr.mxu0 0.0
        %675 = vmatpush1.msra.mxu0 0.0
        %676 = vmatprep.subr.mxu0 0.0
        %677 = vmatpush1.msra.mxu0 0.0
        %678 = vmatprep.subr.mxu0 0.0
        %679 = vmatpush1.msra.mxu0 0.0
        %680 = vmatprep.subr.mxu0 0.0
        %681 = vmatpush1.msra.mxu0 0.0
        %682 = vmatprep.subr.mxu0 0.0
        %683 = vmatpush1.msra.mxu0 0.0
        %684 = vmatprep.subr.mxu0 0.0
        %685 = vmatpush1.msra.mxu0 0.0
        %686 = vmatprep.subr.mxu0 0.0
        %687 = vmatpush1.msra.mxu0 0.0
        %688 = vmatprep.subr.mxu0 0.0
        %689 = vmatpush1.msra.mxu0 0.0
        %690 = vmatprep.subr.mxu0 0.0
        %691 = vmatpush1.msra.mxu0 0.0
        %692 = vmatprep.subr.mxu0 0.0
        %693 = vmatpush1.msra.mxu0 0.0
        %694 = vmatprep.subr.mxu0 0.0
        %695 = vmatpush1.msra.mxu0 0.0
        %696 = vmatprep.subr.mxu0 0.0
        %697 = vmatpush1.msra.mxu0 0.0
        %698 = vmatprep.subr.mxu0 0.0
        %699 = vmatpush1.msra.mxu0 0.0
        %700 = vmatprep.subr.mxu0 0.0
        %701 = vmatpush1.msra.mxu0 0.0
        %702 = vmatprep.subr.mxu0 0.0
        %703 = vmatpush1.msra.mxu0 0.0
        %704 = vmatprep.subr.mxu0 0.0
        %705 = vmatpush1.msra.mxu0 0.0
        %706 = vmatprep.subr.mxu0 0.0
        %707 = vmatpush1.msra.mxu0 0.0
        %708 = vmatprep.subr.mxu0 0.0
        %709 = vmatpush1.msra.mxu0 0.0
        %710 = vmatprep.subr.mxu0 0.0
        %711 = vmatpush1.msra.mxu0 0.0
        %712 = vmatprep.mubr.f32.mxu0 0.0
        %713 = vmatmul.mubr.f32.gmra.mrb[0].mxu0 %v415
        %v714 = vpop.f32.mrb[0].mxu0
        %v715 = vadd.f32 %v640, %v714
        %v716 = vpop.f32.mrb[0].mxu0
        %717 = vmatprep.mubr.f32.mxu0 0.0
        %718 = vmatmul.mubr.f32.gmra.mrb[0].mxu0 %v417
        %v719 = vpop.f32.mrb[0].mxu0
        %v720 = vadd.f32 %v645, %v719
        %v721 = vpop.f32.mrb[0].mxu0
        %722 = vdwg.mxu0
        %v724 = vsel %vm414, %v144, 0
        %v726 = vsel %vm414, %v147, 0
        %728 = vmatprep.subr.mxu0 %v170
        %729 = vmatpush1.msra.mxu0 %v169
        %730 = vmatprep.subr.mxu0 %v173
        %731 = vmatpush1.msra.mxu0 %v172
        %732 = vmatprep.subr.mxu0 %v176
        %733 = vmatpush1.msra.mxu0 %v175
        %734 = vmatprep.subr.mxu0 %v179
        %735 = vmatpush1.msra.mxu0 %v178
        %736 = vmatprep.subr.mxu0 %v182
        %737 = vmatpush1.msra.mxu0 %v181
        %738 = vmatprep.subr.mxu0 %v185
        %739 = vmatpush1.msra.mxu0 %v184
        %740 = vmatprep.subr.mxu0 %v188
        %741 = vmatpush1.msra.mxu0 %v187
        %742 = vmatprep.subr.mxu0 %v191
        %743 = vmatpush1.msra.mxu0 %v190
        %744 = vmatprep.subr.mxu0 %v194
        %745 = vmatpush1.msra.mxu0 %v193
        %746 = vmatprep.subr.mxu0 %v197
        %747 = vmatpush1.msra.mxu0 %v196
        %748 = vmatprep.subr.mxu0 %v200
        %749 = vmatpush1.msra.mxu0 %v199
        %750 = vmatprep.subr.mxu0 %v203
        %751 = vmatpush1.msra.mxu0 %v202
        %752 = vmatprep.subr.mxu0 %v206
        %753 = vmatpush1.msra.mxu0 %v205
        %754 = vmatprep.subr.mxu0 %v209
        %755 = vmatpush1.msra.mxu0 %v208
        %756 = vmatprep.subr.mxu0 %v212
        %757 = vmatpush1.msra.mxu0 %v211
        %758 = vmatprep.subr.mxu0 %v215
        %759 = vmatpush1.msra.mxu0 %v214
        %760 = vmatprep.subr.mxu0 %v218
        %761 = vmatpush1.msra.mxu0 %v217
        %762 = vmatprep.subr.mxu0 %v221
        %763 = vmatpush1.msra.mxu0 %v220
        %764 = vmatprep.subr.mxu0 %v224
        %765 = vmatpush1.msra.mxu0 %v223
        %766 = vmatprep.subr.mxu0 %v227
        %767 = vmatpush1.msra.mxu0 %v226
        %768 = vmatprep.subr.mxu0 %v230
        %769 = vmatpush1.msra.mxu0 %v229
        %770 = vmatprep.subr.mxu0 %v233
        %771 = vmatpush1.msra.mxu0 %v232
        %772 = vmatprep.subr.mxu0 %v236
        %773 = vmatpush1.msra.mxu0 %v235
        %774 = vmatprep.subr.mxu0 %v239
        %775 = vmatpush1.msra.mxu0 %v238
        %776 = vmatprep.subr.mxu0 %v242
        %777 = vmatpush1.msra.mxu0 %v241
        %778 = vmatprep.subr.mxu0 %v245
        %779 = vmatpush1.msra.mxu0 %v244
        %780 = vmatprep.subr.mxu0 %v248
        %781 = vmatpush1.msra.mxu0 %v247
        %782 = vmatprep.subr.mxu0 %v251
        %783 = vmatpush1.msra.mxu0 %v250
        %784 = vmatprep.subr.mxu0 %v254
        %785 = vmatpush1.msra.mxu0 %v253
        %786 = vmatprep.subr.mxu0 %v257
        %787 = vmatpush1.msra.mxu0 %v256
        %788 = vmatprep.subr.mxu0 %v260
        %789 = vmatpush1.msra.mxu0 %v259
        %790 = vmatprep.subr.mxu0 %v263
        %791 = vmatpush1.msra.mxu0 %v262
        %792 = vmatprep.mubr.f32.mxu0 %v143
        %793 = vmatmul.mubr.f32.gmra.mrb[0].mxu0 %v142
        %v794 = vpop.f32.mrb[0].mxu0
        %v795 = vadd.f32 %v563, %v794
        %v796 = vpop.f32.mrb[0].mxu0
        %v797 = vadd.f32 %v565, %v796
        %798 = vmatprep.mubr.f32.mxu0 %v146
        %799 = vmatmul.mubr.f32.gmra.mrb[0].mxu0 %v145
        %v800 = vpop.f32.mrb[0].mxu0
        %v801 = vadd.f32 %v569, %v800
        %v802 = vpop.f32.mrb[0].mxu0
        %v803 = vadd.f32 %v571, %v802
        %804 = vdwg.mxu0
        %805 = vmatprep.subr.mxu0 %v266
        %806 = vmatpush1.msra.mxu0 %v265
        %807 = vmatprep.subr.mxu0 %v269
        %808 = vmatpush1.msra.mxu0 %v268
        %809 = vmatprep.subr.mxu0 %v272
        %810 = vmatpush1.msra.mxu0 %v271
        %811 = vmatprep.subr.mxu0 %v275
        %812 = vmatpush1.msra.mxu0 %v274
        %813 = vmatprep.subr.mxu0 0.0
        %814 = vmatpush1.msra.mxu0 0.0
        %815 = vmatprep.subr.mxu0 0.0
        %816 = vmatpush1.msra.mxu0 0.0
        %817 = vmatprep.subr.mxu0 0.0
        %818 = vmatpush1.msra.mxu0 0.0
        %819 = vmatprep.subr.mxu0 0.0
        %820 = vmatpush1.msra.mxu0 0.0
        %821 = vmatprep.subr.mxu0 0.0
        %822 = vmatpush1.msra.mxu0 0.0
        %823 = vmatprep.subr.mxu0 0.0
        %824 = vmatpush1.msra.mxu0 0.0
        %825 = vmatprep.subr.mxu0 0.0
        %826 = vmatpush1.msra.mxu0 0.0
        %827 = vmatprep.subr.mxu0 0.0
        %828 = vmatpush1.msra.mxu0 0.0
        %829 = vmatprep.subr.mxu0 0.0
        %830 = vmatpush1.msra.mxu0 0.0
        %831 = vmatprep.subr.mxu0 0.0
        %832 = vmatpush1.msra.mxu0 0.0
        %833 = vmatprep.subr.mxu0 0.0
        %834 = vmatpush1.msra.mxu0 0.0
        %835 = vmatprep.subr.mxu0 0.0
        %836 = vmatpush1.msra.mxu0 0.0
        %837 = vmatprep.subr.mxu0 0.0
        %838 = vmatpush1.msra.mxu0 0.0
        %839 = vmatprep.subr.mxu0 0.0
        %840 = vmatpush1.msra.mxu0 0.0
        %841 = vmatprep.subr.mxu0 0.0
        %842 = vmatpush1.msra.mxu0 0.0
        %843 = vmatprep.subr.mxu0 0.0
        %844 = vmatpush1.msra.mxu0 0.0
        %845 = vmatprep.subr.mxu0 0.0
        %846 = vmatpush1.msra.mxu0 0.0
        %847 = vmatprep.subr.mxu0 0.0
        %848 = vmatpush1.msra.mxu0 0.0
        %849 = vmatprep.subr.mxu0 0.0
        %850 = vmatpush1.msra.mxu0 0.0
        %851 = vmatprep.subr.mxu0 0.0
        %852 = vmatpush1.msra.mxu0 0.0
        %853 = vmatprep.subr.mxu0 0.0
        %854 = vmatpush1.msra.mxu0 0.0
        %855 = vmatprep.subr.mxu0 0.0
        %856 = vmatpush1.msra.mxu0 0.0
        %857 = vmatprep.subr.mxu0 0.0
        %858 = vmatpush1.msra.mxu0 0.0
        %859 = vmatprep.subr.mxu0 0.0
        %860 = vmatpush1.msra.mxu0 0.0
        %861 = vmatprep.subr.mxu0 0.0
        %862 = vmatpush1.msra.mxu0 0.0
        %863 = vmatprep.subr.mxu0 0.0
        %864 = vmatpush1.msra.mxu0 0.0
        %865 = vmatprep.subr.mxu0 0.0
        %866 = vmatpush1.msra.mxu0 0.0
        %867 = vmatprep.subr.mxu0 0.0
        %868 = vmatpush1.msra.mxu0 0.0
        %869 = vmatprep.mubr.f32.mxu0 0.0
        %870 = vmatmul.mubr.f32.gmra.mrb[0].mxu0 %v724
        %v871 = vpop.f32.mrb[0].mxu0
        %v872 = vadd.f32 %v795, %v871
        %v873 = vpop.f32.mrb[0].mxu0
        %v874 = vadd.f32 %v797, %v873
        %875 = vmatprep.mubr.f32.mxu0 0.0
        %876 = vmatmul.mubr.f32.gmra.mrb[0].mxu0 %v726
        %v877 = vpop.f32.mrb[0].mxu0
        %v878 = vadd.f32 %v801, %v877
        %v879 = vpop.f32.mrb[0].mxu0
        %v880 = vadd.f32 %v803, %v879
        %881 = vdwg.mxu0
        %882 = vmatprep.subr.mxu0 0.0
        %883 = vmatpush1.msra.mxu0 %v171
        %884 = vmatprep.subr.mxu0 0.0
        %885 = vmatpush1.msra.mxu0 %v174
        %886 = vmatprep.subr.mxu0 0.0
        %887 = vmatpush1.msra.mxu0 %v177
        %888 = vmatprep.subr.mxu0 0.0
        %889 = vmatpush1.msra.mxu0 %v180
        %890 = vmatprep.subr.mxu0 0.0
        %891 = vmatpush1.msra.mxu0 %v183
        %892 = vmatprep.subr.mxu0 0.0
        %893 = vmatpush1.msra.mxu0 %v186
        %894 = vmatprep.subr.mxu0 0.0
        %895 = vmatpush1.msra.mxu0 %v189
        %896 = vmatprep.subr.mxu0 0.0
        %897 = vmatpush1.msra.mxu0 %v192
        %898 = vmatprep.subr.mxu0 0.0
        %899 = vmatpush1.msra.mxu0 %v195
        %900 = vmatprep.subr.mxu0 0.0
        %901 = vmatpush1.msra.mxu0 %v198
        %902 = vmatprep.subr.mxu0 0.0
        %903 = vmatpush1.msra.mxu0 %v201
        %904 = vmatprep.subr.mxu0 0.0
        %905 = vmatpush1.msra.mxu0 %v204
        %906 = vmatprep.subr.mxu0 0.0
        %907 = vmatpush1.msra.mxu0 %v207
        %908 = vmatprep.subr.mxu0 0.0
        %909 = vmatpush1.msra.mxu0 %v210
        %910 = vmatprep.subr.mxu0 0.0
        %911 = vmatpush1.msra.mxu0 %v213
        %912 = vmatprep.subr.mxu0 0.0
        %913 = vmatpush1.msra.mxu0 %v216
        %914 = vmatprep.subr.mxu0 0.0
        %915 = vmatpush1.msra.mxu0 %v219
        %916 = vmatprep.subr.mxu0 0.0
        %917 = vmatpush1.msra.mxu0 %v222
        %918 = vmatprep.subr.mxu0 0.0
        %919 = vmatpush1.msra.mxu0 %v225
        %920 = vmatprep.subr.mxu0 0.0
        %921 = vmatpush1.msra.mxu0 %v228
        %922 = vmatprep.subr.mxu0 0.0
        %923 = vmatpush1.msra.mxu0 %v231
        %924 = vmatprep.subr.mxu0 0.0
        %925 = vmatpush1.msra.mxu0 %v234
        %926 = vmatprep.subr.mxu0 0.0
        %927 = vmatpush1.msra.mxu0 %v237
        %928 = vmatprep.subr.mxu0 0.0
        %929 = vmatpush1.msra.mxu0 %v240
        %930 = vmatprep.subr.mxu0 0.0
        %931 = vmatpush1.msra.mxu0 %v243
        %932 = vmatprep.subr.mxu0 0.0
        %933 = vmatpush1.msra.mxu0 %v246
        %934 = vmatprep.subr.mxu0 0.0
        %935 = vmatpush1.msra.mxu0 %v249
        %936 = vmatprep.subr.mxu0 0.0
        %937 = vmatpush1.msra.mxu0 %v252
        %938 = vmatprep.subr.mxu0 0.0
        %939 = vmatpush1.msra.mxu0 %v255
        %940 = vmatprep.subr.mxu0 0.0
        %941 = vmatpush1.msra.mxu0 %v258
        %942 = vmatprep.subr.mxu0 0.0
        %943 = vmatpush1.msra.mxu0 %v261
        %944 = vmatprep.subr.mxu0 0.0
        %945 = vmatpush1.msra.mxu0 %v264
        %946 = vmatprep.mubr.f32.mxu0 %v143
        %947 = vmatmul.mubr.f32.gmra.mrb[0].mxu0 %v142
        %v948 = vpop.f32.mrb[0].mxu0
        %v949 = vadd.f32 %v715, %v948
        %v950 = vpop.f32.mrb[0].mxu0
        %951 = vmatprep.mubr.f32.mxu0 %v146
        %952 = vmatmul.mubr.f32.gmra.mrb[0].mxu0 %v145
        %v953 = vpop.f32.mrb[0].mxu0
        %v954 = vadd.f32 %v720, %v953
        %v955 = vpop.f32.mrb[0].mxu0
        %956 = vdwg.mxu0
        %957 = vmatprep.subr.mxu0 0.0
        %958 = vmatpush1.msra.mxu0 %v267
        %959 = vmatprep.subr.mxu0 0.0
        %960 = vmatpush1.msra.mxu0 %v270
        %961 = vmatprep.subr.mxu0 0.0
        %962 = vmatpush1.msra.mxu0 %v273
        %963 = vmatprep.subr.mxu0 0.0
        %964 = vmatpush1.msra.mxu0 %v276
        %965 = vmatprep.subr.mxu0 0.0
        %966 = vmatpush1.msra.mxu0 0.0
        %967 = vmatprep.subr.mxu0 0.0
        %968 = vmatpush1.msra.mxu0 0.0
        %969 = vmatprep.subr.mxu0 0.0
        %970 = vmatpush1.msra.mxu0 0.0
        %971 = vmatprep.subr.mxu0 0.0
        %972 = vmatpush1.msra.mxu0 0.0
        %973 = vmatprep.subr.mxu0 0.0
        %974 = vmatpush1.msra.mxu0 0.0
        %975 = vmatprep.subr.mxu0 0.0
        %976 = vmatpush1.msra.mxu0 0.0
        %977 = vmatprep.subr.mxu0 0.0
        %978 = vmatpush1.msra.mxu0 0.0
        %979 = vmatprep.subr.mxu0 0.0
        %980 = vmatpush1.msra.mxu0 0.0
        %981 = vmatprep.subr.mxu0 0.0
        %982 = vmatpush1.msra.mxu0 0.0
        %983 = vmatprep.subr.mxu0 0.0
        %984 = vmatpush1.msra.mxu0 0.0
        %985 = vmatprep.subr.mxu0 0.0
        %986 = vmatpush1.msra.mxu0 0.0
        %987 = vmatprep.subr.mxu0 0.0
        %988 = vmatpush1.msra.mxu0 0.0
        %989 = vmatprep.subr.mxu0 0.0
        %990 = vmatpush1.msra.mxu0 0.0
        %991 = vmatprep.subr.mxu0 0.0
        %992 = vmatpush1.msra.mxu0 0.0
        %993 = vmatprep.subr.mxu0 0.0
        %994 = vmatpush1.msra.mxu0 0.0
        %995 = vmatprep.subr.mxu0 0.0
        %996 = vmatpush1.msra.mxu0 0.0
        %997 = vmatprep.subr.mxu0 0.0
        %998 = vmatpush1.msra.mxu0 0.0
        %999 = vmatprep.subr.mxu0 0.0
        %1000 = vmatpush1.msra.mxu0 0.0
        %1001 = vmatprep.subr.mxu0 0.0
        %1002 = vmatpush1.msra.mxu0 0.0
        %1003 = vmatprep.subr.mxu0 0.0
        %1004 = vmatpush1.msra.mxu0 0.0
        %1005 = vmatprep.subr.mxu0 0.0
        %1006 = vmatpush1.msra.mxu0 0.0
        %1007 = vmatprep.subr.mxu0 0.0
        %1008 = vmatpush1.msra.mxu0 0.0
        %1009 = vmatprep.subr.mxu0 0.0
        %1010 = vmatpush1.msra.mxu0 0.0
        %1011 = vmatprep.subr.mxu0 0.0
        %1012 = vmatpush1.msra.mxu0 0.0
        %1013 = vmatprep.subr.mxu0 0.0
        %1014 = vmatpush1.msra.mxu0 0.0
        %1015 = vmatprep.subr.mxu0 0.0
        %1016 = vmatpush1.msra.mxu0 0.0
        %1017 = vmatprep.subr.mxu0 0.0
        %1018 = vmatpush1.msra.mxu0 0.0
        %1019 = vmatprep.subr.mxu0 0.0
        %1020 = vmatpush1.msra.mxu0 0.0
        %1021 = vmatprep.mubr.f32.mxu0 0.0
        %1022 = vmatmul.mubr.f32.gmra.mrb[0].mxu0 %v724
        %v1023 = vpop.f32.mrb[0].mxu0
        %v1024 = vadd.f32 %v949, %v1023
        %v1025 = vpop.f32.mrb[0].mxu0
        %1026 = vmatprep.mubr.f32.mxu0 0.0
        %1027 = vmatmul.mubr.f32.gmra.mrb[0].mxu0 %v726
        %v1028 = vpop.f32.mrb[0].mxu0
        %v1029 = vadd.f32 %v954, %v1028
        %v1030 = vpop.f32.mrb[0].mxu0
        %1031 = vdwg.mxu0
        %v1032 = vld [vmem:[%s1 + $0x6c0] sm:$0xff]
        %v1033 = vld [vmem:[%s1 + $0x6c8] sm:$0xff]
        %v1034 = vld [vmem:[%s1 + $0x6d0] sm:$0xff]
        %v1035 = vld [vmem:[%s1 + $0x6d8] sm:$0xff]
        %v1036 = vld [vmem:[%s1 + $0x6e0] sm:$0xff]
        %v1037 = vld [vmem:[%s1 + $0x6e8] sm:$0xff]
        %v1038 = vld [vmem:[%s1 + $0x6f0] sm:$0xff]
        %v1039 = vld [vmem:[%s1 + $0x6f8] sm:$0xff]
        %v1040 = vld [vmem:[%s1 + $0x700] sm:$0xff]
        %v1041 = vld [vmem:[%s1 + $0x708] sm:$0xff]
        %v1042 = vld [vmem:[%s1 + $0x710] sm:$0xff]
        %v1043 = vld [vmem:[%s1 + $0x718] sm:$0xff]
        %v1044 = vld [vmem:[%s1 + $0x720] sm:$0xff]
        %v1045 = vld [vmem:[%s1 + $0x728] sm:$0xff]
        %v1046 = vld [vmem:[%s1 + $0x730] sm:$0xff]
        %v1047 = vld [vmem:[%s1 + $0x738] sm:$0xff]
        %v1048 = vld [vmem:[%s1 + $0x740] sm:$0xff]
        %v1049 = vld [vmem:[%s1 + $0x748] sm:$0xff]
        %v1050 = vld [vmem:[%s1 + $0x750] sm:$0xff]
        %v1051 = vld [vmem:[%s1 + $0x758] sm:$0xff]
        %v1052 = vld [vmem:[%s1 + $0x760] sm:$0xff]
        %v1053 = vld [vmem:[%s1 + $0x768] sm:$0xff]
        %v1054 = vld [vmem:[%s1 + $0x770] sm:$0xff]
        %v1055 = vld [vmem:[%s1 + $0x778] sm:$0xff]
        %v1056 = vld [vmem:[%s1 + $0x780] sm:$0xff]
        %v1057 = vld [vmem:[%s1 + $0x788] sm:$0xff]
        %v1058 = vld [vmem:[%s1 + $0x790] sm:$0xff]
        %v1059 = vld [vmem:[%s1 + $0x798] sm:$0xff]
        %v1060 = vld [vmem:[%s1 + $0x7a0] sm:$0xff]
        %v1061 = vld [vmem:[%s1 + $0x7a8] sm:$0xff]
        %v1062 = vld [vmem:[%s1 + $0x7b0] sm:$0xff]
        %v1063 = vld [vmem:[%s1 + $0x7b8] sm:$0xff]
        %v1064 = vld [vmem:[%s1 + $0x7c0] sm:$0xff]
        %v1065 = vld [vmem:[%s1 + $0x7c8] sm:$0xff]
        %v1066 = vld [vmem:[%s1 + $0x7d0] sm:$0xff]
        %v1067 = vld [vmem:[%s1 + $0x7d8] sm:$0xff]
        %v1068 = vld [vmem:[%s1 + $0x7e0] sm:$0xff]
        %v1069 = vld [vmem:[%s1 + $0x7e8] sm:$0xff]
        %v1070 = vld [vmem:[%s1 + $0x7f0] sm:$0xff]
        %v1071 = vld [vmem:[%s1 + $0x7f8] sm:$0xff]
        %v1072 = vld [vmem:[%s1 + $0x800] sm:$0xff]
        %v1073 = vld [vmem:[%s1 + $0x808] sm:$0xff]
        %v1074 = vld [vmem:[%s1 + $0x810] sm:$0xff]
        %v1075 = vld [vmem:[%s1 + $0x818] sm:$0xff]
        %v1076 = vld [vmem:[%s1 + $0x820] sm:$0xff]
        %v1077 = vld [vmem:[%s1 + $0x828] sm:$0xff]
        %v1078 = vld [vmem:[%s1 + $0x830] sm:$0xff]
        %v1079 = vld [vmem:[%s1 + $0x838] sm:$0xff]
        %v1080 = vld [vmem:[%s1 + $0x840] sm:$0xff]
        %v1081 = vld [vmem:[%s1 + $0x848] sm:$0xff]
        %v1082 = vld [vmem:[%s1 + $0x850] sm:$0xff]
        %v1083 = vld [vmem:[%s1 + $0x858] sm:$0xff]
        %v1084 = vld [vmem:[%s1 + $0x860] sm:$0xff]
        %v1085 = vld [vmem:[%s1 + $0x868] sm:$0xff]
        %v1086 = vld [vmem:[%s1 + $0x870] sm:$0xff]
        %v1087 = vld [vmem:[%s1 + $0x878] sm:$0xff]
        %v1088 = vld [vmem:[%s1 + $0x880] sm:$0xff]
        %v1089 = vld [vmem:[%s1 + $0x888] sm:$0xff]
        %v1090 = vld [vmem:[%s1 + $0x890] sm:$0xff]
        %v1091 = vld [vmem:[%s1 + $0x898] sm:$0xff]
        %v1092 = vld [vmem:[%s1 + $0x8a0] sm:$0xff]
        %v1093 = vld [vmem:[%s1 + $0x8a8] sm:$0xff]
        %v1094 = vld [vmem:[%s1 + $0x8b0] sm:$0xff]
        %v1095 = vld [vmem:[%s1 + $0x8b8] sm:$0xff]
        %v1096 = vld [vmem:[%s1 + $0x8c0] sm:$0xff]
        %v1097 = vld [vmem:[%s1 + $0x8c8] sm:$0xff]
        %v1098 = vld [vmem:[%s1 + $0x8d0] sm:$0xff]
        %v1099 = vld [vmem:[%s1 + $0x8d8] sm:$0xff]
        %v1100 = vld [vmem:[%s1 + $0x8e0] sm:$0xff]
        %v1101 = vld [vmem:[%s1 + $0x8e8] sm:$0xff]
        %v1102 = vld [vmem:[%s1 + $0x8f0] sm:$0xff]
        %v1103 = vld [vmem:[%s1 + $0x8f8] sm:$0xff]
        %v1104 = vld [vmem:[%s1 + $0x900] sm:$0xff]
        %v1105 = vld [vmem:[%s1 + $0x908] sm:$0xff]
        %v1106 = vld [vmem:[%s1 + $0x910] sm:$0xff]
        %v1107 = vld [vmem:[%s1 + $0x918] sm:$0xff]
        %v1108 = vld [vmem:[%s1 + $0x920] sm:$0xff]
        %v1109 = vld [vmem:[%s1 + $0x928] sm:$0xff]
        %v1110 = vld [vmem:[%s1 + $0x930] sm:$0xff]
        %v1111 = vld [vmem:[%s1 + $0x938] sm:$0xff]
        %v1112 = vld [vmem:[%s1 + $0x940] sm:$0xff]
        %v1113 = vld [vmem:[%s1 + $0x948] sm:$0xff]
        %v1114 = vld [vmem:[%s1 + $0x950] sm:$0xff]
        %v1115 = vld [vmem:[%s1 + $0x958] sm:$0xff]
        %v1116 = vld [vmem:[%s1 + $0x960] sm:$0xff]
        %v1117 = vld [vmem:[%s1 + $0x968] sm:$0xff]
        %v1118 = vld [vmem:[%s1 + $0x970] sm:$0xff]
        %v1119 = vld [vmem:[%s1 + $0x978] sm:$0xff]
        %v1120 = vld [vmem:[%s1 + $0x980] sm:$0xff]
        %v1121 = vld [vmem:[%s1 + $0x988] sm:$0xff]
        %v1122 = vld [vmem:[%s1 + $0x990] sm:$0xff]
        %v1123 = vld [vmem:[%s1 + $0x998] sm:$0xff]
        %v1124 = vld [vmem:[%s1 + $0x9a0] sm:$0xff]
        %v1125 = vld [vmem:[%s1 + $0x9a8] sm:$0xff]
        %v1126 = vld [vmem:[%s1 + $0x9b0] sm:$0xff]
        %v1127 = vld [vmem:[%s1 + $0x9b8] sm:$0xff]
        %v1128 = vld [vmem:[%s1 + $0x9c0] sm:$0xff]
        %v1129 = vld [vmem:[%s1 + $0x9c8] sm:$0xff]
        %v1130 = vld [vmem:[%s1 + $0x9d0] sm:$0xff]
        %v1131 = vld [vmem:[%s1 + $0x9d8] sm:$0xff]
        %v1132 = vld [vmem:[%s1 + $0x9e0] sm:$0xff]
        %v1133 = vld [vmem:[%s1 + $0x9e8] sm:$0xff]
        %v1134 = vld [vmem:[%s1 + $0x9f0] sm:$0xff]
        %v1135 = vld [vmem:[%s1 + $0x9f8] sm:$0xff]
        %v1136 = vld [vmem:[%s1 + $0xa00] sm:$0xff]
        %v1137 = vld [vmem:[%s1 + $0xa08] sm:$0xff]
        %v1138 = vld [vmem:[%s1 + $0xa10] sm:$0xff]
        %v1139 = vld [vmem:[%s1 + $0xa18] sm:$0xff]
        %vm1146 = vcmask 1043456
        %v1147 = vrot.slane %v154, 4
        %v1148 = vrot.slane %v145, 4
        %v1149 = vsel %vm1146, %v1147, %v1148
        %v1150 = vrot.slane %v155, 4
        %v1151 = vrot.slane %v146, 4
        %v1152 = vsel %vm1146, %v1150, %v1151
        %v1153 = vrot.slane %v156, 4
        %v1154 = vrot.slane %v147, 4
        %v1155 = vsel %vm1146, %v1153, %v1154
        %v1156 = vrot.slane %v157, 4
        %v1157 = vsel %vm1146, %v1148, %v1156
        %v1158 = vrot.slane %v158, 4
        %v1159 = vsel %vm1146, %v1151, %v1158
        %v1160 = vrot.slane %v159, 4
        %v1161 = vsel %vm1146, %v1154, %v1160
        %v1166 = vsel %vm414, %v1155, 0
        %v1168 = vsel %vm414, %v1161, 0
        %1170 = vmatprep.subr.mxu0 %v1033
        %1171 = vmatpush1.msra.mxu0 %v1032
        %1172 = vmatprep.subr.mxu0 %v1036
        %1173 = vmatpush1.msra.mxu0 %v1035
        %1174 = vmatprep.subr.mxu0 %v1039
        %1175 = vmatpush1.msra.mxu0 %v1038
        %1176 = vmatprep.subr.mxu0 %v1042
        %1177 = vmatpush1.msra.mxu0 %v1041
        %1178 = vmatprep.subr.mxu0 %v1045
        %1179 = vmatpush1.msra.mxu0 %v1044
        %1180 = vmatprep.subr.mxu0 %v1048
        %1181 = vmatpush1.msra.mxu0 %v1047
        %1182 = vmatprep.subr.mxu0 %v1051
        %1183 = vmatpush1.msra.mxu0 %v1050
        %1184 = vmatprep.subr.mxu0 %v1054
        %1185 = vmatpush1.msra.mxu0 %v1053
        %1186 = vmatprep.subr.mxu0 %v1057
        %1187 = vmatpush1.msra.mxu0 %v1056
        %1188 = vmatprep.subr.mxu0 %v1060
        %1189 = vmatpush1.msra.mxu0 %v1059
        %1190 = vmatprep.subr.mxu0 %v1063
        %1191 = vmatpush1.msra.mxu0 %v1062
        %1192 = vmatprep.subr.mxu0 %v1066
        %1193 = vmatpush1.msra.mxu0 %v1065
        %1194 = vmatprep.subr.mxu0 %v1069
        %1195 = vmatpush1.msra.mxu0 %v1068
        %1196 = vmatprep.subr.mxu0 %v1072
        %1197 = vmatpush1.msra.mxu0 %v1071
        %1198 = vmatprep.subr.mxu0 %v1075
        %1199 = vmatpush1.msra.mxu0 %v1074
        %1200 = vmatprep.subr.mxu0 %v1078
        %1201 = vmatpush1.msra.mxu0 %v1077
        %1202 = vmatprep.subr.mxu0 %v1081
        %1203 = vmatpush1.msra.mxu0 %v1080
        %1204 = vmatprep.subr.mxu0 %v1084
        %1205 = vmatpush1.msra.mxu0 %v1083
        %1206 = vmatprep.subr.mxu0 %v1087
        %1207 = vmatpush1.msra.mxu0 %v1086
        %1208 = vmatprep.subr.mxu0 %v1090
        %1209 = vmatpush1.msra.mxu0 %v1089
        %1210 = vmatprep.subr.mxu0 %v1093
        %1211 = vmatpush1.msra.mxu0 %v1092
        %1212 = vmatprep.subr.mxu0 %v1096
        %1213 = vmatpush1.msra.mxu0 %v1095
        %1214 = vmatprep.subr.mxu0 %v1099
        %1215 = vmatpush1.msra.mxu0 %v1098
        %1216 = vmatprep.subr.mxu0 %v1102
        %1217 = vmatpush1.msra.mxu0 %v1101
        %1218 = vmatprep.subr.mxu0 %v1105
        %1219 = vmatpush1.msra.mxu0 %v1104
        %1220 = vmatprep.subr.mxu0 %v1108
        %1221 = vmatpush1.msra.mxu0 %v1107
        %1222 = vmatprep.subr.mxu0 %v1111
        %1223 = vmatpush1.msra.mxu0 %v1110
        %1224 = vmatprep.subr.mxu0 %v1114
        %1225 = vmatpush1.msra.mxu0 %v1113
        %1226 = vmatprep.subr.mxu0 %v1117
        %1227 = vmatpush1.msra.mxu0 %v1116
        %1228 = vmatprep.subr.mxu0 %v1120
        %1229 = vmatpush1.msra.mxu0 %v1119
        %1230 = vmatprep.subr.mxu0 %v1123
        %1231 = vmatpush1.msra.mxu0 %v1122
        %1232 = vmatprep.subr.mxu0 %v1126
        %1233 = vmatpush1.msra.mxu0 %v1125
        %1234 = vmatprep.mubr.f32.mxu0 %v1152
        %1235 = vmatmul.mubr.f32.gmra.mrb[0].mxu0 %v1149
        %v1236 = vpop.f32.mrb[0].mxu0
        %v1237 = vadd.f32 0.0, %v1236
        %v1238 = vpop.f32.mrb[0].mxu0
        %v1239 = vadd.f32 0.0, %v1238
        %1240 = vmatprep.mubr.f32.mxu0 %v1159
        %1241 = vmatmul.mubr.f32.gmra.mrb[0].mxu0 %v1157
        %v1242 = vpop.f32.mrb[0].mxu0
        %v1243 = vadd.f32 0.0, %v1242
        %v1244 = vpop.f32.mrb[0].mxu0
        %v1245 = vadd.f32 0.0, %v1244
        %1246 = vdwg.mxu0
        %1247 = vmatprep.subr.mxu0 %v1129
        %1248 = vmatpush1.msra.mxu0 %v1128
        %1249 = vmatprep.subr.mxu0 %v1132
        %1250 = vmatpush1.msra.mxu0 %v1131
        %1251 = vmatprep.subr.mxu0 %v1135
        %1252 = vmatpush1.msra.mxu0 %v1134
        %1253 = vmatprep.subr.mxu0 %v1138
        %1254 = vmatpush1.msra.mxu0 %v1137
        %1255 = vmatprep.subr.mxu0 0.0
        %1256 = vmatpush1.msra.mxu0 0.0
        %1257 = vmatprep.subr.mxu0 0.0
        %1258 = vmatpush1.msra.mxu0 0.0
        %1259 = vmatprep.subr.mxu0 0.0
        %1260 = vmatpush1.msra.mxu0 0.0
        %1261 = vmatprep.subr.mxu0 0.0
        %1262 = vmatpush1.msra.mxu0 0.0
        %1263 = vmatprep.subr.mxu0 0.0
        %1264 = vmatpush1.msra.mxu0 0.0
        %1265 = vmatprep.subr.mxu0 0.0
        %1266 = vmatpush1.msra.mxu0 0.0
        %1267 = vmatprep.subr.mxu0 0.0
        %1268 = vmatpush1.msra.mxu0 0.0
        %1269 = vmatprep.subr.mxu0 0.0
        %1270 = vmatpush1.msra.mxu0 0.0
        %1271 = vmatprep.subr.mxu0 0.0
        %1272 = vmatpush1.msra.mxu0 0.0
        %1273 = vmatprep.subr.mxu0 0.0
        %1274 = vmatpush1.msra.mxu0 0.0
        %1275 = vmatprep.subr.mxu0 0.0
        %1276 = vmatpush1.msra.mxu0 0.0
        %1277 = vmatprep.subr.mxu0 0.0
        %1278 = vmatpush1.msra.mxu0 0.0
        %1279 = vmatprep.subr.mxu0 0.0
        %1280 = vmatpush1.msra.mxu0 0.0
        %1281 = vmatprep.subr.mxu0 0.0
        %1282 = vmatpush1.msra.mxu0 0.0
        %1283 = vmatprep.subr.mxu0 0.0
        %1284 = vmatpush1.msra.mxu0 0.0
        %1285 = vmatprep.subr.mxu0 0.0
        %1286 = vmatpush1.msra.mxu0 0.0
        %1287 = vmatprep.subr.mxu0 0.0
        %1288 = vmatpush1.msra.mxu0 0.0
        %1289 = vmatprep.subr.mxu0 0.0
        %1290 = vmatpush1.msra.mxu0 0.0
        %1291 = vmatprep.subr.mxu0 0.0
        %1292 = vmatpush1.msra.mxu0 0.0
        %1293 = vmatprep.subr.mxu0 0.0
        %1294 = vmatpush1.msra.mxu0 0.0
        %1295 = vmatprep.subr.mxu0 0.0
        %1296 = vmatpush1.msra.mxu0 0.0
        %1297 = vmatprep.subr.mxu0 0.0
        %1298 = vmatpush1.msra.mxu0 0.0
        %1299 = vmatprep.subr.mxu0 0.0
        %1300 = vmatpush1.msra.mxu0 0.0
        %1301 = vmatprep.subr.mxu0 0.0
        %1302 = vmatpush1.msra.mxu0 0.0
        %1303 = vmatprep.subr.mxu0 0.0
        %1304 = vmatpush1.msra.mxu0 0.0
        %1305 = vmatprep.subr.mxu0 0.0
        %1306 = vmatpush1.msra.mxu0 0.0
        %1307 = vmatprep.subr.mxu0 0.0
        %1308 = vmatpush1.msra.mxu0 0.0
        %1309 = vmatprep.subr.mxu0 0.0
        %1310 = vmatpush1.msra.mxu0 0.0
        %1311 = vmatprep.mubr.f32.mxu0 0.0
        %1312 = vmatmul.mubr.f32.gmra.mrb[0].mxu0 %v1166
        %v1313 = vpop.f32.mrb[0].mxu0
        %v1314 = vadd.f32 %v1237, %v1313
        %v1315 = vpop.f32.mrb[0].mxu0
        %v1316 = vadd.f32 %v1239, %v1315
        %1317 = vmatprep.mubr.f32.mxu0 0.0
        %1318 = vmatmul.mubr.f32.gmra.mrb[0].mxu0 %v1168
        %v1319 = vpop.f32.mrb[0].mxu0
        %v1320 = vadd.f32 %v1243, %v1319
        %v1321 = vpop.f32.mrb[0].mxu0
        %v1322 = vadd.f32 %v1245, %v1321
        %1323 = vdwg.mxu0
        %1324 = vmatprep.subr.mxu0 0.0
        %1325 = vmatpush1.msra.mxu0 %v1034
        %1326 = vmatprep.subr.mxu0 0.0
        %1327 = vmatpush1.msra.mxu0 %v1037
        %1328 = vmatprep.subr.mxu0 0.0
        %1329 = vmatpush1.msra.mxu0 %v1040
        %1330 = vmatprep.subr.mxu0 0.0
        %1331 = vmatpush1.msra.mxu0 %v1043
        %1332 = vmatprep.subr.mxu0 0.0
        %1333 = vmatpush1.msra.mxu0 %v1046
        %1334 = vmatprep.subr.mxu0 0.0
        %1335 = vmatpush1.msra.mxu0 %v1049
        %1336 = vmatprep.subr.mxu0 0.0
        %1337 = vmatpush1.msra.mxu0 %v1052
        %1338 = vmatprep.subr.mxu0 0.0
        %1339 = vmatpush1.msra.mxu0 %v1055
        %1340 = vmatprep.subr.mxu0 0.0
        %1341 = vmatpush1.msra.mxu0 %v1058
        %1342 = vmatprep.subr.mxu0 0.0
        %1343 = vmatpush1.msra.mxu0 %v1061
        %1344 = vmatprep.subr.mxu0 0.0
        %1345 = vmatpush1.msra.mxu0 %v1064
        %1346 = vmatprep.subr.mxu0 0.0
        %1347 = vmatpush1.msra.mxu0 %v1067
        %1348 = vmatprep.subr.mxu0 0.0
        %1349 = vmatpush1.msra.mxu0 %v1070
        %1350 = vmatprep.subr.mxu0 0.0
        %1351 = vmatpush1.msra.mxu0 %v1073
        %1352 = vmatprep.subr.mxu0 0.0
        %1353 = vmatpush1.msra.mxu0 %v1076
        %1354 = vmatprep.subr.mxu0 0.0
        %1355 = vmatpush1.msra.mxu0 %v1079
        %1356 = vmatprep.subr.mxu0 0.0
        %1357 = vmatpush1.msra.mxu0 %v1082
        %1358 = vmatprep.subr.mxu0 0.0
        %1359 = vmatpush1.msra.mxu0 %v1085
        %1360 = vmatprep.subr.mxu0 0.0
        %1361 = vmatpush1.msra.mxu0 %v1088
        %1362 = vmatprep.subr.mxu0 0.0
        %1363 = vmatpush1.msra.mxu0 %v1091
        %1364 = vmatprep.subr.mxu0 0.0
        %1365 = vmatpush1.msra.mxu0 %v1094
        %1366 = vmatprep.subr.mxu0 0.0
        %1367 = vmatpush1.msra.mxu0 %v1097
        %1368 = vmatprep.subr.mxu0 0.0
        %1369 = vmatpush1.msra.mxu0 %v1100
        %1370 = vmatprep.subr.mxu0 0.0
        %1371 = vmatpush1.msra.mxu0 %v1103
        %1372 = vmatprep.subr.mxu0 0.0
        %1373 = vmatpush1.msra.mxu0 %v1106
        %1374 = vmatprep.subr.mxu0 0.0
        %1375 = vmatpush1.msra.mxu0 %v1109
        %1376 = vmatprep.subr.mxu0 0.0
        %1377 = vmatpush1.msra.mxu0 %v1112
        %1378 = vmatprep.subr.mxu0 0.0
        %1379 = vmatpush1.msra.mxu0 %v1115
        %1380 = vmatprep.subr.mxu0 0.0
        %1381 = vmatpush1.msra.mxu0 %v1118
        %1382 = vmatprep.subr.mxu0 0.0
        %1383 = vmatpush1.msra.mxu0 %v1121
        %1384 = vmatprep.subr.mxu0 0.0
        %1385 = vmatpush1.msra.mxu0 %v1124
        %1386 = vmatprep.subr.mxu0 0.0
        %1387 = vmatpush1.msra.mxu0 %v1127
        %1388 = vmatprep.mubr.f32.mxu0 %v1152
        %1389 = vmatmul.mubr.f32.gmra.mrb[0].mxu0 %v1149
        %v1390 = vpop.f32.mrb[0].mxu0
        %v1391 = vadd.f32 0.0, %v1390
        %v1392 = vpop.f32.mrb[0].mxu0
        %1393 = vmatprep.mubr.f32.mxu0 %v1159
        %1394 = vmatmul.mubr.f32.gmra.mrb[0].mxu0 %v1157
        %v1395 = vpop.f32.mrb[0].mxu0
        %v1396 = vadd.f32 0.0, %v1395
        %v1397 = vpop.f32.mrb[0].mxu0
        %1398 = vdwg.mxu0
        %1399 = vmatprep.subr.mxu0 0.0
        %1400 = vmatpush1.msra.mxu0 %v1130
        %1401 = vmatprep.subr.mxu0 0.0
        %1402 = vmatpush1.msra.mxu0 %v1133
        %1403 = vmatprep.subr.mxu0 0.0
        %1404 = vmatpush1.msra.mxu0 %v1136
        %1405 = vmatprep.subr.mxu0 0.0
        %1406 = vmatpush1.msra.mxu0 %v1139
        %1407 = vmatprep.subr.mxu0 0.0
        %1408 = vmatpush1.msra.mxu0 0.0
        %1409 = vmatprep.subr.mxu0 0.0
        %1410 = vmatpush1.msra.mxu0 0.0
        %1411 = vmatprep.subr.mxu0 0.0
        %1412 = vmatpush1.msra.mxu0 0.0
        %1413 = vmatprep.subr.mxu0 0.0
        %1414 = vmatpush1.msra.mxu0 0.0
        %1415 = vmatprep.subr.mxu0 0.0
        %1416 = vmatpush1.msra.mxu0 0.0
        %1417 = vmatprep.subr.mxu0 0.0
        %1418 = vmatpush1.msra.mxu0 0.0
        %1419 = vmatprep.subr.mxu0 0.0
        %1420 = vmatpush1.msra.mxu0 0.0
        %1421 = vmatprep.subr.mxu0 0.0
        %1422 = vmatpush1.msra.mxu0 0.0
        %1423 = vmatprep.subr.mxu0 0.0
        %1424 = vmatpush1.msra.mxu0 0.0
        %1425 = vmatprep.subr.mxu0 0.0
        %1426 = vmatpush1.msra.mxu0 0.0
        %1427 = vmatprep.subr.mxu0 0.0
        %1428 = vmatpush1.msra.mxu0 0.0
        %1429 = vmatprep.subr.mxu0 0.0
        %1430 = vmatpush1.msra.mxu0 0.0
        %1431 = vmatprep.subr.mxu0 0.0
        %1432 = vmatpush1.msra.mxu0 0.0
        %1433 = vmatprep.subr.mxu0 0.0
        %1434 = vmatpush1.msra.mxu0 0.0
        %1435 = vmatprep.subr.mxu0 0.0
        %1436 = vmatpush1.msra.mxu0 0.0
        %1437 = vmatprep.subr.mxu0 0.0
        %1438 = vmatpush1.msra.mxu0 0.0
        %1439 = vmatprep.subr.mxu0 0.0
        %1440 = vmatpush1.msra.mxu0 0.0
        %1441 = vmatprep.subr.mxu0 0.0
        %1442 = vmatpush1.msra.mxu0 0.0
        %1443 = vmatprep.subr.mxu0 0.0
        %1444 = vmatpush1.msra.mxu0 0.0
        %1445 = vmatprep.subr.mxu0 0.0
        %1446 = vmatpush1.msra.mxu0 0.0
        %1447 = vmatprep.subr.mxu0 0.0
        %1448 = vmatpush1.msra.mxu0 0.0
        %1449 = vmatprep.subr.mxu0 0.0
        %1450 = vmatpush1.msra.mxu0 0.0
        %1451 = vmatprep.subr.mxu0 0.0
        %1452 = vmatpush1.msra.mxu0 0.0
        %1453 = vmatprep.subr.mxu0 0.0
        %1454 = vmatpush1.msra.mxu0 0.0
        %1455 = vmatprep.subr.mxu0 0.0
        %1456 = vmatpush1.msra.mxu0 0.0
        %1457 = vmatprep.subr.mxu0 0.0
        %1458 = vmatpush1.msra.mxu0 0.0
        %1459 = vmatprep.subr.mxu0 0.0
        %1460 = vmatpush1.msra.mxu0 0.0
        %1461 = vmatprep.subr.mxu0 0.0
        %1462 = vmatpush1.msra.mxu0 0.0
        %1463 = vmatprep.mubr.f32.mxu0 0.0
        %1464 = vmatmul.mubr.f32.gmra.mrb[0].mxu0 %v1166
        %v1465 = vpop.f32.mrb[0].mxu0
        %v1466 = vadd.f32 %v1391, %v1465
        %v1467 = vpop.f32.mrb[0].mxu0
        %1468 = vmatprep.mubr.f32.mxu0 0.0
        %1469 = vmatmul.mubr.f32.gmra.mrb[0].mxu0 %v1168
        %v1470 = vpop.f32.mrb[0].mxu0
        %v1471 = vadd.f32 %v1396, %v1470
        %v1472 = vpop.f32.mrb[0].mxu0
        %1473 = vdwg.mxu0
        %v1474 = vadd.f32 %v872, %v1314
        %v1475 = vadd.f32 %v874, %v1316
        %v1476 = vadd.f32 %v1024, %v1466
        %v1477 = vadd.f32 %v878, %v1320
        %v1478 = vadd.f32 %v880, %v1322
        %v1479 = vadd.f32 %v1029, %v1471
        %v1480 = vld [vmem:[%s1 + $0xa20] sm:$0xff]
        %v1481 = vld [vmem:[%s1 + $0xa28] sm:$0xff]
        %v1482 = vld [vmem:[%s1 + $0xa30] sm:$0xff]
        %v1483 = vld [vmem:[%s1 + $0xa38] sm:$0xff]
        %v1484 = vld [vmem:[%s1 + $0xa40] sm:$0xff]
        %v1485 = vld [vmem:[%s1 + $0xa48] sm:$0xff]
        %v1486 = vld [vmem:[%s1 + $0xa50] sm:$0xff]
        %v1487 = vld [vmem:[%s1 + $0xa58] sm:$0xff]
        %v1488 = vld [vmem:[%s1 + $0xa60] sm:$0xff]
        %v1489 = vld [vmem:[%s1 + $0xa68] sm:$0xff]
        %v1490 = vld [vmem:[%s1 + $0xa70] sm:$0xff]
        %v1491 = vld [vmem:[%s1 + $0xa78] sm:$0xff]
        %v1492 = vld [vmem:[%s1 + $0xa80] sm:$0xff]
        %v1493 = vld [vmem:[%s1 + $0xa88] sm:$0xff]
        %v1494 = vld [vmem:[%s1 + $0xa90] sm:$0xff]
        %v1495 = vld [vmem:[%s1 + $0xa98] sm:$0xff]
        %v1496 = vld [vmem:[%s1 + $0xaa0] sm:$0xff]
        %v1497 = vld [vmem:[%s1 + $0xaa8] sm:$0xff]
        %v1498 = vld [vmem:[%s1 + $0xab0] sm:$0xff]
        %v1499 = vld [vmem:[%s1 + $0xab8] sm:$0xff]
        %v1500 = vld [vmem:[%s1 + $0xac0] sm:$0xff]
        %v1501 = vld [vmem:[%s1 + $0xac8] sm:$0xff]
        %v1502 = vld [vmem:[%s1 + $0xad0] sm:$0xff]
        %v1503 = vld [vmem:[%s1 + $0xad8] sm:$0xff]
        %v1504 = vld [vmem:[%s1 + $0xae0] sm:$0xff]
        %v1505 = vld [vmem:[%s1 + $0xae8] sm:$0xff]
        %v1506 = vld [vmem:[%s1 + $0xaf0] sm:$0xff]
        %v1507 = vld [vmem:[%s1 + $0xaf8] sm:$0xff]
        %v1508 = vld [vmem:[%s1 + $0xb00] sm:$0xff]
        %v1509 = vld [vmem:[%s1 + $0xb08] sm:$0xff]
        %v1510 = vld [vmem:[%s1 + $0xb10] sm:$0xff]
        %v1511 = vld [vmem:[%s1 + $0xb18] sm:$0xff]
        %v1512 = vld [vmem:[%s1 + $0xb20] sm:$0xff]
        %v1513 = vld [vmem:[%s1 + $0xb28] sm:$0xff]
        %v1514 = vld [vmem:[%s1 + $0xb30] sm:$0xff]
        %v1515 = vld [vmem:[%s1 + $0xb38] sm:$0xff]
        %v1516 = vld [vmem:[%s1 + $0xb40] sm:$0xff]
        %v1517 = vld [vmem:[%s1 + $0xb48] sm:$0xff]
        %v1518 = vld [vmem:[%s1 + $0xb50] sm:$0xff]
        %v1519 = vld [vmem:[%s1 + $0xb58] sm:$0xff]
        %v1520 = vld [vmem:[%s1 + $0xb60] sm:$0xff]
        %v1521 = vld [vmem:[%s1 + $0xb68] sm:$0xff]
        %v1522 = vld [vmem:[%s1 + $0xb70] sm:$0xff]
        %v1523 = vld [vmem:[%s1 + $0xb78] sm:$0xff]
        %v1524 = vld [vmem:[%s1 + $0xb80] sm:$0xff]
        %v1525 = vld [vmem:[%s1 + $0xb88] sm:$0xff]
        %v1526 = vld [vmem:[%s1 + $0xb90] sm:$0xff]
        %v1527 = vld [vmem:[%s1 + $0xb98] sm:$0xff]
        %v1528 = vld [vmem:[%s1 + $0xba0] sm:$0xff]
        %v1529 = vld [vmem:[%s1 + $0xba8] sm:$0xff]
        %v1530 = vld [vmem:[%s1 + $0xbb0] sm:$0xff]
        %v1531 = vld [vmem:[%s1 + $0xbb8] sm:$0xff]
        %v1532 = vld [vmem:[%s1 + $0xbc0] sm:$0xff]
        %v1533 = vld [vmem:[%s1 + $0xbc8] sm:$0xff]
        %v1534 = vld [vmem:[%s1 + $0xbd0] sm:$0xff]
        %v1535 = vld [vmem:[%s1 + $0xbd8] sm:$0xff]
        %v1536 = vld [vmem:[%s1 + $0xbe0] sm:$0xff]
        %v1537 = vld [vmem:[%s1 + $0xbe8] sm:$0xff]
        %v1538 = vld [vmem:[%s1 + $0xbf0] sm:$0xff]
        %v1539 = vld [vmem:[%s1 + $0xbf8] sm:$0xff]
        %v1540 = vld [vmem:[%s1 + $0xc00] sm:$0xff]
        %v1541 = vld [vmem:[%s1 + $0xc08] sm:$0xff]
        %v1542 = vld [vmem:[%s1 + $0xc10] sm:$0xff]
        %v1543 = vld [vmem:[%s1 + $0xc18] sm:$0xff]
        %v1544 = vld [vmem:[%s1 + $0xc20] sm:$0xff]
        %v1545 = vld [vmem:[%s1 + $0xc28] sm:$0xff]
        %v1546 = vld [vmem:[%s1 + $0xc30] sm:$0xff]
        %v1547 = vld [vmem:[%s1 + $0xc38] sm:$0xff]
        %v1548 = vld [vmem:[%s1 + $0xc40] sm:$0xff]
        %v1549 = vld [vmem:[%s1 + $0xc48] sm:$0xff]
        %v1550 = vld [vmem:[%s1 + $0xc50] sm:$0xff]
        %v1551 = vld [vmem:[%s1 + $0xc58] sm:$0xff]
        %v1552 = vld [vmem:[%s1 + $0xc60] sm:$0xff]
        %v1553 = vld [vmem:[%s1 + $0xc68] sm:$0xff]
        %v1554 = vld [vmem:[%s1 + $0xc70] sm:$0xff]
        %v1555 = vld [vmem:[%s1 + $0xc78] sm:$0xff]
        %v1556 = vld [vmem:[%s1 + $0xc80] sm:$0xff]
        %v1557 = vld [vmem:[%s1 + $0xc88] sm:$0xff]
        %v1558 = vld [vmem:[%s1 + $0xc90] sm:$0xff]
        %v1559 = vld [vmem:[%s1 + $0xc98] sm:$0xff]
        %v1560 = vld [vmem:[%s1 + $0xca0] sm:$0xff]
        %v1561 = vld [vmem:[%s1 + $0xca8] sm:$0xff]
        %v1562 = vld [vmem:[%s1 + $0xcb0] sm:$0xff]
        %v1563 = vld [vmem:[%s1 + $0xcb8] sm:$0xff]
        %v1564 = vld [vmem:[%s1 + $0xcc0] sm:$0xff]
        %v1565 = vld [vmem:[%s1 + $0xcc8] sm:$0xff]
        %v1566 = vld [vmem:[%s1 + $0xcd0] sm:$0xff]
        %v1567 = vld [vmem:[%s1 + $0xcd8] sm:$0xff]
        %v1568 = vld [vmem:[%s1 + $0xce0] sm:$0xff]
        %v1569 = vld [vmem:[%s1 + $0xce8] sm:$0xff]
        %v1570 = vld [vmem:[%s1 + $0xcf0] sm:$0xff]
        %v1571 = vld [vmem:[%s1 + $0xcf8] sm:$0xff]
        %v1572 = vld [vmem:[%s1 + $0xd00] sm:$0xff]
        %v1573 = vld [vmem:[%s1 + $0xd08] sm:$0xff]
        %v1574 = vld [vmem:[%s1 + $0xd10] sm:$0xff]
        %v1575 = vld [vmem:[%s1 + $0xd18] sm:$0xff]
        %v1576 = vld [vmem:[%s1 + $0xd20] sm:$0xff]
        %v1577 = vld [vmem:[%s1 + $0xd28] sm:$0xff]
        %v1578 = vld [vmem:[%s1 + $0xd30] sm:$0xff]
        %v1579 = vld [vmem:[%s1 + $0xd38] sm:$0xff]
        %v1580 = vld [vmem:[%s1 + $0xd40] sm:$0xff]
        %v1581 = vld [vmem:[%s1 + $0xd48] sm:$0xff]
        %v1582 = vld [vmem:[%s1 + $0xd50] sm:$0xff]
        %v1583 = vld [vmem:[%s1 + $0xd58] sm:$0xff]
        %v1584 = vld [vmem:[%s1 + $0xd60] sm:$0xff]
        %v1585 = vld [vmem:[%s1 + $0xd68] sm:$0xff]
        %v1586 = vld [vmem:[%s1 + $0xd70] sm:$0xff]
        %v1587 = vld [vmem:[%s1 + $0xd78] sm:$0xff]
        %vm1594 = vcmask 1041408
        %v1595 = vrot.slane %v160, 6
        %v1596 = vrot.slane %v145, 6
        %v1597 = vsel %vm1594, %v1595, %v1596
        %v1598 = vrot.slane %v161, 6
        %v1599 = vrot.slane %v146, 6
        %v1600 = vsel %vm1594, %v1598, %v1599
        %v1601 = vrot.slane %v162, 6
        %v1602 = vrot.slane %v147, 6
        %v1603 = vsel %vm1594, %v1601, %v1602
        %v1604 = vrot.slane %v163, 6
        %v1605 = vsel %vm1594, %v1596, %v1604
        %v1606 = vrot.slane %v164, 6
        %v1607 = vsel %vm1594, %v1599, %v1606
        %v1608 = vrot.slane %v165, 6
        %v1609 = vsel %vm1594, %v1602, %v1608
        %v1614 = vsel %vm414, %v1603, 0
        %v1616 = vsel %vm414, %v1609, 0
        %1618 = vmatprep.subr.mxu0 %v1481
        %1619 = vmatpush1.msra.mxu0 %v1480
        %1620 = vmatprep.subr.mxu0 %v1484
        %1621 = vmatpush1.msra.mxu0 %v1483
        %1622 = vmatprep.subr.mxu0 %v1487
        %1623 = vmatpush1.msra.mxu0 %v1486
        %1624 = vmatprep.subr.mxu0 %v1490
        %1625 = vmatpush1.msra.mxu0 %v1489
        %1626 = vmatprep.subr.mxu0 %v1493
        %1627 = vmatpush1.msra.mxu0 %v1492
        %1628 = vmatprep.subr.mxu0 %v1496
        %1629 = vmatpush1.msra.mxu0 %v1495
        %1630 = vmatprep.subr.mxu0 %v1499
        %1631 = vmatpush1.msra.mxu0 %v1498
        %1632 = vmatprep.subr.mxu0 %v1502
        %1633 = vmatpush1.msra.mxu0 %v1501
        %1634 = vmatprep.subr.mxu0 %v1505
        %1635 = vmatpush1.msra.mxu0 %v1504
        %1636 = vmatprep.subr.mxu0 %v1508
        %1637 = vmatpush1.msra.mxu0 %v1507
        %1638 = vmatprep.subr.mxu0 %v1511
        %1639 = vmatpush1.msra.mxu0 %v1510
        %1640 = vmatprep.subr.mxu0 %v1514
        %1641 = vmatpush1.msra.mxu0 %v1513
        %1642 = vmatprep.subr.mxu0 %v1517
        %1643 = vmatpush1.msra.mxu0 %v1516
        %1644 = vmatprep.subr.mxu0 %v1520
        %1645 = vmatpush1.msra.mxu0 %v1519
        %1646 = vmatprep.subr.mxu0 %v1523
        %1647 = vmatpush1.msra.mxu0 %v1522
        %1648 = vmatprep.subr.mxu0 %v1526
        %1649 = vmatpush1.msra.mxu0 %v1525
        %1650 = vmatprep.subr.mxu0 %v1529
        %1651 = vmatpush1.msra.mxu0 %v1528
        %1652 = vmatprep.subr.mxu0 %v1532
        %1653 = vmatpush1.msra.mxu0 %v1531
        %1654 = vmatprep.subr.mxu0 %v1535
        %1655 = vmatpush1.msra.mxu0 %v1534
        %1656 = vmatprep.subr.mxu0 %v1538
        %1657 = vmatpush1.msra.mxu0 %v1537
        %1658 = vmatprep.subr.mxu0 %v1541
        %1659 = vmatpush1.msra.mxu0 %v1540
        %1660 = vmatprep.subr.mxu0 %v1544
        %1661 = vmatpush1.msra.mxu0 %v1543
        %1662 = vmatprep.subr.mxu0 %v1547
        %1663 = vmatpush1.msra.mxu0 %v1546
        %1664 = vmatprep.subr.mxu0 %v1550
        %1665 = vmatpush1.msra.mxu0 %v1549
        %1666 = vmatprep.subr.mxu0 %v1553
        %1667 = vmatpush1.msra.mxu0 %v1552
        %1668 = vmatprep.subr.mxu0 %v1556
        %1669 = vmatpush1.msra.mxu0 %v1555
        %1670 = vmatprep.subr.mxu0 %v1559
        %1671 = vmatpush1.msra.mxu0 %v1558
        %1672 = vmatprep.subr.mxu0 %v1562
        %1673 = vmatpush1.msra.mxu0 %v1561
        %1674 = vmatprep.subr.mxu0 %v1565
        %1675 = vmatpush1.msra.mxu0 %v1564
        %1676 = vmatprep.subr.mxu0 %v1568
        %1677 = vmatpush1.msra.mxu0 %v1567
        %1678 = vmatprep.subr.mxu0 %v1571
        %1679 = vmatpush1.msra.mxu0 %v1570
        %1680 = vmatprep.subr.mxu0 %v1574
        %1681 = vmatpush1.msra.mxu0 %v1573
        %1682 = vmatprep.mubr.f32.mxu0 %v1600
        %1683 = vmatmul.mubr.f32.gmra.mrb[0].mxu0 %v1597
        %v1684 = vpop.f32.mrb[0].mxu0
        %v1685 = vadd.f32 0.0, %v1684
        %v1686 = vpop.f32.mrb[0].mxu0
        %v1687 = vadd.f32 0.0, %v1686
        %1688 = vmatprep.mubr.f32.mxu0 %v1607
        %1689 = vmatmul.mubr.f32.gmra.mrb[0].mxu0 %v1605
        %v1690 = vpop.f32.mrb[0].mxu0
        %v1691 = vadd.f32 0.0, %v1690
        %v1692 = vpop.f32.mrb[0].mxu0
        %v1693 = vadd.f32 0.0, %v1692
        %1694 = vdwg.mxu0
        %1695 = vmatprep.subr.mxu0 %v1577
        %1696 = vmatpush1.msra.mxu0 %v1576
        %1697 = vmatprep.subr.mxu0 %v1580
        %1698 = vmatpush1.msra.mxu0 %v1579
        %1699 = vmatprep.subr.mxu0 %v1583
        %1700 = vmatpush1.msra.mxu0 %v1582
        %1701 = vmatprep.subr.mxu0 %v1586
        %1702 = vmatpush1.msra.mxu0 %v1585
        %1703 = vmatprep.subr.mxu0 0.0
        %1704 = vmatpush1.msra.mxu0 0.0
        %1705 = vmatprep.subr.mxu0 0.0
        %1706 = vmatpush1.msra.mxu0 0.0
        %1707 = vmatprep.subr.mxu0 0.0
        %1708 = vmatpush1.msra.mxu0 0.0
        %1709 = vmatprep.subr.mxu0 0.0
        %1710 = vmatpush1.msra.mxu0 0.0
        %1711 = vmatprep.subr.mxu0 0.0
        %1712 = vmatpush1.msra.mxu0 0.0
        %1713 = vmatprep.subr.mxu0 0.0
        %1714 = vmatpush1.msra.mxu0 0.0
        %1715 = vmatprep.subr.mxu0 0.0
        %1716 = vmatpush1.msra.mxu0 0.0
        %1717 = vmatprep.subr.mxu0 0.0
        %1718 = vmatpush1.msra.mxu0 0.0
        %1719 = vmatprep.subr.mxu0 0.0
        %1720 = vmatpush1.msra.mxu0 0.0
        %1721 = vmatprep.subr.mxu0 0.0
        %1722 = vmatpush1.msra.mxu0 0.0
        %1723 = vmatprep.subr.mxu0 0.0
        %1724 = vmatpush1.msra.mxu0 0.0
        %1725 = vmatprep.subr.mxu0 0.0
        %1726 = vmatpush1.msra.mxu0 0.0
        %1727 = vmatprep.subr.mxu0 0.0
        %1728 = vmatpush1.msra.mxu0 0.0
        %1729 = vmatprep.subr.mxu0 0.0
        %1730 = vmatpush1.msra.mxu0 0.0
        %1731 = vmatprep.subr.mxu0 0.0
        %1732 = vmatpush1.msra.mxu0 0.0
        %1733 = vmatprep.subr.mxu0 0.0
        %1734 = vmatpush1.msra.mxu0 0.0
        %1735 = vmatprep.subr.mxu0 0.0
        %1736 = vmatpush1.msra.mxu0 0.0
        %1737 = vmatprep.subr.mxu0 0.0
        %1738 = vmatpush1.msra.mxu0 0.0
        %1739 = vmatprep.subr.mxu0 0.0
        %1740 = vmatpush1.msra.mxu0 0.0
        %1741 = vmatprep.subr.mxu0 0.0
        %1742 = vmatpush1.msra.mxu0 0.0
        %1743 = vmatprep.subr.mxu0 0.0
        %1744 = vmatpush1.msra.mxu0 0.0
        %1745 = vmatprep.subr.mxu0 0.0
        %1746 = vmatpush1.msra.mxu0 0.0
        %1747 = vmatprep.subr.mxu0 0.0
        %1748 = vmatpush1.msra.mxu0 0.0
        %1749 = vmatprep.subr.mxu0 0.0
        %1750 = vmatpush1.msra.mxu0 0.0
        %1751 = vmatprep.subr.mxu0 0.0
        %1752 = vmatpush1.msra.mxu0 0.0
        %1753 = vmatprep.subr.mxu0 0.0
        %1754 = vmatpush1.msra.mxu0 0.0
        %1755 = vmatprep.subr.mxu0 0.0
        %1756 = vmatpush1.msra.mxu0 0.0
        %1757 = vmatprep.subr.mxu0 0.0
        %1758 = vmatpush1.msra.mxu0 0.0
        %1759 = vmatprep.mubr.f32.mxu0 0.0
        %1760 = vmatmul.mubr.f32.gmra.mrb[0].mxu0 %v1614
        %v1761 = vpop.f32.mrb[0].mxu0
        %v1762 = vadd.f32 %v1685, %v1761
        %v1763 = vpop.f32.mrb[0].mxu0
        %v1764 = vadd.f32 %v1687, %v1763
        %1765 = vmatprep.mubr.f32.mxu0 0.0
        %1766 = vmatmul.mubr.f32.gmra.mrb[0].mxu0 %v1616
        %v1767 = vpop.f32.mrb[0].mxu0
        %v1768 = vadd.f32 %v1691, %v1767
        %v1769 = vpop.f32.mrb[0].mxu0
        %v1770 = vadd.f32 %v1693, %v1769
        %1771 = vdwg.mxu0
        %1772 = vmatprep.subr.mxu0 0.0
        %1773 = vmatpush1.msra.mxu0 %v1482
        %1774 = vmatprep.subr.mxu0 0.0
        %1775 = vmatpush1.msra.mxu0 %v1485
        %1776 = vmatprep.subr.mxu0 0.0
        %1777 = vmatpush1.msra.mxu0 %v1488
        %1778 = vmatprep.subr.mxu0 0.0
        %1779 = vmatpush1.msra.mxu0 %v1491
        %1780 = vmatprep.subr.mxu0 0.0
        %1781 = vmatpush1.msra.mxu0 %v1494
        %1782 = vmatprep.subr.mxu0 0.0
        %1783 = vmatpush1.msra.mxu0 %v1497
        %1784 = vmatprep.subr.mxu0 0.0
        %1785 = vmatpush1.msra.mxu0 %v1500
        %1786 = vmatprep.subr.mxu0 0.0
        %1787 = vmatpush1.msra.mxu0 %v1503
        %1788 = vmatprep.subr.mxu0 0.0
        %1789 = vmatpush1.msra.mxu0 %v1506
        %1790 = vmatprep.subr.mxu0 0.0
        %1791 = vmatpush1.msra.mxu0 %v1509
        %1792 = vmatprep.subr.mxu0 0.0
        %1793 = vmatpush1.msra.mxu0 %v1512
        %1794 = vmatprep.subr.mxu0 0.0
        %1795 = vmatpush1.msra.mxu0 %v1515
        %1796 = vmatprep.subr.mxu0 0.0
        %1797 = vmatpush1.msra.mxu0 %v1518
        %1798 = vmatprep.subr.mxu0 0.0
        %1799 = vmatpush1.msra.mxu0 %v1521
        %1800 = vmatprep.subr.mxu0 0.0
        %1801 = vmatpush1.msra.mxu0 %v1524
        %1802 = vmatprep.subr.mxu0 0.0
        %1803 = vmatpush1.msra.mxu0 %v1527
        %1804 = vmatprep.subr.mxu0 0.0
        %1805 = vmatpush1.msra.mxu0 %v1530
        %1806 = vmatprep.subr.mxu0 0.0
        %1807 = vmatpush1.msra.mxu0 %v1533
        %1808 = vmatprep.subr.mxu0 0.0
        %1809 = vmatpush1.msra.mxu0 %v1536
        %1810 = vmatprep.subr.mxu0 0.0
        %1811 = vmatpush1.msra.mxu0 %v1539
        %1812 = vmatprep.subr.mxu0 0.0
        %1813 = vmatpush1.msra.mxu0 %v1542
        %1814 = vmatprep.subr.mxu0 0.0
        %1815 = vmatpush1.msra.mxu0 %v1545
        %1816 = vmatprep.subr.mxu0 0.0
        %1817 = vmatpush1.msra.mxu0 %v1548
        %1818 = vmatprep.subr.mxu0 0.0
        %1819 = vmatpush1.msra.mxu0 %v1551
        %1820 = vmatprep.subr.mxu0 0.0
        %1821 = vmatpush1.msra.mxu0 %v1554
        %1822 = vmatprep.subr.mxu0 0.0
        %1823 = vmatpush1.msra.mxu0 %v1557
        %1824 = vmatprep.subr.mxu0 0.0
        %1825 = vmatpush1.msra.mxu0 %v1560
        %1826 = vmatprep.subr.mxu0 0.0
        %1827 = vmatpush1.msra.mxu0 %v1563
        %1828 = vmatprep.subr.mxu0 0.0
        %1829 = vmatpush1.msra.mxu0 %v1566
        %1830 = vmatprep.subr.mxu0 0.0
        %1831 = vmatpush1.msra.mxu0 %v1569
        %1832 = vmatprep.subr.mxu0 0.0
        %1833 = vmatpush1.msra.mxu0 %v1572
        %1834 = vmatprep.subr.mxu0 0.0
        %1835 = vmatpush1.msra.mxu0 %v1575
        %1836 = vmatprep.mubr.f32.mxu0 %v1600
        %1837 = vmatmul.mubr.f32.gmra.mrb[0].mxu0 %v1597
        %v1838 = vpop.f32.mrb[0].mxu0
        %v1839 = vadd.f32 0.0, %v1838
        %v1840 = vpop.f32.mrb[0].mxu0
        %1841 = vmatprep.mubr.f32.mxu0 %v1607
        %1842 = vmatmul.mubr.f32.gmra.mrb[0].mxu0 %v1605
        %v1843 = vpop.f32.mrb[0].mxu0
        %v1844 = vadd.f32 0.0, %v1843
        %v1845 = vpop.f32.mrb[0].mxu0
        %1846 = vdwg.mxu0
        %1847 = vmatprep.subr.mxu0 0.0
        %1848 = vmatpush1.msra.mxu0 %v1578
        %1849 = vmatprep.subr.mxu0 0.0
        %1850 = vmatpush1.msra.mxu0 %v1581
        %1851 = vmatprep.subr.mxu0 0.0
        %1852 = vmatpush1.msra.mxu0 %v1584
        %1853 = vmatprep.subr.mxu0 0.0
        %1854 = vmatpush1.msra.mxu0 %v1587
        %1855 = vmatprep.subr.mxu0 0.0
        %1856 = vmatpush1.msra.mxu0 0.0
        %1857 = vmatprep.subr.mxu0 0.0
        %1858 = vmatpush1.msra.mxu0 0.0
        %1859 = vmatprep.subr.mxu0 0.0
        %1860 = vmatpush1.msra.mxu0 0.0
        %1861 = vmatprep.subr.mxu0 0.0
        %1862 = vmatpush1.msra.mxu0 0.0
        %1863 = vmatprep.subr.mxu0 0.0
        %1864 = vmatpush1.msra.mxu0 0.0
        %1865 = vmatprep.subr.mxu0 0.0
        %1866 = vmatpush1.msra.mxu0 0.0
        %1867 = vmatprep.subr.mxu0 0.0
        %1868 = vmatpush1.msra.mxu0 0.0
        %1869 = vmatprep.subr.mxu0 0.0
        %1870 = vmatpush1.msra.mxu0 0.0
        %1871 = vmatprep.subr.mxu0 0.0
        %1872 = vmatpush1.msra.mxu0 0.0
        %1873 = vmatprep.subr.mxu0 0.0
        %1874 = vmatpush1.msra.mxu0 0.0
        %1875 = vmatprep.subr.mxu0 0.0
        %1876 = vmatpush1.msra.mxu0 0.0
        %1877 = vmatprep.subr.mxu0 0.0
        %1878 = vmatpush1.msra.mxu0 0.0
        %1879 = vmatprep.subr.mxu0 0.0
        %1880 = vmatpush1.msra.mxu0 0.0
        %1881 = vmatprep.subr.mxu0 0.0
        %1882 = vmatpush1.msra.mxu0 0.0
        %1883 = vmatprep.subr.mxu0 0.0
        %1884 = vmatpush1.msra.mxu0 0.0
        %1885 = vmatprep.subr.mxu0 0.0
        %1886 = vmatpush1.msra.mxu0 0.0
        %1887 = vmatprep.subr.mxu0 0.0
        %1888 = vmatpush1.msra.mxu0 0.0
        %1889 = vmatprep.subr.mxu0 0.0
        %1890 = vmatpush1.msra.mxu0 0.0
        %1891 = vmatprep.subr.mxu0 0.0
        %1892 = vmatpush1.msra.mxu0 0.0
        %1893 = vmatprep.subr.mxu0 0.0
        %1894 = vmatpush1.msra.mxu0 0.0
        %1895 = vmatprep.subr.mxu0 0.0
        %1896 = vmatpush1.msra.mxu0 0.0
        %1897 = vmatprep.subr.mxu0 0.0
        %1898 = vmatpush1.msra.mxu0 0.0
        %1899 = vmatprep.subr.mxu0 0.0
        %1900 = vmatpush1.msra.mxu0 0.0
        %1901 = vmatprep.subr.mxu0 0.0
        %1902 = vmatpush1.msra.mxu0 0.0
        %1903 = vmatprep.subr.mxu0 0.0
        %1904 = vmatpush1.msra.mxu0 0.0
        %1905 = vmatprep.subr.mxu0 0.0
        %1906 = vmatpush1.msra.mxu0 0.0
        %1907 = vmatprep.subr.mxu0 0.0
        %1908 = vmatpush1.msra.mxu0 0.0
        %1909 = vmatprep.subr.mxu0 0.0
        %1910 = vmatpush1.msra.mxu0 0.0
        %1911 = vmatprep.mubr.f32.mxu0 0.0
        %1912 = vmatmul.mubr.f32.gmra.mrb[0].mxu0 %v1614
        %v1913 = vpop.f32.mrb[0].mxu0
        %v1914 = vadd.f32 %v1839, %v1913
        %v1915 = vpop.f32.mrb[0].mxu0
        %1916 = vmatprep.mubr.f32.mxu0 0.0
        %1917 = vmatmul.mubr.f32.gmra.mrb[0].mxu0 %v1616
        %v1918 = vpop.f32.mrb[0].mxu0
        %v1919 = vadd.f32 %v1844, %v1918
        %v1920 = vpop.f32.mrb[0].mxu0
        %1921 = vdwg.mxu0
        %v1922 = vadd.f32 %v1474, %v1762
        %v1923 = vadd.f32 %v1475, %v1764
        %v1924 = vadd.f32 %v1476, %v1914
        %v1925 = vadd.f32 %v1477, %v1768
        %v1926 = vadd.f32 %v1478, %v1770
        %v1927 = vadd.f32 %v1479, %v1919
        %v1928 = vld [vmem:[%s1 + $0xd80] sm:$0xff]
        %v1929 = vld [vmem:[%s1 + $0xd88] sm:$0xff]
        %v1930 = vld [vmem:[%s1 + $0xd90] sm:$0xff]
        %v1931 = vld [vmem:[%s1 + $0xd98] sm:$0xff]
        %v1932 = vld [vmem:[%s1 + $0xda0] sm:$0xff]
        %v1933 = vld [vmem:[%s1 + $0xda8] sm:$0xff]
        %v1934 = vld [vmem:[%s1 + $0xdb0] sm:$0xff]
        %v1935 = vld [vmem:[%s1 + $0xdb8] sm:$0xff]
        %v1936 = vld [vmem:[%s1 + $0xdc0] sm:$0xff]
        %v1937 = vld [vmem:[%s1 + $0xdc8] sm:$0xff]
        %v1938 = vld [vmem:[%s1 + $0xdd0] sm:$0xff]
        %v1939 = vld [vmem:[%s1 + $0xdd8] sm:$0xff]
        %v1940 = vld [vmem:[%s1 + $0xde0] sm:$0xff]
        %v1941 = vld [vmem:[%s1 + $0xde8] sm:$0xff]
        %v1942 = vld [vmem:[%s1 + $0xdf0] sm:$0xff]
        %v1943 = vld [vmem:[%s1 + $0xdf8] sm:$0xff]
        %v1944 = vld [vmem:[%s1 + $0xe00] sm:$0xff]
        %v1945 = vld [vmem:[%s1 + $0xe08] sm:$0xff]
        %v1946 = vld [vmem:[%s1 + $0xe10] sm:$0xff]
        %v1947 = vld [vmem:[%s1 + $0xe18] sm:$0xff]
        %v1948 = vld [vmem:[%s1 + $0xe20] sm:$0xff]
        %v1949 = vld [vmem:[%s1 + $0xe28] sm:$0xff]
        %v1950 = vld [vmem:[%s1 + $0xe30] sm:$0xff]
        %v1951 = vld [vmem:[%s1 + $0xe38] sm:$0xff]
        %v1952 = vld [vmem:[%s1 + $0xe40] sm:$0xff]
        %v1953 = vld [vmem:[%s1 + $0xe48] sm:$0xff]
        %v1954 = vld [vmem:[%s1 + $0xe50] sm:$0xff]
        %v1955 = vld [vmem:[%s1 + $0xe58] sm:$0xff]
        %v1956 = vld [vmem:[%s1 + $0xe60] sm:$0xff]
        %v1957 = vld [vmem:[%s1 + $0xe68] sm:$0xff]
        %v1958 = vld [vmem:[%s1 + $0xe70] sm:$0xff]
        %v1959 = vld [vmem:[%s1 + $0xe78] sm:$0xff]
        %v1960 = vld [vmem:[%s1 + $0xe80] sm:$0xff]
        %v1961 = vld [vmem:[%s1 + $0xe88] sm:$0xff]
        %v1962 = vld [vmem:[%s1 + $0xe90] sm:$0xff]
        %v1963 = vld [vmem:[%s1 + $0xe98] sm:$0xff]
        %v1964 = vld [vmem:[%s1 + $0xea0] sm:$0xff]
        %v1965 = vld [vmem:[%s1 + $0xea8] sm:$0xff]
        %v1966 = vld [vmem:[%s1 + $0xeb0] sm:$0xff]
        %v1967 = vld [vmem:[%s1 + $0xeb8] sm:$0xff]
        %v1968 = vld [vmem:[%s1 + $0xec0] sm:$0xff]
        %v1969 = vld [vmem:[%s1 + $0xec8] sm:$0xff]
        %v1970 = vld [vmem:[%s1 + $0xed0] sm:$0xff]
        %v1971 = vld [vmem:[%s1 + $0xed8] sm:$0xff]
        %v1972 = vld [vmem:[%s1 + $0xee0] sm:$0xff]
        %v1973 = vld [vmem:[%s1 + $0xee8] sm:$0xff]
        %v1974 = vld [vmem:[%s1 + $0xef0] sm:$0xff]
        %v1975 = vld [vmem:[%s1 + $0xef8] sm:$0xff]
        %v1976 = vld [vmem:[%s1 + $0xf00] sm:$0xff]
        %v1977 = vld [vmem:[%s1 + $0xf08] sm:$0xff]
        %v1978 = vld [vmem:[%s1 + $0xf10] sm:$0xff]
        %v1979 = vld [vmem:[%s1 + $0xf18] sm:$0xff]
        %v1980 = vld [vmem:[%s1 + $0xf20] sm:$0xff]
        %v1981 = vld [vmem:[%s1 + $0xf28] sm:$0xff]
        %v1982 = vld [vmem:[%s1 + $0xf30] sm:$0xff]
        %v1983 = vld [vmem:[%s1 + $0xf38] sm:$0xff]
        %v1984 = vld [vmem:[%s1 + $0xf40] sm:$0xff]
        %v1985 = vld [vmem:[%s1 + $0xf48] sm:$0xff]
        %v1986 = vld [vmem:[%s1 + $0xf50] sm:$0xff]
        %v1987 = vld [vmem:[%s1 + $0xf58] sm:$0xff]
        %v1988 = vld [vmem:[%s1 + $0xf60] sm:$0xff]
        %v1989 = vld [vmem:[%s1 + $0xf68] sm:$0xff]
        %v1990 = vld [vmem:[%s1 + $0xf70] sm:$0xff]
        %v1991 = vld [vmem:[%s1 + $0xf78] sm:$0xff]
        %v1992 = vld [vmem:[%s1 + $0xf80] sm:$0xff]
        %v1993 = vld [vmem:[%s1 + $0xf88] sm:$0xff]
        %v1994 = vld [vmem:[%s1 + $0xf90] sm:$0xff]
        %v1995 = vld [vmem:[%s1 + $0xf98] sm:$0xff]
        %v1996 = vld [vmem:[%s1 + $0xfa0] sm:$0xff]
        %v1997 = vld [vmem:[%s1 + $0xfa8] sm:$0xff]
        %v1998 = vld [vmem:[%s1 + $0xfb0] sm:$0xff]
        %v1999 = vld [vmem:[%s1 + $0xfb8] sm:$0xff]
        %v2000 = vld [vmem:[%s1 + $0xfc0] sm:$0xff]
        %v2001 = vld [vmem:[%s1 + $0xfc8] sm:$0xff]
        %v2002 = vld [vmem:[%s1 + $0xfd0] sm:$0xff]
        %v2003 = vld [vmem:[%s1 + $0xfd8] sm:$0xff]
        %v2004 = vld [vmem:[%s1 + $0xfe0] sm:$0xff]
        %v2005 = vld [vmem:[%s1 + $0xfe8] sm:$0xff]
        %v2006 = vld [vmem:[%s1 + $0xff0] sm:$0xff]
        %v2007 = vld [vmem:[%s1 + $0xff8] sm:$0xff]
        %v2008 = vld [vmem:[%s1 + $0x1000] sm:$0xff]
        %v2009 = vld [vmem:[%s1 + $0x1008] sm:$0xff]
        %v2010 = vld [vmem:[%s1 + $0x1010] sm:$0xff]
        %v2011 = vld [vmem:[%s1 + $0x1018] sm:$0xff]
        %v2012 = vld [vmem:[%s1 + $0x1020] sm:$0xff]
        %v2013 = vld [vmem:[%s1 + $0x1028] sm:$0xff]
        %v2014 = vld [vmem:[%s1 + $0x1030] sm:$0xff]
        %v2015 = vld [vmem:[%s1 + $0x1038] sm:$0xff]
        %v2016 = vld [vmem:[%s1 + $0x1040] sm:$0xff]
        %v2017 = vld [vmem:[%s1 + $0x1048] sm:$0xff]
        %v2018 = vld [vmem:[%s1 + $0x1050] sm:$0xff]
        %v2019 = vld [vmem:[%s1 + $0x1058] sm:$0xff]
        %v2020 = vld [vmem:[%s1 + $0x1060] sm:$0xff]
        %v2021 = vld [vmem:[%s1 + $0x1068] sm:$0xff]
        %v2022 = vld [vmem:[%s1 + $0x1070] sm:$0xff]
        %v2023 = vld [vmem:[%s1 + $0x1078] sm:$0xff]
        %v2024 = vld [vmem:[%s1 + $0x1080] sm:$0xff]
        %v2025 = vld [vmem:[%s1 + $0x1088] sm:$0xff]
        %v2026 = vld [vmem:[%s1 + $0x1090] sm:$0xff]
        %v2027 = vld [vmem:[%s1 + $0x1098] sm:$0xff]
        %v2028 = vld [vmem:[%s1 + $0x10a0] sm:$0xff]
        %v2029 = vld [vmem:[%s1 + $0x10a8] sm:$0xff]
        %v2030 = vld [vmem:[%s1 + $0x10b0] sm:$0xff]
        %v2031 = vld [vmem:[%s1 + $0x10b8] sm:$0xff]
        %v2032 = vld [vmem:[%s1 + $0x10c0] sm:$0xff]
        %v2033 = vld [vmem:[%s1 + $0x10c8] sm:$0xff]
        %v2034 = vld [vmem:[%s1 + $0x10d0] sm:$0xff]
        %v2035 = vld [vmem:[%s1 + $0x10d8] sm:$0xff]
        %v2037 = vsel %vm414, %v168, 0
        %2039 = vmatprep.subr.mxu0 %v1929
        %2040 = vmatpush1.msra.mxu0 %v1928
        %2041 = vmatprep.subr.mxu0 %v1932
        %2042 = vmatpush1.msra.mxu0 %v1931
        %2043 = vmatprep.subr.mxu0 %v1935
        %2044 = vmatpush1.msra.mxu0 %v1934
        %2045 = vmatprep.subr.mxu0 %v1938
        %2046 = vmatpush1.msra.mxu0 %v1937
        %2047 = vmatprep.subr.mxu0 %v1941
        %2048 = vmatpush1.msra.mxu0 %v1940
        %2049 = vmatprep.subr.mxu0 %v1944
        %2050 = vmatpush1.msra.mxu0 %v1943
        %2051 = vmatprep.subr.mxu0 %v1947
        %2052 = vmatpush1.msra.mxu0 %v1946
        %2053 = vmatprep.subr.mxu0 %v1950
        %2054 = vmatpush1.msra.mxu0 %v1949
        %2055 = vmatprep.subr.mxu0 %v1953
        %2056 = vmatpush1.msra.mxu0 %v1952
        %2057 = vmatprep.subr.mxu0 %v1956
        %2058 = vmatpush1.msra.mxu0 %v1955
        %2059 = vmatprep.subr.mxu0 %v1959
        %2060 = vmatpush1.msra.mxu0 %v1958
        %2061 = vmatprep.subr.mxu0 %v1962
        %2062 = vmatpush1.msra.mxu0 %v1961
        %2063 = vmatprep.subr.mxu0 %v1965
        %2064 = vmatpush1.msra.mxu0 %v1964
        %2065 = vmatprep.subr.mxu0 %v1968
        %2066 = vmatpush1.msra.mxu0 %v1967
        %2067 = vmatprep.subr.mxu0 %v1971
        %2068 = vmatpush1.msra.mxu0 %v1970
        %2069 = vmatprep.subr.mxu0 %v1974
        %2070 = vmatpush1.msra.mxu0 %v1973
        %2071 = vmatprep.subr.mxu0 %v1977
        %2072 = vmatpush1.msra.mxu0 %v1976
        %2073 = vmatprep.subr.mxu0 %v1980
        %2074 = vmatpush1.msra.mxu0 %v1979
        %2075 = vmatprep.subr.mxu0 %v1983
        %2076 = vmatpush1.msra.mxu0 %v1982
        %2077 = vmatprep.subr.mxu0 %v1986
        %2078 = vmatpush1.msra.mxu0 %v1985
        %2079 = vmatprep.subr.mxu0 %v1989
        %2080 = vmatpush1.msra.mxu0 %v1988
        %2081 = vmatprep.subr.mxu0 %v1992
        %2082 = vmatpush1.msra.mxu0 %v1991
        %2083 = vmatprep.subr.mxu0 %v1995
        %2084 = vmatpush1.msra.mxu0 %v1994
        %2085 = vmatprep.subr.mxu0 %v1998
        %2086 = vmatpush1.msra.mxu0 %v1997
        %2087 = vmatprep.subr.mxu0 %v2001
        %2088 = vmatpush1.msra.mxu0 %v2000
        %2089 = vmatprep.subr.mxu0 %v2004
        %2090 = vmatpush1.msra.mxu0 %v2003
        %2091 = vmatprep.subr.mxu0 %v2007
        %2092 = vmatpush1.msra.mxu0 %v2006
        %2093 = vmatprep.subr.mxu0 %v2010
        %2094 = vmatpush1.msra.mxu0 %v2009
        %2095 = vmatprep.subr.mxu0 %v2013
        %2096 = vmatpush1.msra.mxu0 %v2012
        %2097 = vmatprep.subr.mxu0 %v2016
        %2098 = vmatpush1.msra.mxu0 %v2015
        %2099 = vmatprep.subr.mxu0 %v2019
        %2100 = vmatpush1.msra.mxu0 %v2018
        %2101 = vmatprep.subr.mxu0 %v2022
        %2102 = vmatpush1.msra.mxu0 %v2021
        %2103 = vmatprep.mubr.f32.mxu0 %v146
        %2104 = vmatmul.mubr.f32.gmra.mrb[0].mxu0 %v145
        %v2105 = vpop.f32.mrb[0].mxu0
        %v2106 = vadd.f32 0.0, %v2105
        %v2107 = vpop.f32.mrb[0].mxu0
        %v2108 = vadd.f32 0.0, %v2107
        %2109 = vmatprep.mubr.f32.mxu0 %v167
        %2110 = vmatmul.mubr.f32.gmra.mrb[0].mxu0 %v166
        %v2111 = vpop.f32.mrb[0].mxu0
        %v2112 = vadd.f32 0.0, %v2111
        %v2113 = vpop.f32.mrb[0].mxu0
        %v2114 = vadd.f32 0.0, %v2113
        %2115 = vdwg.mxu0
        %2116 = vmatprep.subr.mxu0 %v2025
        %2117 = vmatpush1.msra.mxu0 %v2024
        %2118 = vmatprep.subr.mxu0 %v2028
        %2119 = vmatpush1.msra.mxu0 %v2027
        %2120 = vmatprep.subr.mxu0 %v2031
        %2121 = vmatpush1.msra.mxu0 %v2030
        %2122 = vmatprep.subr.mxu0 %v2034
        %2123 = vmatpush1.msra.mxu0 %v2033
        %2124 = vmatprep.subr.mxu0 0.0
        %2125 = vmatpush1.msra.mxu0 0.0
        %2126 = vmatprep.subr.mxu0 0.0
        %2127 = vmatpush1.msra.mxu0 0.0
        %2128 = vmatprep.subr.mxu0 0.0
        %2129 = vmatpush1.msra.mxu0 0.0
        %2130 = vmatprep.subr.mxu0 0.0
        %2131 = vmatpush1.msra.mxu0 0.0
        %2132 = vmatprep.subr.mxu0 0.0
        %2133 = vmatpush1.msra.mxu0 0.0
        %2134 = vmatprep.subr.mxu0 0.0
        %2135 = vmatpush1.msra.mxu0 0.0
        %2136 = vmatprep.subr.mxu0 0.0
        %2137 = vmatpush1.msra.mxu0 0.0
        %2138 = vmatprep.subr.mxu0 0.0
        %2139 = vmatpush1.msra.mxu0 0.0
        %2140 = vmatprep.subr.mxu0 0.0
        %2141 = vmatpush1.msra.mxu0 0.0
        %2142 = vmatprep.subr.mxu0 0.0
        %2143 = vmatpush1.msra.mxu0 0.0
        %2144 = vmatprep.subr.mxu0 0.0
        %2145 = vmatpush1.msra.mxu0 0.0
        %2146 = vmatprep.subr.mxu0 0.0
        %2147 = vmatpush1.msra.mxu0 0.0
        %2148 = vmatprep.subr.mxu0 0.0
        %2149 = vmatpush1.msra.mxu0 0.0
        %2150 = vmatprep.subr.mxu0 0.0
        %2151 = vmatpush1.msra.mxu0 0.0
        %2152 = vmatprep.subr.mxu0 0.0
        %2153 = vmatpush1.msra.mxu0 0.0
        %2154 = vmatprep.subr.mxu0 0.0
        %2155 = vmatpush1.msra.mxu0 0.0
        %2156 = vmatprep.subr.mxu0 0.0
        %2157 = vmatpush1.msra.mxu0 0.0
        %2158 = vmatprep.subr.mxu0 0.0
        %2159 = vmatpush1.msra.mxu0 0.0
        %2160 = vmatprep.subr.mxu0 0.0
        %2161 = vmatpush1.msra.mxu0 0.0
        %2162 = vmatprep.subr.mxu0 0.0
        %2163 = vmatpush1.msra.mxu0 0.0
        %2164 = vmatprep.subr.mxu0 0.0
        %2165 = vmatpush1.msra.mxu0 0.0
        %2166 = vmatprep.subr.mxu0 0.0
        %2167 = vmatpush1.msra.mxu0 0.0
        %2168 = vmatprep.subr.mxu0 0.0
        %2169 = vmatpush1.msra.mxu0 0.0
        %2170 = vmatprep.subr.mxu0 0.0
        %2171 = vmatpush1.msra.mxu0 0.0
        %2172 = vmatprep.subr.mxu0 0.0
        %2173 = vmatpush1.msra.mxu0 0.0
        %2174 = vmatprep.subr.mxu0 0.0
        %2175 = vmatpush1.msra.mxu0 0.0
        %2176 = vmatprep.subr.mxu0 0.0
        %2177 = vmatpush1.msra.mxu0 0.0
        %2178 = vmatprep.subr.mxu0 0.0
        %2179 = vmatpush1.msra.mxu0 0.0
        %2180 = vmatprep.mubr.f32.mxu0 0.0
        %2181 = vmatmul.mubr.f32.gmra.mrb[0].mxu0 %v726
        %v2182 = vpop.f32.mrb[0].mxu0
        %v2183 = vadd.f32 %v2106, %v2182
        %v2184 = vpop.f32.mrb[0].mxu0
        %v2185 = vadd.f32 %v2108, %v2184
        %2186 = vmatprep.mubr.f32.mxu0 0.0
        %2187 = vmatmul.mubr.f32.gmra.mrb[0].mxu0 %v2037
        %v2188 = vpop.f32.mrb[0].mxu0
        %v2189 = vadd.f32 %v2112, %v2188
        %v2190 = vpop.f32.mrb[0].mxu0
        %v2191 = vadd.f32 %v2114, %v2190
        %2192 = vdwg.mxu0
        %2193 = vmatprep.subr.mxu0 0.0
        %2194 = vmatpush1.msra.mxu0 %v1930
        %2195 = vmatprep.subr.mxu0 0.0
        %2196 = vmatpush1.msra.mxu0 %v1933
        %2197 = vmatprep.subr.mxu0 0.0
        %2198 = vmatpush1.msra.mxu0 %v1936
        %2199 = vmatprep.subr.mxu0 0.0
        %2200 = vmatpush1.msra.mxu0 %v1939
        %2201 = vmatprep.subr.mxu0 0.0
        %2202 = vmatpush1.msra.mxu0 %v1942
        %2203 = vmatprep.subr.mxu0 0.0
        %2204 = vmatpush1.msra.mxu0 %v1945
        %2205 = vmatprep.subr.mxu0 0.0
        %2206 = vmatpush1.msra.mxu0 %v1948
        %2207 = vmatprep.subr.mxu0 0.0
        %2208 = vmatpush1.msra.mxu0 %v1951
        %2209 = vmatprep.subr.mxu0 0.0
        %2210 = vmatpush1.msra.mxu0 %v1954
        %2211 = vmatprep.subr.mxu0 0.0
        %2212 = vmatpush1.msra.mxu0 %v1957
        %2213 = vmatprep.subr.mxu0 0.0
        %2214 = vmatpush1.msra.mxu0 %v1960
        %2215 = vmatprep.subr.mxu0 0.0
        %2216 = vmatpush1.msra.mxu0 %v1963
        %2217 = vmatprep.subr.mxu0 0.0
        %2218 = vmatpush1.msra.mxu0 %v1966
        %2219 = vmatprep.subr.mxu0 0.0
        %2220 = vmatpush1.msra.mxu0 %v1969
        %2221 = vmatprep.subr.mxu0 0.0
        %2222 = vmatpush1.msra.mxu0 %v1972
        %2223 = vmatprep.subr.mxu0 0.0
        %2224 = vmatpush1.msra.mxu0 %v1975
        %2225 = vmatprep.subr.mxu0 0.0
        %2226 = vmatpush1.msra.mxu0 %v1978
        %2227 = vmatprep.subr.mxu0 0.0
        %2228 = vmatpush1.msra.mxu0 %v1981
        %2229 = vmatprep.subr.mxu0 0.0
        %2230 = vmatpush1.msra.mxu0 %v1984
        %2231 = vmatprep.subr.mxu0 0.0
        %2232 = vmatpush1.msra.mxu0 %v1987
        %2233 = vmatprep.subr.mxu0 0.0
        %2234 = vmatpush1.msra.mxu0 %v1990
        %2235 = vmatprep.subr.mxu0 0.0
        %2236 = vmatpush1.msra.mxu0 %v1993
        %2237 = vmatprep.subr.mxu0 0.0
        %2238 = vmatpush1.msra.mxu0 %v1996
        %2239 = vmatprep.subr.mxu0 0.0
        %2240 = vmatpush1.msra.mxu0 %v1999
        %2241 = vmatprep.subr.mxu0 0.0
        %2242 = vmatpush1.msra.mxu0 %v2002
        %2243 = vmatprep.subr.mxu0 0.0
        %2244 = vmatpush1.msra.mxu0 %v2005
        %2245 = vmatprep.subr.mxu0 0.0
        %2246 = vmatpush1.msra.mxu0 %v2008
        %2247 = vmatprep.subr.mxu0 0.0
        %2248 = vmatpush1.msra.mxu0 %v2011
        %2249 = vmatprep.subr.mxu0 0.0
        %2250 = vmatpush1.msra.mxu0 %v2014
        %2251 = vmatprep.subr.mxu0 0.0
        %2252 = vmatpush1.msra.mxu0 %v2017
        %2253 = vmatprep.subr.mxu0 0.0
        %2254 = vmatpush1.msra.mxu0 %v2020
        %2255 = vmatprep.subr.mxu0 0.0
        %2256 = vmatpush1.msra.mxu0 %v2023
        %2257 = vmatprep.mubr.f32.mxu0 %v146
        %2258 = vmatmul.mubr.f32.gmra.mrb[0].mxu0 %v145
        %v2259 = vpop.f32.mrb[0].mxu0
        %v2260 = vadd.f32 0.0, %v2259
        %v2261 = vpop.f32.mrb[0].mxu0
        %2262 = vmatprep.mubr.f32.mxu0 %v167
        %2263 = vmatmul.mubr.f32.gmra.mrb[0].mxu0 %v166
        %v2264 = vpop.f32.mrb[0].mxu0
        %v2265 = vadd.f32 0.0, %v2264
        %v2266 = vpop.f32.mrb[0].mxu0
        %2267 = vdwg.mxu0
        %2268 = vmatprep.subr.mxu0 0.0
        %2269 = vmatpush1.msra.mxu0 %v2026
        %2270 = vmatprep.subr.mxu0 0.0
        %2271 = vmatpush1.msra.mxu0 %v2029
        %2272 = vmatprep.subr.mxu0 0.0
        %2273 = vmatpush1.msra.mxu0 %v2032
        %2274 = vmatprep.subr.mxu0 0.0
        %2275 = vmatpush1.msra.mxu0 %v2035
        %2276 = vmatprep.subr.mxu0 0.0
        %2277 = vmatpush1.msra.mxu0 0.0
        %2278 = vmatprep.subr.mxu0 0.0
        %2279 = vmatpush1.msra.mxu0 0.0
        %2280 = vmatprep.subr.mxu0 0.0
        %2281 = vmatpush1.msra.mxu0 0.0
        %2282 = vmatprep.subr.mxu0 0.0
        %2283 = vmatpush1.msra.mxu0 0.0
        %2284 = vmatprep.subr.mxu0 0.0
        %2285 = vmatpush1.msra.mxu0 0.0
        %2286 = vmatprep.subr.mxu0 0.0
        %2287 = vmatpush1.msra.mxu0 0.0
        %2288 = vmatprep.subr.mxu0 0.0
        %2289 = vmatpush1.msra.mxu0 0.0
        %2290 = vmatprep.subr.mxu0 0.0
        %2291 = vmatpush1.msra.mxu0 0.0
        %2292 = vmatprep.subr.mxu0 0.0
        %2293 = vmatpush1.msra.mxu0 0.0
        %2294 = vmatprep.subr.mxu0 0.0
        %2295 = vmatpush1.msra.mxu0 0.0
        %2296 = vmatprep.subr.mxu0 0.0
        %2297 = vmatpush1.msra.mxu0 0.0
        %2298 = vmatprep.subr.mxu0 0.0
        %2299 = vmatpush1.msra.mxu0 0.0
        %2300 = vmatprep.subr.mxu0 0.0
        %2301 = vmatpush1.msra.mxu0 0.0
        %2302 = vmatprep.subr.mxu0 0.0
        %2303 = vmatpush1.msra.mxu0 0.0
        %2304 = vmatprep.subr.mxu0 0.0
        %2305 = vmatpush1.msra.mxu0 0.0
        %2306 = vmatprep.subr.mxu0 0.0
        %2307 = vmatpush1.msra.mxu0 0.0
        %2308 = vmatprep.subr.mxu0 0.0
        %2309 = vmatpush1.msra.mxu0 0.0
        %2310 = vmatprep.subr.mxu0 0.0
        %2311 = vmatpush1.msra.mxu0 0.0
        %2312 = vmatprep.subr.mxu0 0.0
        %2313 = vmatpush1.msra.mxu0 0.0
        %2314 = vmatprep.subr.mxu0 0.0
        %2315 = vmatpush1.msra.mxu0 0.0
        %2316 = vmatprep.subr.mxu0 0.0
        %2317 = vmatpush1.msra.mxu0 0.0
        %2318 = vmatprep.subr.mxu0 0.0
        %2319 = vmatpush1.msra.mxu0 0.0
        %2320 = vmatprep.subr.mxu0 0.0
        %2321 = vmatpush1.msra.mxu0 0.0
        %2322 = vmatprep.subr.mxu0 0.0
        %2323 = vmatpush1.msra.mxu0 0.0
        %2324 = vmatprep.subr.mxu0 0.0
        %2325 = vmatpush1.msra.mxu0 0.0
        %2326 = vmatprep.subr.mxu0 0.0
        %2327 = vmatpush1.msra.mxu0 0.0
        %2328 = vmatprep.subr.mxu0 0.0
        %2329 = vmatpush1.msra.mxu0 0.0
        %2330 = vmatprep.subr.mxu0 0.0
        %2331 = vmatpush1.msra.mxu0 0.0
        %2332 = vmatprep.mubr.f32.mxu0 0.0
        %2333 = vmatmul.mubr.f32.gmra.mrb[0].mxu0 %v726
        %v2334 = vpop.f32.mrb[0].mxu0
        %v2335 = vadd.f32 %v2260, %v2334
        %v2336 = vpop.f32.mrb[0].mxu0
        %2337 = vmatprep.mubr.f32.mxu0 0.0
        %2338 = vmatmul.mubr.f32.gmra.mrb[0].mxu0 %v2037
        %v2339 = vpop.f32.mrb[0].mxu0
        %v2340 = vadd.f32 %v2265, %v2339
        %v2341 = vpop.f32.mrb[0].mxu0
        %2342 = vdwg.mxu0
        %v2343 = vadd.f32 %v1922, %v2183
        %v2344 = vadd.f32 %v1923, %v2185
        %v2345 = vadd.f32 %v1924, %v2335
        %v2346 = vadd.f32 %v1925, %v2189
        %v2347 = vadd.f32 %v1926, %v2191
        %v2348 = vadd.f32 %v1927, %v2340
        %2349 = vst [vmem:[%s136] sm:$0xff] %v2343
        %2350 = vst [vmem:[%s136 + $0x8] sm:$0xff] %v2344
        %2351 = vst.msk [vmem:[%s136 + $0x10] sm:$0xff] %vm414, %v2345
        %2352 = vst [vmem:[%s136 + $0x18] sm:$0xff] %v2346
        %2353 = vst [vmem:[%s136 + $0x20] sm:$0xff] %v2347
        %2354 = vst.msk [vmem:[%s136 + $0x28] sm:$0xff] %vm414, %v2348
        %s2355 = sand.u32 %s71, 1
        %s2356 = scalar_lea.sflag [#allocation3], %s2355
        %s2357 = sand.u32 %s71, 1
        %s2358 = smul.addr %s2357, 48
        %s2359 = scalar_lea.vmem [#allocation2], %s2358
        // Predicated region
        $region29: #{tpu_custom_call.1} parent=27 // pred_check
          %p2360 = pneg %p81
        $region30: #{tpu_custom_call.1} parent=27 // pred_check_branch
          %2362 = sbr.rel (%p2360) target = $region32
        $region31: #{tpu_custom_call.1} parent=27 // pred_region
          %s2364 = ssub.s32 768, 768
          %2365 = vsyncadd %s2356, %s2364
          %s2366 = smul.addr %s16, 6
          %s2367 = smul.addr %s2366, 128
          %s2368 = scalar_lea.hbm %s2, %s2367
          %s2369 = sshll.u32 %s2359, 4
          %s2370 = int_to_ptr.vmem [resolvable:$true] %s2369
          %2375 = dma.vmem_to_hbm [thread:$0]  %s2370, 768, %s2368, %s2356, 384, 384, 24
        $region32: #{tpu_custom_call.1} parent=27 // pred_fallthru
          _
      $region28: #{tpu_custom_call.1} parent=5 // pred_fallthru
        _
      %p2376 = scmp.le.s32.totalorder 2, %s11
      // Predicated region
      $region33: #{tpu_custom_call.1} parent=5 // pred_check
        %p2377 = pneg %p2376
      $region34: #{tpu_custom_call.1} parent=5 // pred_check_branch
        %2379 = sbr.rel (%p2377) target = $region36
      $region35: #{tpu_custom_call.1} parent=5 // pred_region
        %s2380 = ssub.s32 %s11, 2
        // Predicated region
        $region37: #{tpu_custom_call.1} parent=35 // pred_check
          %p2381 = pneg %p87
        $region38: #{tpu_custom_call.1} parent=35 // pred_check_branch
          %2383 = sbr.rel (%p2381) target = $region40
        $region39: #{tpu_custom_call.1} parent=35 // pred_region
          %s2384 = sand.u32 %s72, 1
          %s2385 = scalar_lea.sflag [#allocation3], %s2384
          %s2386 = sand.u32 %s72, 1
          %s2387 = smul.addr %s2386, 48
          %s2388 = scalar_lea.vmem [#allocation2], %s2387
          %2389 = dma.done %s2385, 768
        $region40: #{tpu_custom_call.1} parent=35 // pred_fallthru
          _
      $region36: #{tpu_custom_call.1} parent=5 // pred_fallthru
        _
    $region6: #{tpu_custom_call.1} parent=1 // loop_footer
      %s15 = sadd.s32 1, %s11
    $region7: #{tpu_custom_call.1} parent=1 // loop_footer_branch
      %10 = sbr.rel target = $region3
    $region8: #{tpu_custom_call.1} parent=1 // loop_exit
      _
    %2390 = vsyncpa [#allocation3], 1
    %s2391 = scalar_lea.sflag [#allocation3], 1
    %2392 = vsyncpa %s2391, 1

</llo_original>
